<compile_context>
chip_gen: v7x
topology: tpu7x:2x2x1
jax: 0.10.0
libtpu: 0.0.40
codegen_flags: <defaults>
</compile_context>

<pallas_src>
import math
import functools

import numpy as np
import jax
import jax.numpy as jnp
from jax import lax
from jax.experimental import pallas as pl
from jax.experimental.pallas import tpu as pltpu


LANE = 128  # TPU lane width; padding granularity for S, d_model and q/k head slabs


def _round_up(x, m):
    return ((x + m - 1) // m) * m


# ----------------------------------------------------------------------------
# PAM-Naive mask (exact port of get_mask; 1.0 == masked-out position)
# ----------------------------------------------------------------------------
def get_mask_np(input_size, window_size, inner_size):
    all_size = [input_size]
    second_size = math.floor(input_size / window_size)
    all_size.append(second_size)
    third_size = math.floor(second_size / window_size)
    all_size.append(third_size)
    fourth_size = math.floor(third_size / window_size)
    all_size.append(fourth_size)
    seq_length = sum(all_size)
    mask = np.zeros((seq_length, seq_length), dtype=np.float32)
    inner_window = inner_size // 2

    for i in range(input_size):
        left = max(i - inner_window, 0)
        right = min(i + inner_window + 1, input_size)
        mask[i, left:right] = 1
    start = input_size
    for i in range(start, start + second_size):
        left = max(i - inner_window, start)
        right = min(i + inner_window + 1, start + second_size)
        mask[i, left:right] = 1
    start = input_size + second_size
    for i in range(start, start + third_size):
        left = max(i - inner_window, start)
        right = min(i + inner_window + 1, start + third_size)
        mask[i, left:right] = 1
    start = input_size + second_size + third_size
    for i in range(start, start + fourth_size):
        left = max(i - inner_window, start)
        right = min(i + inner_window + 1, start + fourth_size)
        mask[i, left:right] = 1

    start = input_size
    for i in range(start, start + second_size):
        left = (i - input_size) * window_size
        right = start if i == start + second_size - 1 else (i - input_size + 1) * window_size
        mask[i, left:right] = 1
        mask[left:right, i] = 1
    start = input_size + second_size
    for i in range(start, start + third_size):
        left = input_size + (i - start) * window_size
        right = start if i == start + third_size - 1 else input_size + (i - start + 1) * window_size
        mask[i, left:right] = 1
        mask[left:right, i] = 1
    start = input_size + second_size + third_size
    for i in range(start, start + fourth_size):
        left = input_size + second_size + (i - start) * window_size
        right = start if i == start + fourth_size - 1 else input_size + second_size + (i - start + 1) * window_size
        mask[i, left:right] = 1
        mask[left:right, i] = 1

    mask = 1.0 - mask  # 1.0 == masked (True in the bool mask of the PyTorch code)
    return mask.astype(np.float32), all_size


# ----------------------------------------------------------------------------
# Pallas kernel: one grid step per batch element; full padded (S_pad, D_pad) tile.
# ----------------------------------------------------------------------------
def attn_kernel(x_ref, w_ref, bfc_ref, gamma_ref, beta_ref, bias_ref, fmask_ref, o_ref,
                *, n_head, d_model, dkp, d_pad):
    x32 = x_ref[...]                                   # (S_pad, D_pad) f32, residual
    xb = x32.astype(jnp.bfloat16)

    # One fused projection matmul over the concatenated weight:
    #   [ q heads (1/sqrt(d_k) folded into weights) | k heads | (wv@wfc)-fused heads ]
    # Cast to bf16 once; all per-head slabs below are lane-aligned (static slices,
    # no cross-lane relayout), so the head loop re-reads cheap bf16 tiles only.
    proj = jnp.dot(xb, w_ref[...],
                   preferred_element_type=jnp.float32).astype(jnp.bfloat16)

    q_off = 0
    k_off = n_head * dkp
    v_off = 2 * n_head * dkp

    # bf16 additive mask bias (-1e9 == masked).  Kept in bf16: the `s + bias` add
    # upcasts tile-locally on the VALU, so no full f32 copy of the (S_pad, S_pad)
    # bias is materialized across the head loop.  bf16 stores -1e9 with ~3
    # significant digits, which is plenty -- it only has to drive exp() to
    # underflow; do not shrink the sentinel to something bf16 can't keep distinct
    # from real scores.
    bias = bias_ref[...]

    s_pad = x32.shape[0]
    acc = jnp.zeros((s_pad, d_pad), jnp.float32)

    for h in range(n_head):                            # n_head is small; static unroll
        qh = proj[:, q_off + h * dkp: q_off + (h + 1) * dkp]
        kh = proj[:, k_off + h * dkp: k_off + (h + 1) * dkp]
        vh = proj[:, v_off + h * d_pad: v_off + (h + 1) * d_pad]
        # scores: contract the head dim of q and k directly (no explicit transpose)
        s = lax.dot_general(qh, kh, (((1,), (1,)), ((), ())),
                            preferred_element_type=jnp.float32)
        # Additive -1e9 bias == masked_fill(-1e9) of the reference because every
        # real row attends to itself in the PAM mask; a fully-masked row would
        # diverge (reference: uniform softmax).  Padded query rows are sliced off
        # by the wrapper, so this never matters in practice.
        s = s + bias
        s = s - jnp.max(s, axis=-1, keepdims=True)
        p = jnp.exp(s)
        # EUP reciprocal: rows sum to ~1 (approx); intentional, covered by test tol.
        p = p * pl.reciprocal(jnp.sum(p, axis=-1, keepdims=True), approx=True)
        # TODO(synk): dropout_attn / dropout_fc are identity here (eval-mode semantics).
        # Output projection is algebraically folded into vh (W_h = wv_h @ wfc_h),
        # so p @ vh directly accumulates this head's contribution to the fc output.
        acc = acc + jnp.dot(p.astype(jnp.bfloat16), vh,
                            preferred_element_type=jnp.float32)

    # fc bias + residual (dropout_fc is identity)
    ctx = acc + bfc_ref[...] + x32

    # post-LayerNorm over the *real* d_model features.  Padded feature columns of
    # ctx are exactly zero by construction (zero-padded fused weights / bias /
    # residual), so the plain lane sum gives the real mean; the feature mask
    # zeroes their contribution to the variance.
    fmask = fmask_ref[...]
    mean = jnp.sum(ctx, axis=-1, keepdims=True) * (1.0 / d_model)
    diff = (ctx - mean) * fmask
    var = jnp.sum(diff * diff, axis=-1, keepdims=True) * (1.0 / d_model)
    norm = diff * lax.rsqrt(var + 1e-6)
    o_ref[...] = (norm * gamma_ref[...] + beta_ref[...]).astype(o_ref.dtype)


def normal_self_attention(x, wq, wk, wv, wfc, bfc, gamma, beta, mask, *, n_head, d_k):
    """x: (B, S, d_model) f32.  wq/wk/wv: (d_model, n_head*d_k) f32 (pre-transposed).
    wfc: (n_head*d_k, d_model) f32.  mask: (S, S) f32 with 1.0 == masked-out."""
    B, S, D = x.shape
    assert wq.shape == (D, n_head * d_k)

    dkp = LANE                              # lane-aligned per-head q/k slab width
    S_pad = _round_up(S, LANE)
    D_pad = _round_up(D, LANE)

    # ---- pad activations (zeros in padded rows / feature columns) ----
    x_p = jnp.zeros((B, S_pad, D_pad), jnp.float32).at[:, :S, :D].set(x)

    # ---- q/k weights: per-head slabs padded to 128 lanes; scale folded into wq ----
    def pad_heads(w):                       # (D, n_head*d_k) -> (D_pad, n_head*dkp) f32
        w3 = w.reshape(D, n_head, d_k)
        w3 = jnp.pad(w3, ((0, D_pad - D), (0, 0), (0, dkp - d_k)))
        return w3.reshape(D_pad, n_head * dkp)

    wq_p = pad_heads(wq * (1.0 / math.sqrt(d_k)))   # fold 1/sqrt(d_k) into the weight
    wk_p = pad_heads(wk)

    # ---- algebraic fusion of value + output projections: W_h = wv_h @ wfc_h ----
    # Computed in f32 host-side, padded with exact zeros (so padded output columns
    # of acc stay exactly zero for the LayerNorm mean), then cast to bf16.
    wv3 = wv.reshape(D, n_head, d_k)                 # (D, H, d_k)
    wfc3 = wfc.reshape(n_head, d_k, D)               # (H, d_k, D)
    wfused = jnp.einsum('dhk,hke->hde', wv3, wfc3)   # (H, D, D) f32
    wfused = jnp.pad(wfused, ((0, 0), (0, D_pad - D), (0, D_pad - D)))
    wfused = jnp.transpose(wfused, (1, 0, 2)).reshape(D_pad, n_head * D_pad)

    # ---- single fused projection weight: [ q | k | v_fused ] ----
    w_all = jnp.concatenate([wq_p, wk_p, wfused], axis=1).astype(jnp.bfloat16)
    W_total = 2 * n_head * dkp + n_head * D_pad

    pad_vec = lambda v: jnp.zeros((1, D_pad), jnp.float32).at[:, :D].set(v)
    bfc_p, gamma_p, beta_p = pad_vec(bfc), pad_vec(gamma), pad_vec(beta)
    fmask = jnp.zeros((1, D_pad), jnp.float32).at[:, :D].set(1.0)

    # ---- additive mask bias in bf16 (-1e9 == masked); padded key columns masked ----
    bias = jnp.full((S_pad, S_pad), -1e9, jnp.float32)
    bias = bias.at[:S, :S].set(mask * (-1e9))
    bias = bias.astype(jnp.bfloat16)

    kernel = functools.partial(attn_kernel, n_head=n_head, d_model=D, dkp=dkp, d_pad=D_pad)

    out = pl.pallas_call(
        kernel,
        out_shape=jax.ShapeDtypeStruct((B, S_pad, D_pad), jnp.float32),
        grid_spec=pltpu.PrefetchScalarGridSpec(
            num_scalar_prefetch=0,
            grid=(B,),
            in_specs=[
                pl.BlockSpec((None, S_pad, D_pad), lambda b: (b, 0, 0)),   # x (squeezed batch)
                pl.BlockSpec((D_pad, W_total), lambda b: (0, 0)),          # fused [q|k|v@fc] weight (bf16)
                pl.BlockSpec((1, D_pad), lambda b: (0, 0)),                # fc bias
                pl.BlockSpec((1, D_pad), lambda b: (0, 0)),                # LN gamma
                pl.BlockSpec((1, D_pad), lambda b: (0, 0)),                # LN beta
                pl.BlockSpec((S_pad, S_pad), lambda b: (0, 0)),            # additive mask bias (bf16)
                pl.BlockSpec((1, D_pad), lambda b: (0, 0)),                # feature mask for LN
            ],
            out_specs=pl.BlockSpec((None, S_pad, D_pad), lambda b: (b, 0, 0)),
        ),
        compiler_params=pltpu.CompilerParams(
            dimension_semantics=("parallel",),
            vmem_limit_bytes=32 * 1024 * 1024,
        ),
    )(x_p, w_all, bfc_p, gamma_p, beta_p, bias, fmask)

    # TODO(synk): for production sizes fuse this un-padding slice into the consumer
    # (or emit bf16 output) to avoid an extra full HBM pass over the padded slab.
    return out[:, :S, :D]


# ----------------------------------------------------------------------------
# Pure-JAX reference (exact module semantics, f32, unfused weights)
# ----------------------------------------------------------------------------
def reference(x, wq, wk, wv, wfc, bfc, gamma, beta, mask, n_head, d_k):
    B, S, D = x.shape
    q = (x @ wq) / math.sqrt(d_k)
    k = x @ wk
    v = x @ wv
    q = q.reshape(B, S, n_head, d_k).transpose(0, 2, 1, 3)
    k = k.reshape(B, S, n_head, d_k).transpose(0, 2, 1, 3)
    v = v.reshape(B, S, n_head, d_k).transpose(0, 2, 1, 3)
    s = jnp.einsum('bhqd,bhkd->bhqk', q, k)
    s = jnp.where(mask[None, None] > 0.5, -1e9, s)
    p = jax.nn.softmax(s, axis=-1)
    o = jnp.einsum('bhqk,bhkd->bhqd', p, v).transpose(0, 2, 1, 3).reshape(B, S, n_head * d_k)
    ctx = o @ wfc + bfc[0] + x
    mean = ctx.mean(-1, keepdims=True)
    var = ((ctx - mean) ** 2).mean(-1, keepdims=True)
    ctx = (ctx - mean) / jnp.sqrt(var + 1e-6)
    return ctx * gamma[0] + beta[0]


def xavier_uniform(key, out_features, in_features):
    bound = math.sqrt(6.0 / (in_features + out_features))
    # PyTorch weight layout (out, in); return already transposed to (in, out)
    w = jax.random.uniform(key, (out_features, in_features), jnp.float32, -bound, bound)
    return w.T


if __name__ == "__main__":
    # Small synthetic "opt" config
    d_model = 32
    n_head = 4
    d_k = 8                    # n_head * d_k == d_model (matches residual add)
    input_size = 16            # opt.seq_len
    stride_size = 4            # window_size arg of get_mask
    window_size = 3            # inner_size arg of get_mask
    bsz = 2

    mask_np, all_size = get_mask_np(input_size, stride_size, window_size)
    S = sum(all_size)          # total pyramid sequence length (= 21 here)

    key = jax.random.PRNGKey(0)
    k_x, k_q, k_k, k_v, k_fc, k_b = jax.random.split(key, 6)

    x = jax.random.normal(k_x, (bsz, S, d_model), jnp.float32)

    wq = xavier_uniform(k_q, n_head * d_k, d_model)        # (d_model, n_head*d_k)
    wk = xavier_uniform(k_k, n_head * d_k, d_model)
    wv = xavier_uniform(k_v, n_head * d_k, d_model)
    wfc = xavier_uniform(k_fc, d_model, n_head * d_k)       # (n_head*d_k, d_model)
    b_bound = 1.0 / math.sqrt(n_head * d_k)
    bfc = jax.random.uniform(k_b, (1, d_model), jnp.float32, -b_bound, b_bound)
    gamma = jnp.ones((1, d_model), jnp.float32)
    beta = jnp.zeros((1, d_model), jnp.float32)
    mask = jnp.asarray(mask_np)

    out = normal_self_attention(x, wq, wk, wv, wfc, bfc, gamma, beta, mask,
                                n_head=n_head, d_k=d_k)
    out = jax.block_until_ready(out)

    ref = reference(x, wq, wk, wv, wfc, bfc, gamma, beta, mask, n_head, d_k)
    # bf16 MXU operands, fused (wv@wfc) bf16 weight and the approx reciprocal
    # introduce small intentional drift.
    np.testing.assert_allclose(np.asarray(out), np.asarray(ref), rtol=5e-2, atol=5e-2)

    print("KERNEL_OK")
</pallas_src>

<mosaic_0001>
module attributes {stable_mosaic.version = 11 : i64} {
  func.func @attn_kernel(%arg0: i32, %arg1: memref<1x128x128xf32, #tpu.memory_space<vmem>>, %arg2: memref<128x1536xbf16, #tpu.memory_space<vmem>>, %arg3: memref<1x128xf32, #tpu.memory_space<vmem>>, %arg4: memref<1x128xf32, #tpu.memory_space<vmem>>, %arg5: memref<1x128xf32, #tpu.memory_space<vmem>>, %arg6: memref<128x128xbf16, #tpu.memory_space<vmem>>, %arg7: memref<1x128xf32, #tpu.memory_space<vmem>>, %arg8: memref<1x128x128xf32, #tpu.memory_space<vmem>>) attributes {dimension_semantics = [#tpu.dimension_semantics<parallel>], iteration_bounds = array<i64: 2>, scalar_prefetch = 0 : i64, scratch_operands = 0 : i64, tpu.core_type = #tpu.core_type<tc>, window_params = [{transform_indices = @transform_0, window_bounds = array<i64: 1, 128, 128>}, {pipeline_mode = #tpu.pipeline_mode<synchronous>, transform_indices = @transform_1, window_bounds = array<i64: 128, 1536>}, {pipeline_mode = #tpu.pipeline_mode<synchronous>, transform_indices = @transform_2, window_bounds = array<i64: 1, 128>}, {pipeline_mode = #tpu.pipeline_mode<synchronous>, transform_indices = @transform_3, window_bounds = array<i64: 1, 128>}, {pipeline_mode = #tpu.pipeline_mode<synchronous>, transform_indices = @transform_4, window_bounds = array<i64: 1, 128>}, {pipeline_mode = #tpu.pipeline_mode<synchronous>, transform_indices = @transform_5, window_bounds = array<i64: 128, 128>}, {pipeline_mode = #tpu.pipeline_mode<synchronous>, transform_indices = @transform_6, window_bounds = array<i64: 1, 128>}, {transform_indices = @transform_7, window_bounds = array<i64: 1, 128, 128>}]} {
    %c0 = arith.constant 0 : index
    %c0_0 = arith.constant 0 : index
    %c0_1 = arith.constant 0 : index
    %0 = vector.load %arg1[%c0, %c0_0, %c0_1] : memref<1x128x128xf32, #tpu.memory_space<vmem>>, vector<1x128x128xf32>
    %1 = vector.shape_cast %0 : vector<1x128x128xf32> to vector<128x128xf32>
    %2 = arith.truncf %1 : vector<128x128xf32> to vector<128x128xbf16>
    %c0_2 = arith.constant 0 : index
    %c0_3 = arith.constant 0 : index
    %3 = vector.load %arg2[%c0_2, %c0_3] : memref<128x1536xbf16, #tpu.memory_space<vmem>>, vector<128x1536xbf16>
    %cst = arith.constant dense<0.000000e+00> : vector<128x1536xf32>
    %4 = tpu.matmul %2, %3, %cst {dimension_numbers = #tpu.dot_dimension_numbers<[1], [0], [0], [1], [0, 0, 1, 1], [], []>} : vector<128x128xbf16>, vector<128x1536xbf16>, vector<128x1536xf32> -> vector<128x1536xf32>
    %5 = arith.truncf %4 : vector<128x1536xf32> to vector<128x1536xbf16>
    %c0_4 = arith.constant 0 : index
    %c0_5 = arith.constant 0 : index
    %6 = vector.load %arg6[%c0_4, %c0_5] : memref<128x128xbf16, #tpu.memory_space<vmem>>, vector<128x128xbf16>
    %cst_6 = arith.constant 0.000000e+00 : f32
    %7 = vector.broadcast %cst_6 : f32 to vector<128x128xf32>
    %8 = vector.extract_strided_slice %5 {offsets = [0, 0], sizes = [128, 128], strides = [1, 1]} : vector<128x1536xbf16> to vector<128x128xbf16>
    %9 = vector.extract_strided_slice %5 {offsets = [0, 512], sizes = [128, 128], strides = [1, 1]} : vector<128x1536xbf16> to vector<128x128xbf16>
    %10 = vector.extract_strided_slice %5 {offsets = [0, 1024], sizes = [128, 128], strides = [1, 1]} : vector<128x1536xbf16> to vector<128x128xbf16>
    %cst_7 = arith.constant dense<0.000000e+00> : vector<128x128xf32>
    %11 = tpu.matmul %8, %9, %cst_7 {dimension_numbers = #tpu.dot_dimension_numbers<[1], [1], [0], [0], [0, 0, 1, 0], [], []>} : vector<128x128xbf16>, vector<128x128xbf16>, vector<128x128xf32> -> vector<128x128xf32>
    %12 = arith.extf %6 : vector<128x128xbf16> to vector<128x128xf32>
    %13 = arith.addf %11, %12 : vector<128x128xf32>
    %cst_8 = arith.constant dense<0xFF800000> : vector<128xf32>
    %14 = vector.multi_reduction <maximumf>, %13, %cst_8 [1] : vector<128x128xf32> to vector<128xf32>
    %15 = vector.shape_cast %14 : vector<128xf32> to vector<128x1xf32>
    %16 = vector.broadcast %15 : vector<128x1xf32> to vector<128x128xf32>
    %17 = arith.subf %13, %16 : vector<128x128xf32>
    %18 = math.exp %17 : vector<128x128xf32>
    %cst_9 = arith.constant dense<0.000000e+00> : vector<128xf32>
    %19 = vector.multi_reduction <add>, %18, %cst_9 [1] : vector<128x128xf32> to vector<128xf32>
    %20 = vector.shape_cast %19 : vector<128xf32> to vector<128x1xf32>
    %21 = tpu.reciprocal %20 {approx = true} : vector<128x1xf32> -> vector<128x1xf32>
    %22 = vector.broadcast %21 : vector<128x1xf32> to vector<128x128xf32>
    %23 = arith.mulf %18, %22 : vector<128x128xf32>
    %24 = arith.truncf %23 : vector<128x128xf32> to vector<128x128xbf16>
    %cst_10 = arith.constant dense<0.000000e+00> : vector<128x128xf32>
    %25 = tpu.matmul %24, %10, %cst_10 {dimension_numbers = #tpu.dot_dimension_numbers<[1], [0], [0], [1], [0, 0, 1, 1], [], []>} : vector<128x128xbf16>, vector<128x128xbf16>, vector<128x128xf32> -> vector<128x128xf32>
    %26 = arith.addf %7, %25 : vector<128x128xf32>
    %27 = vector.extract_strided_slice %5 {offsets = [0, 128], sizes = [128, 128], strides = [1, 1]} : vector<128x1536xbf16> to vector<128x128xbf16>
    %28 = vector.extract_strided_slice %5 {offsets = [0, 640], sizes = [128, 128], strides = [1, 1]} : vector<128x1536xbf16> to vector<128x128xbf16>
    %29 = vector.extract_strided_slice %5 {offsets = [0, 1152], sizes = [128, 128], strides = [1, 1]} : vector<128x1536xbf16> to vector<128x128xbf16>
    %cst_11 = arith.constant dense<0.000000e+00> : vector<128x128xf32>
    %30 = tpu.matmul %27, %28, %cst_11 {dimension_numbers = #tpu.dot_dimension_numbers<[1], [1], [0], [0], [0, 0, 1, 0], [], []>} : vector<128x128xbf16>, vector<128x128xbf16>, vector<128x128xf32> -> vector<128x128xf32>
    %31 = arith.extf %6 : vector<128x128xbf16> to vector<128x128xf32>
    %32 = arith.addf %30, %31 : vector<128x128xf32>
    %cst_12 = arith.constant dense<0xFF800000> : vector<128xf32>
    %33 = vector.multi_reduction <maximumf>, %32, %cst_12 [1] : vector<128x128xf32> to vector<128xf32>
    %34 = vector.shape_cast %33 : vector<128xf32> to vector<128x1xf32>
    %35 = vector.broadcast %34 : vector<128x1xf32> to vector<128x128xf32>
    %36 = arith.subf %32, %35 : vector<128x128xf32>
    %37 = math.exp %36 : vector<128x128xf32>
    %cst_13 = arith.constant dense<0.000000e+00> : vector<128xf32>
    %38 = vector.multi_reduction <add>, %37, %cst_13 [1] : vector<128x128xf32> to vector<128xf32>
    %39 = vector.shape_cast %38 : vector<128xf32> to vector<128x1xf32>
    %40 = tpu.reciprocal %39 {approx = true} : vector<128x1xf32> -> vector<128x1xf32>
    %41 = vector.broadcast %40 : vector<128x1xf32> to vector<128x128xf32>
    %42 = arith.mulf %37, %41 : vector<128x128xf32>
    %43 = arith.truncf %42 : vector<128x128xf32> to vector<128x128xbf16>
    %cst_14 = arith.constant dense<0.000000e+00> : vector<128x128xf32>
    %44 = tpu.matmul %43, %29, %cst_14 {dimension_numbers = #tpu.dot_dimension_numbers<[1], [0], [0], [1], [0, 0, 1, 1], [], []>} : vector<128x128xbf16>, vector<128x128xbf16>, vector<128x128xf32> -> vector<128x128xf32>
    %45 = arith.addf %26, %44 : vector<128x128xf32>
    %46 = vector.extract_strided_slice %5 {offsets = [0, 256], sizes = [128, 128], strides = [1, 1]} : vector<128x1536xbf16> to vector<128x128xbf16>
    %47 = vector.extract_strided_slice %5 {offsets = [0, 768], sizes = [128, 128], strides = [1, 1]} : vector<128x1536xbf16> to vector<128x128xbf16>
    %48 = vector.extract_strided_slice %5 {offsets = [0, 1280], sizes = [128, 128], strides = [1, 1]} : vector<128x1536xbf16> to vector<128x128xbf16>
    %cst_15 = arith.constant dense<0.000000e+00> : vector<128x128xf32>
    %49 = tpu.matmul %46, %47, %cst_15 {dimension_numbers = #tpu.dot_dimension_numbers<[1], [1], [0], [0], [0, 0, 1, 0], [], []>} : vector<128x128xbf16>, vector<128x128xbf16>, vector<128x128xf32> -> vector<128x128xf32>
    %50 = arith.extf %6 : vector<128x128xbf16> to vector<128x128xf32>
    %51 = arith.addf %49, %50 : vector<128x128xf32>
    %cst_16 = arith.constant dense<0xFF800000> : vector<128xf32>
    %52 = vector.multi_reduction <maximumf>, %51, %cst_16 [1] : vector<128x128xf32> to vector<128xf32>
    %53 = vector.shape_cast %52 : vector<128xf32> to vector<128x1xf32>
    %54 = vector.broadcast %53 : vector<128x1xf32> to vector<128x128xf32>
    %55 = arith.subf %51, %54 : vector<128x128xf32>
    %56 = math.exp %55 : vector<128x128xf32>
    %cst_17 = arith.constant dense<0.000000e+00> : vector<128xf32>
    %57 = vector.multi_reduction <add>, %56, %cst_17 [1] : vector<128x128xf32> to vector<128xf32>
    %58 = vector.shape_cast %57 : vector<128xf32> to vector<128x1xf32>
    %59 = tpu.reciprocal %58 {approx = true} : vector<128x1xf32> -> vector<128x1xf32>
    %60 = vector.broadcast %59 : vector<128x1xf32> to vector<128x128xf32>
    %61 = arith.mulf %56, %60 : vector<128x128xf32>
    %62 = arith.truncf %61 : vector<128x128xf32> to vector<128x128xbf16>
    %cst_18 = arith.constant dense<0.000000e+00> : vector<128x128xf32>
    %63 = tpu.matmul %62, %48, %cst_18 {dimension_numbers = #tpu.dot_dimension_numbers<[1], [0], [0], [1], [0, 0, 1, 1], [], []>} : vector<128x128xbf16>, vector<128x128xbf16>, vector<128x128xf32> -> vector<128x128xf32>
    %64 = arith.addf %45, %63 : vector<128x128xf32>
    %65 = vector.extract_strided_slice %5 {offsets = [0, 384], sizes = [128, 128], strides = [1, 1]} : vector<128x1536xbf16> to vector<128x128xbf16>
    %66 = vector.extract_strided_slice %5 {offsets = [0, 896], sizes = [128, 128], strides = [1, 1]} : vector<128x1536xbf16> to vector<128x128xbf16>
    %67 = vector.extract_strided_slice %5 {offsets = [0, 1408], sizes = [128, 128], strides = [1, 1]} : vector<128x1536xbf16> to vector<128x128xbf16>
    %cst_19 = arith.constant dense<0.000000e+00> : vector<128x128xf32>
    %68 = tpu.matmul %65, %66, %cst_19 {dimension_numbers = #tpu.dot_dimension_numbers<[1], [1], [0], [0], [0, 0, 1, 0], [], []>} : vector<128x128xbf16>, vector<128x128xbf16>, vector<128x128xf32> -> vector<128x128xf32>
    %69 = arith.extf %6 : vector<128x128xbf16> to vector<128x128xf32>
    %70 = arith.addf %68, %69 : vector<128x128xf32>
    %cst_20 = arith.constant dense<0xFF800000> : vector<128xf32>
    %71 = vector.multi_reduction <maximumf>, %70, %cst_20 [1] : vector<128x128xf32> to vector<128xf32>
    %72 = vector.shape_cast %71 : vector<128xf32> to vector<128x1xf32>
    %73 = vector.broadcast %72 : vector<128x1xf32> to vector<128x128xf32>
    %74 = arith.subf %70, %73 : vector<128x128xf32>
    %75 = math.exp %74 : vector<128x128xf32>
    %cst_21 = arith.constant dense<0.000000e+00> : vector<128xf32>
    %76 = vector.multi_reduction <add>, %75, %cst_21 [1] : vector<128x128xf32> to vector<128xf32>
    %77 = vector.shape_cast %76 : vector<128xf32> to vector<128x1xf32>
    %78 = tpu.reciprocal %77 {approx = true} : vector<128x1xf32> -> vector<128x1xf32>
    %79 = vector.broadcast %78 : vector<128x1xf32> to vector<128x128xf32>
    %80 = arith.mulf %75, %79 : vector<128x128xf32>
    %81 = arith.truncf %80 : vector<128x128xf32> to vector<128x128xbf16>
    %cst_22 = arith.constant dense<0.000000e+00> : vector<128x128xf32>
    %82 = tpu.matmul %81, %67, %cst_22 {dimension_numbers = #tpu.dot_dimension_numbers<[1], [0], [0], [1], [0, 0, 1, 1], [], []>} : vector<128x128xbf16>, vector<128x128xbf16>, vector<128x128xf32> -> vector<128x128xf32>
    %83 = arith.addf %64, %82 : vector<128x128xf32>
    %c0_23 = arith.constant 0 : index
    %c0_24 = arith.constant 0 : index
    %84 = vector.load %arg3[%c0_23, %c0_24] : memref<1x128xf32, #tpu.memory_space<vmem>>, vector<1x128xf32>
    %85 = vector.broadcast %84 : vector<1x128xf32> to vector<128x128xf32>
    %86 = arith.addf %83, %85 : vector<128x128xf32>
    %87 = arith.addf %86, %1 : vector<128x128xf32>
    %c0_25 = arith.constant 0 : index
    %c0_26 = arith.constant 0 : index
    %88 = vector.load %arg7[%c0_25, %c0_26] : memref<1x128xf32, #tpu.memory_space<vmem>>, vector<1x128xf32>
    %cst_27 = arith.constant dense<0.000000e+00> : vector<128xf32>
    %89 = vector.multi_reduction <add>, %87, %cst_27 [1] : vector<128x128xf32> to vector<128xf32>
    %90 = vector.shape_cast %89 : vector<128xf32> to vector<128x1xf32>
    %cst_28 = arith.constant 3.125000e-02 : f32
    %91 = vector.broadcast %cst_28 : f32 to vector<128x1xf32>
    %92 = arith.mulf %90, %91 : vector<128x1xf32>
    %93 = vector.broadcast %92 : vector<128x1xf32> to vector<128x128xf32>
    %94 = arith.subf %87, %93 : vector<128x128xf32>
    %95 = vector.broadcast %88 : vector<1x128xf32> to vector<128x128xf32>
    %96 = arith.mulf %94, %95 : vector<128x128xf32>
    %97 = arith.mulf %96, %96 : vector<128x128xf32>
    %cst_29 = arith.constant dense<0.000000e+00> : vector<128xf32>
    %98 = vector.multi_reduction <add>, %97, %cst_29 [1] : vector<128x128xf32> to vector<128xf32>
    %99 = vector.shape_cast %98 : vector<128xf32> to vector<128x1xf32>
    %cst_30 = arith.constant 3.125000e-02 : f32
    %100 = vector.broadcast %cst_30 : f32 to vector<128x1xf32>
    %101 = arith.mulf %99, %100 : vector<128x1xf32>
    %cst_31 = arith.constant 9.99999997E-7 : f32
    %102 = vector.broadcast %cst_31 : f32 to vector<128x1xf32>
    %103 = arith.addf %101, %102 : vector<128x1xf32>
    %104 = math.rsqrt %103 : vector<128x1xf32>
    %105 = vector.broadcast %104 : vector<128x1xf32> to vector<128x128xf32>
    %106 = arith.mulf %96, %105 : vector<128x128xf32>
    %c0_32 = arith.constant 0 : index
    %c0_33 = arith.constant 0 : index
    %107 = vector.load %arg4[%c0_32, %c0_33] : memref<1x128xf32, #tpu.memory_space<vmem>>, vector<1x128xf32>
    %108 = vector.broadcast %107 : vector<1x128xf32> to vector<128x128xf32>
    %109 = arith.mulf %106, %108 : vector<128x128xf32>
    %c0_34 = arith.constant 0 : index
    %c0_35 = arith.constant 0 : index
    %110 = vector.load %arg5[%c0_34, %c0_35] : memref<1x128xf32, #tpu.memory_space<vmem>>, vector<1x128xf32>
    %111 = vector.broadcast %110 : vector<1x128xf32> to vector<128x128xf32>
    %112 = arith.addf %109, %111 : vector<128x128xf32>
    %c0_36 = arith.constant 0 : index
    %c0_37 = arith.constant 0 : index
    %c0_38 = arith.constant 0 : index
    %113 = vector.load %arg8[%c0_36, %c0_37, %c0_38] : memref<1x128x128xf32, #tpu.memory_space<vmem>>, vector<1x128x128xf32>
    %114 = vector.shape_cast %113 : vector<1x128x128xf32> to vector<128x128xf32>
    %115 = vector.shape_cast %112 : vector<128x128xf32> to vector<1x128x128xf32>
    tpu.vector_store %arg8[%c0_36, %c0_37, %c0_38], %115 {strides = array<i32>} : memref<1x128x128xf32, #tpu.memory_space<vmem>>, vector<1x128x128xf32>,
    return
  }
  func.func @transform_0(%arg0: i32) -> (i32, i32, i32) {
    %c0_i32 = arith.constant 0 : i32
    %c0_i32_0 = arith.constant 0 : i32
    %c0_i32_1 = arith.constant 0 : i32
    return %arg0, %c0_i32, %c0_i32_0 : i32, i32, i32
  }
  func.func @transform_1(%arg0: i32) -> (i32, i32) {
    %c0_i32 = arith.constant 0 : i32
    %c0_i32_0 = arith.constant 0 : i32
    %c0_i32_1 = arith.constant 0 : i32
    return %c0_i32, %c0_i32_0 : i32, i32
  }
  func.func @transform_2(%arg0: i32) -> (i32, i32) {
    %c0_i32 = arith.constant 0 : i32
    %c0_i32_0 = arith.constant 0 : i32
    %c0_i32_1 = arith.constant 0 : i32
    return %c0_i32, %c0_i32_0 : i32, i32
  }
  func.func @transform_3(%arg0: i32) -> (i32, i32) {
    %c0_i32 = arith.constant 0 : i32
    %c0_i32_0 = arith.constant 0 : i32
    %c0_i32_1 = arith.constant 0 : i32
    return %c0_i32, %c0_i32_0 : i32, i32
  }
  func.func @transform_4(%arg0: i32) -> (i32, i32) {
    %c0_i32 = arith.constant 0 : i32
    %c0_i32_0 = arith.constant 0 : i32
    %c0_i32_1 = arith.constant 0 : i32
    return %c0_i32, %c0_i32_0 : i32, i32
  }
  func.func @transform_5(%arg0: i32) -> (i32, i32) {
    %c0_i32 = arith.constant 0 : i32
    %c0_i32_0 = arith.constant 0 : i32
    %c0_i32_1 = arith.constant 0 : i32
    return %c0_i32, %c0_i32_0 : i32, i32
  }
  func.func @transform_6(%arg0: i32) -> (i32, i32) {
    %c0_i32 = arith.constant 0 : i32
    %c0_i32_0 = arith.constant 0 : i32
    %c0_i32_1 = arith.constant 0 : i32
    return %c0_i32, %c0_i32_0 : i32, i32
  }
  func.func @transform_7(%arg0: i32) -> (i32, i32, i32) {
    %c0_i32 = arith.constant 0 : i32
    %c0_i32_0 = arith.constant 0 : i32
    %c0_i32_1 = arith.constant 0 : i32
    return %arg0, %c0_i32, %c0_i32_0 : i32, i32, i32
  }
}

</mosaic_0001>

<llo_original>
// kernel: tpu_custom_call.1
$region0: #{tpu_custom_call.1}
  #allocation0 [shape = 'u32[]', space=smem, size = 0x4, offset = 0x4, fixed_abs, tag = 'smem constant byte address 0x4 - core index']
  #allocation1 [shape = 'u32[144,128]{1,0:T(1,128)}', space=vmem, size = 0x12000, scoped, tag = 'internal scratch']
  %s0 = inlined_call_operand.hbm [shape: f32[2,128,128], index: 0, kind: input, shape index: {}]
  %s1 = inlined_call_operand.hbm [shape: bf16[128,1536], index: 1, kind: input, shape index: {}]
  %s2 = inlined_call_operand.vmem [shape: f32[1,128], index: 2, kind: input, shape index: {}]
  %s3 = inlined_call_operand.vmem [shape: f32[1,128], index: 3, kind: input, shape index: {}]
  %s4 = inlined_call_operand.vmem [shape: f32[1,128], index: 4, kind: input, shape index: {}]
  %s5 = inlined_call_operand.hbm [shape: bf16[128,128], index: 5, kind: input, shape index: {}]
  %s6 = inlined_call_operand.vmem [shape: f32[1,128], index: 6, kind: input, shape index: {}]
  %s7 = inlined_call_operand.hbm [shape: f32[2,128,128], index: 7, kind: output, shape index: {}]
  %s8 = sld [smem:[#allocation0]]
  $region73: #{tpu_custom_call.1} parent=0
    _
  %s10 = ssub.s32 1, %s8
  %s11 = scalar_select 0, %s10, %s8
  $region1: #{tpu_custom_call.1} parent=0
    #allocation2 [shape = 'u8[131072]{0}', space=vmem, size = 0x20000, scoped, tag = 'input window, operand 0']
    #allocation3 [shape = 's32[2]{0}', space=sflag, size = 0x8, scoped, tag = 'scoped memory for tpu_custom_call.1']
    #allocation4 [shape = 's32[2]{0}', space=sflag, size = 0x8, scoped, tag = 'scoped memory for tpu_custom_call.1']
    #allocation5 [shape = 'u8[393216]{0}', space=vmem, size = 0x60000, scoped, tag = 'input window, operand 1, single buffered']
    #allocation6 [shape = 's32[1]{0}', space=sflag, size = 0x4, scoped, tag = 'scoped memory for tpu_custom_call.1']
    #allocation7 [shape = 'u8[32768]{0}', space=vmem, size = 0x8000, scoped, tag = 'input window, operand 5, single buffered']
    #allocation8 [shape = 'u8[131072]{0}', space=vmem, size = 0x20000, scoped, tag = 'output window, operand 0']
    %12 = vsyncpa [#allocation3], 0
    %s13 = scalar_lea.sflag [#allocation3], 1
    %14 = vsyncpa %s13, 0
    %15 = vsyncpa [#allocation6], 0
    %16 = vsyncpa [#allocation4], 0
    %s17 = scalar_lea.sflag [#allocation4], 1
    %18 = vsyncpa %s17, 0
    loop: start=0, step=1, limit=4
    $region2: #{tpu_custom_call.1} parent=1 // loop_pre_header
      _
    $region3: #{tpu_custom_call.1} parent=1 // loop_header
      %s20 = sphi 0, %s24
      %p21 = scmp.ge.s32.totalorder %s20, 4
      %s30 = sphi 0, %s32
      %s33 = sphi 0, %s30
      %s34 = sphi 0, %s33
      %s50 = sphi 0, %s34
      %s54 = sphi 0, %s54
      %s56 = sphi 0, %s54
      %s57 = sphi 0, %s56
      %s71 = sphi 0, %s57
      %s75 = sphi 0, %s75
      %s77 = sphi 0, %s75
      %s78 = sphi 0, %s77
      %s92 = sphi 0, %s78
      %s96 = sphi 0, %s96
      %s98 = sphi 0, %s96
      %s99 = sphi 0, %s98
      %s113 = sphi 0, %s99
      %s117 = sphi 0, %s117
      %s119 = sphi 0, %s117
      %s120 = sphi 0, %s119
      %s134 = sphi 0, %s120
      %s138 = sphi 0, %s138
      %s140 = sphi 0, %s138
      %s141 = sphi 0, %s140
      %s155 = sphi 0, %s141
      %s159 = sphi 0, %s159
      %s161 = sphi 0, %s159
      %s162 = sphi 0, %s161
      %s176 = sphi 0, %s162
      %s182 = sphi 0, %s184
      %s185 = sphi 0, %s182
      %s186 = sphi 0, %s185
      %s202 = sphi 0, %s186
    $region4: #{tpu_custom_call.1} parent=1 // loop_header_branch
      %23 = sbr.rel (%p21) target = $region8
    $region5: #{tpu_custom_call.1} parent=1 // loop_body
      %s25 = ssub.s32 %s20, 1
      %s26 = ssub.s32 %s20, 2
      %s27 = sadd.s32 %s20, 1
      %s28 = ssub.s32 %s20, %s27
      %p29 = scmp.eq.s32.totalorder %s28, 0
      %s31 = sadd.s32 %s30, 1
      %s32 = scalar_select %p29, %s30, %s31
      %p35 = pneg %p29
      %p36 = scmp.eq.s32.totalorder %s20, 1
      %p37 = por %p35, %p36
      %p38 = scmp.ne.s32.totalorder %s30, %s33
      %p39 = scmp.eq.s32.totalorder %s20, 0
      %p40 = por %p38, %p39
      %p41 = scmp.ne.s32.totalorder %s30, %s33
      %p42 = scmp.eq.s32.totalorder %s25, 1
      %p43 = por %p41, %p42
      %p44 = scmp.ne.s32.totalorder %s33, %s34
      %p45 = scmp.eq.s32.totalorder %s25, 0
      %p46 = por %p44, %p45
      %p47 = scmp.ne.s32.totalorder %s33, %s34
      %p48 = scmp.eq.s32.totalorder %s26, 1
      %p49 = por %p47, %p48
      %p51 = scmp.ne.s32.totalorder %s34, %s50
      %p52 = scmp.eq.s32.totalorder %s26, 0
      %p53 = por %p51, %p52
      %s55 = sadd.s32 %s54, 1
      %p58 = scmp.eq.s32.totalorder %s20, 1
      %p59 = scmp.ne.s32.totalorder %s54, %s56
      %p60 = scmp.eq.s32.totalorder %s20, 0
      %p61 = por %p59, %p60
      %p62 = scmp.ne.s32.totalorder %s54, %s56
      %p63 = scmp.eq.s32.totalorder %s25, 1
      %p64 = por %p62, %p63
      %p65 = scmp.ne.s32.totalorder %s56, %s57
      %p66 = scmp.eq.s32.totalorder %s25, 0
      %p67 = por %p65, %p66
      %p68 = scmp.ne.s32.totalorder %s56, %s57
      %p69 = scmp.eq.s32.totalorder %s26, 1
      %p70 = por %p68, %p69
      %p72 = scmp.ne.s32.totalorder %s57, %s71
      %p73 = scmp.eq.s32.totalorder %s26, 0
      %p74 = por %p72, %p73
      %s76 = sadd.s32 %s75, 1
      %p79 = scmp.eq.s32.totalorder %s20, 1
      %p80 = scmp.ne.s32.totalorder %s75, %s77
      %p81 = scmp.eq.s32.totalorder %s20, 0
      %p82 = por %p80, %p81
      %p83 = scmp.ne.s32.totalorder %s75, %s77
      %p84 = scmp.eq.s32.totalorder %s25, 1
      %p85 = por %p83, %p84
      %p86 = scmp.ne.s32.totalorder %s77, %s78
      %p87 = scmp.eq.s32.totalorder %s25, 0
      %p88 = por %p86, %p87
      %p89 = scmp.ne.s32.totalorder %s77, %s78
      %p90 = scmp.eq.s32.totalorder %s26, 1
      %p91 = por %p89, %p90
      %p93 = scmp.ne.s32.totalorder %s78, %s92
      %p94 = scmp.eq.s32.totalorder %s26, 0
      %p95 = por %p93, %p94
      %s97 = sadd.s32 %s96, 1
      %p100 = scmp.eq.s32.totalorder %s20, 1
      %p101 = scmp.ne.s32.totalorder %s96, %s98
      %p102 = scmp.eq.s32.totalorder %s20, 0
      %p103 = por %p101, %p102
      %p104 = scmp.ne.s32.totalorder %s96, %s98
      %p105 = scmp.eq.s32.totalorder %s25, 1
      %p106 = por %p104, %p105
      %p107 = scmp.ne.s32.totalorder %s98, %s99
      %p108 = scmp.eq.s32.totalorder %s25, 0
      %p109 = por %p107, %p108
      %p110 = scmp.ne.s32.totalorder %s98, %s99
      %p111 = scmp.eq.s32.totalorder %s26, 1
      %p112 = por %p110, %p111
      %p114 = scmp.ne.s32.totalorder %s99, %s113
      %p115 = scmp.eq.s32.totalorder %s26, 0
      %p116 = por %p114, %p115
      %s118 = sadd.s32 %s117, 1
      %p121 = scmp.eq.s32.totalorder %s20, 1
      %p122 = scmp.ne.s32.totalorder %s117, %s119
      %p123 = scmp.eq.s32.totalorder %s20, 0
      %p124 = por %p122, %p123
      %p125 = scmp.ne.s32.totalorder %s117, %s119
      %p126 = scmp.eq.s32.totalorder %s25, 1
      %p127 = por %p125, %p126
      %p128 = scmp.ne.s32.totalorder %s119, %s120
      %p129 = scmp.eq.s32.totalorder %s25, 0
      %p130 = por %p128, %p129
      %p131 = scmp.ne.s32.totalorder %s119, %s120
      %p132 = scmp.eq.s32.totalorder %s26, 1
      %p133 = por %p131, %p132
      %p135 = scmp.ne.s32.totalorder %s120, %s134
      %p136 = scmp.eq.s32.totalorder %s26, 0
      %p137 = por %p135, %p136
      %s139 = sadd.s32 %s138, 1
      %p142 = scmp.eq.s32.totalorder %s20, 1
      %p143 = scmp.ne.s32.totalorder %s138, %s140
      %p144 = scmp.eq.s32.totalorder %s20, 0
      %p145 = por %p143, %p144
      %p146 = scmp.ne.s32.totalorder %s138, %s140
      %p147 = scmp.eq.s32.totalorder %s25, 1
      %p148 = por %p146, %p147
      %p149 = scmp.ne.s32.totalorder %s140, %s141
      %p150 = scmp.eq.s32.totalorder %s25, 0
      %p151 = por %p149, %p150
      %p152 = scmp.ne.s32.totalorder %s140, %s141
      %p153 = scmp.eq.s32.totalorder %s26, 1
      %p154 = por %p152, %p153
      %p156 = scmp.ne.s32.totalorder %s141, %s155
      %p157 = scmp.eq.s32.totalorder %s26, 0
      %p158 = por %p156, %p157
      %s160 = sadd.s32 %s159, 1
      %p163 = scmp.eq.s32.totalorder %s20, 1
      %p164 = scmp.ne.s32.totalorder %s159, %s161
      %p165 = scmp.eq.s32.totalorder %s20, 0
      %p166 = por %p164, %p165
      %p167 = scmp.ne.s32.totalorder %s159, %s161
      %p168 = scmp.eq.s32.totalorder %s25, 1
      %p169 = por %p167, %p168
      %p170 = scmp.ne.s32.totalorder %s161, %s162
      %p171 = scmp.eq.s32.totalorder %s25, 0
      %p172 = por %p170, %p171
      %p173 = scmp.ne.s32.totalorder %s161, %s162
      %p174 = scmp.eq.s32.totalorder %s26, 1
      %p175 = por %p173, %p174
      %p177 = scmp.ne.s32.totalorder %s162, %s176
      %p178 = scmp.eq.s32.totalorder %s26, 0
      %p179 = por %p177, %p178
      %s180 = ssub.s32 %s20, %s27
      %p181 = scmp.eq.s32.totalorder %s180, 0
      %s183 = sadd.s32 %s182, 1
      %s184 = scalar_select %p181, %s182, %s183
      %p187 = pneg %p181
      %p188 = scmp.eq.s32.totalorder %s20, 1
      %p189 = por %p187, %p188
      %p190 = scmp.ne.s32.totalorder %s182, %s185
      %p191 = scmp.eq.s32.totalorder %s20, 0
      %p192 = por %p190, %p191
      %p193 = scmp.ne.s32.totalorder %s182, %s185
      %p194 = scmp.eq.s32.totalorder %s25, 1
      %p195 = por %p193, %p194
      %p196 = scmp.ne.s32.totalorder %s185, %s186
      %p197 = scmp.eq.s32.totalorder %s25, 0
      %p198 = por %p196, %p197
      %p199 = scmp.ne.s32.totalorder %s185, %s186
      %p200 = scmp.eq.s32.totalorder %s26, 1
      %p201 = por %p199, %p200
      %p203 = scmp.ne.s32.totalorder %s186, %s202
      %p204 = scmp.eq.s32.totalorder %s26, 0
      %p205 = por %p203, %p204
      %p206 = scmp.le.s32.totalorder 1, %s20
      %p207 = scmp.lt.s32.totalorder %s20, 3
      %p208 = pnand %p206, %p207
      %p209 = pneg %p208
      // Predicated region
      $region9: #{tpu_custom_call.1} parent=5 // pred_check
        _
      $region10: #{tpu_custom_call.1} parent=5 // pred_check_branch
        %211 = sbr.rel (%p208) target = $region12
      $region11: #{tpu_custom_call.1} parent=5 // pred_region
        %s212 = ssub.s32 %s20, 1
        // Predicated region
        $region13: #{tpu_custom_call.1} parent=11 // pred_check
          %p213 = pneg %p67
        $region14: #{tpu_custom_call.1} parent=11 // pred_check_branch
          %215 = sbr.rel (%p213) target = $region16
        $region15: #{tpu_custom_call.1} parent=11 // pred_region
          %s217 = ssub.s32 12288, 12288
          %218 = vsyncadd [#allocation6], %s217
          %s219 = sshll.u32 [#allocation5], 4
          %s220 = int_to_ptr.vmem [resolvable:$true] %s219
          %225 = dma.hbm_to_vmem [thread:$0]  %s1, 12288, %s220, [#allocation6], 768, 768, 48
        $region16: #{tpu_custom_call.1} parent=11 // pred_fallthru
          _
        // Predicated region
        $region17: #{tpu_custom_call.1} parent=11 // pred_check
          %p226 = pneg %p88
        $region18: #{tpu_custom_call.1} parent=11 // pred_check_branch
          %228 = sbr.rel (%p226) target = $region20
        $region19: #{tpu_custom_call.1} parent=11 // pred_region
          _
        $region20: #{tpu_custom_call.1} parent=11 // pred_fallthru
          _
        // Predicated region
        $region21: #{tpu_custom_call.1} parent=11 // pred_check
          %p229 = pneg %p109
        $region22: #{tpu_custom_call.1} parent=11 // pred_check_branch
          %231 = sbr.rel (%p229) target = $region24
        $region23: #{tpu_custom_call.1} parent=11 // pred_region
          _
        $region24: #{tpu_custom_call.1} parent=11 // pred_fallthru
          _
        // Predicated region
        $region25: #{tpu_custom_call.1} parent=11 // pred_check
          %p232 = pneg %p130
        $region26: #{tpu_custom_call.1} parent=11 // pred_check_branch
          %234 = sbr.rel (%p232) target = $region28
        $region27: #{tpu_custom_call.1} parent=11 // pred_region
          _
        $region28: #{tpu_custom_call.1} parent=11 // pred_fallthru
          _
        // Predicated region
        $region29: #{tpu_custom_call.1} parent=11 // pred_check
          %p235 = pneg %p151
        $region30: #{tpu_custom_call.1} parent=11 // pred_check_branch
          %237 = sbr.rel (%p235) target = $region32
        $region31: #{tpu_custom_call.1} parent=11 // pred_region
          %s239 = ssub.s32 1024, 1024
          %240 = vsyncadd [#allocation6], %s239
          %s241 = sshll.u32 [#allocation7], 4
          %s242 = int_to_ptr.vmem [resolvable:$true] %s241
          %247 = dma.hbm_to_vmem [thread:$0]  %s5, 1024, %s242, [#allocation6], 64, 64, 4
        $region32: #{tpu_custom_call.1} parent=11 // pred_fallthru
          _
        // Predicated region
        $region33: #{tpu_custom_call.1} parent=11 // pred_check
          %p248 = pneg %p172
        $region34: #{tpu_custom_call.1} parent=11 // pred_check_branch
          %250 = sbr.rel (%p248) target = $region36
        $region35: #{tpu_custom_call.1} parent=11 // pred_region
          _
        $region36: #{tpu_custom_call.1} parent=11 // pred_fallthru
          _
      $region12: #{tpu_custom_call.1} parent=5 // pred_fallthru
        _
      %p251 = scmp.lt.s32.totalorder %s20, 2
      // Predicated region
      $region37: #{tpu_custom_call.1} parent=5 // pred_check
        %p252 = pneg %p251
      $region38: #{tpu_custom_call.1} parent=5 // pred_check_branch
        %254 = sbr.rel (%p252) target = $region40
      $region39: #{tpu_custom_call.1} parent=5 // pred_region
        // Predicated region
        $region41: #{tpu_custom_call.1} parent=39 // pred_check
          %p255 = pneg %p40
        $region42: #{tpu_custom_call.1} parent=39 // pred_check_branch
          %257 = sbr.rel (%p255) target = $region44
        $region43: #{tpu_custom_call.1} parent=39 // pred_region
          %s258 = sand.u32 %s30, 1
          %s259 = scalar_lea.sflag [#allocation3], %s258
          %s260 = sand.u32 %s30, 1
          %s261 = smul.addr %s260, 128
          %s262 = scalar_lea.vmem [#allocation2], %s261
          %s264 = ssub.s32 2048, 2048
          %265 = vsyncadd %s259, %s264
          %s266 = smul.addr %s20, 16
          %s267 = smul.addr %s266, 128
          %s268 = scalar_lea.hbm %s0, %s267
          %s269 = sshll.u32 %s262, 4
          %s270 = int_to_ptr.vmem [resolvable:$true] %s269
          %275 = dma.hbm_to_vmem [thread:$0]  %s268, 2048, %s270, %s259, 128, 128, 8
        $region44: #{tpu_custom_call.1} parent=39 // pred_fallthru
          _
      $region40: #{tpu_custom_call.1} parent=5 // pred_fallthru
        _
      %p276 = scmp.le.s32.totalorder 1, %s20
      %p277 = scmp.lt.s32.totalorder %s20, 3
      %p278 = pnand %p276, %p277
      %p279 = pneg %p278
      // Predicated region
      $region45: #{tpu_custom_call.1} parent=5 // pred_check
        _
      $region46: #{tpu_custom_call.1} parent=5 // pred_check_branch
        %281 = sbr.rel (%p278) target = $region48
      $region47: #{tpu_custom_call.1} parent=5 // pred_region
        %s282 = ssub.s32 %s20, 1
        %s283 = sand.u32 %s33, 1
        %s284 = scalar_lea.sflag [#allocation3], %s283
        %s285 = sand.u32 %s33, 1
        %s286 = smul.addr %s285, 128
        %s287 = scalar_lea.vmem [#allocation2], %s286
        // Predicated region
        $region49: #{tpu_custom_call.1} parent=47 // pred_check
          %p288 = pneg %p46
        $region50: #{tpu_custom_call.1} parent=47 // pred_check_branch
          %290 = sbr.rel (%p288) target = $region52
        $region51: #{tpu_custom_call.1} parent=47 // pred_region
          %291 = dma.done %s284, 2048
        $region52: #{tpu_custom_call.1} parent=47 // pred_fallthru
          _
        // Predicated region
        $region53: #{tpu_custom_call.1} parent=47 // pred_check
          %p292 = pneg %p67
        $region54: #{tpu_custom_call.1} parent=47 // pred_check_branch
          %294 = sbr.rel (%p292) target = $region56
        $region55: #{tpu_custom_call.1} parent=47 // pred_region
          %295 = dma.done [#allocation6], 12288
        $region56: #{tpu_custom_call.1} parent=47 // pred_fallthru
          _
        // Predicated region
        $region57: #{tpu_custom_call.1} parent=47 // pred_check
          %p296 = pneg %p151
        $region58: #{tpu_custom_call.1} parent=47 // pred_check_branch
          %298 = sbr.rel (%p296) target = $region60
        $region59: #{tpu_custom_call.1} parent=47 // pred_region
          %299 = dma.done [#allocation6], 1024
        $region60: #{tpu_custom_call.1} parent=47 // pred_fallthru
          _
        %s300 = sand.u32 %s33, 1
        %s301 = scalar_lea.sflag [#allocation3], %s300
        %s302 = sand.u32 %s33, 1
        %s303 = smul.addr %s302, 128
        %s304 = scalar_lea.vmem [#allocation2], %s303
        %p305 = pneg %p46
        %p306 = pneg %p43
        %p307 = pneg %p67
        %p308 = pneg %p64
        %p309 = pneg %p88
        %p310 = pneg %p85
        %p311 = pneg %p109
        %p312 = pneg %p106
        %p313 = pneg %p130
        %p314 = pneg %p127
        %p315 = pneg %p151
        %p316 = pneg %p148
        %p317 = pneg %p172
        %p318 = pneg %p169
        %p319 = pneg %p198
        %p320 = pneg %p195
        %s321 = sand.u32 %s185, 1
        %s322 = scalar_lea.sflag [#allocation4], %s321
        %s323 = sand.u32 %s185, 1
        %s324 = smul.addr %s323, 128
        %s325 = scalar_lea.vmem [#allocation8], %s324
        %v327 = vld [vmem:[%s287] sm:$0xff]
        %v328 = vld [vmem:[%s287 + $0x8] sm:$0xff]
        %v329 = vld [vmem:[%s287 + $0x10] sm:$0xff]
        %v330 = vld [vmem:[%s287 + $0x18] sm:$0xff]
        %v331 = vld [vmem:[%s287 + $0x20] sm:$0xff]
        %v332 = vld [vmem:[%s287 + $0x28] sm:$0xff]
        %v333 = vld [vmem:[%s287 + $0x30] sm:$0xff]
        %v334 = vld [vmem:[%s287 + $0x38] sm:$0xff]
        %v335 = vld [vmem:[%s287 + $0x40] sm:$0xff]
        %v336 = vld [vmem:[%s287 + $0x48] sm:$0xff]
        %v337 = vld [vmem:[%s287 + $0x50] sm:$0xff]
        %v338 = vld [vmem:[%s287 + $0x58] sm:$0xff]
        %v339 = vld [vmem:[%s287 + $0x60] sm:$0xff]
        %v340 = vld [vmem:[%s287 + $0x68] sm:$0xff]
        %v341 = vld [vmem:[%s287 + $0x70] sm:$0xff]
        %v342 = vld [vmem:[%s287 + $0x78] sm:$0xff]
        %v343 = vpack.c.bf16 %v328, %v327
        %v344 = vpack.c.bf16 %v330, %v329
        %v345 = vpack.c.bf16 %v332, %v331
        %v346 = vpack.c.bf16 %v334, %v333
        %v347 = vpack.c.bf16 %v336, %v335
        %v348 = vpack.c.bf16 %v338, %v337
        %v349 = vpack.c.bf16 %v340, %v339
        %v350 = vpack.c.bf16 %v342, %v341
        %v351 = vld [vmem:[#allocation5] sm:$0xff]
        %v352 = vld [vmem:[#allocation5 + $0x8] sm:$0xff]
        %v353 = vld [vmem:[#allocation5 + $0x10] sm:$0xff]
        %v354 = vld [vmem:[#allocation5 + $0x18] sm:$0xff]
        %v355 = vld [vmem:[#allocation5 + $0x20] sm:$0xff]
        %v356 = vld [vmem:[#allocation5 + $0x28] sm:$0xff]
        %v357 = vld [vmem:[#allocation5 + $0x30] sm:$0xff]
        %v358 = vld [vmem:[#allocation5 + $0x38] sm:$0xff]
        %v359 = vld [vmem:[#allocation5 + $0x40] sm:$0xff]
        %v360 = vld [vmem:[#allocation5 + $0x48] sm:$0xff]
        %v361 = vld [vmem:[#allocation5 + $0x50] sm:$0xff]
        %v362 = vld [vmem:[#allocation5 + $0x58] sm:$0xff]
        %v363 = vld [vmem:[#allocation5 + $0x60] sm:$0xff]
        %v364 = vld [vmem:[#allocation5 + $0x68] sm:$0xff]
        %v365 = vld [vmem:[#allocation5 + $0x70] sm:$0xff]
        %v366 = vld [vmem:[#allocation5 + $0x78] sm:$0xff]
        %v367 = vld [vmem:[#allocation5 + $0x80] sm:$0xff]
        %v368 = vld [vmem:[#allocation5 + $0x88] sm:$0xff]
        %v369 = vld [vmem:[#allocation5 + $0x90] sm:$0xff]
        %v370 = vld [vmem:[#allocation5 + $0x98] sm:$0xff]
        %v371 = vld [vmem:[#allocation5 + $0xa0] sm:$0xff]
        %v372 = vld [vmem:[#allocation5 + $0xa8] sm:$0xff]
        %v373 = vld [vmem:[#allocation5 + $0xb0] sm:$0xff]
        %v374 = vld [vmem:[#allocation5 + $0xb8] sm:$0xff]
        %v375 = vld [vmem:[#allocation5 + $0xc0] sm:$0xff]
        %v376 = vld [vmem:[#allocation5 + $0xc8] sm:$0xff]
        %v377 = vld [vmem:[#allocation5 + $0xd0] sm:$0xff]
        %v378 = vld [vmem:[#allocation5 + $0xd8] sm:$0xff]
        %v379 = vld [vmem:[#allocation5 + $0xe0] sm:$0xff]
        %v380 = vld [vmem:[#allocation5 + $0xe8] sm:$0xff]
        %v381 = vld [vmem:[#allocation5 + $0xf0] sm:$0xff]
        %v382 = vld [vmem:[#allocation5 + $0xf8] sm:$0xff]
        %v383 = vld [vmem:[#allocation5 + $0x100] sm:$0xff]
        %v384 = vld [vmem:[#allocation5 + $0x108] sm:$0xff]
        %v385 = vld [vmem:[#allocation5 + $0x110] sm:$0xff]
        %v386 = vld [vmem:[#allocation5 + $0x118] sm:$0xff]
        %v387 = vld [vmem:[#allocation5 + $0x120] sm:$0xff]
        %v388 = vld [vmem:[#allocation5 + $0x128] sm:$0xff]
        %v389 = vld [vmem:[#allocation5 + $0x130] sm:$0xff]
        %v390 = vld [vmem:[#allocation5 + $0x138] sm:$0xff]
        %v391 = vld [vmem:[#allocation5 + $0x140] sm:$0xff]
        %v392 = vld [vmem:[#allocation5 + $0x148] sm:$0xff]
        %v393 = vld [vmem:[#allocation5 + $0x150] sm:$0xff]
        %v394 = vld [vmem:[#allocation5 + $0x158] sm:$0xff]
        %v395 = vld [vmem:[#allocation5 + $0x160] sm:$0xff]
        %v396 = vld [vmem:[#allocation5 + $0x168] sm:$0xff]
        %v397 = vld [vmem:[#allocation5 + $0x170] sm:$0xff]
        %v398 = vld [vmem:[#allocation5 + $0x178] sm:$0xff]
        %v399 = vld [vmem:[#allocation5 + $0x180] sm:$0xff]
        %v400 = vld [vmem:[#allocation5 + $0x188] sm:$0xff]
        %v401 = vld [vmem:[#allocation5 + $0x190] sm:$0xff]
        %v402 = vld [vmem:[#allocation5 + $0x198] sm:$0xff]
        %v403 = vld [vmem:[#allocation5 + $0x1a0] sm:$0xff]
        %v404 = vld [vmem:[#allocation5 + $0x1a8] sm:$0xff]
        %v405 = vld [vmem:[#allocation5 + $0x1b0] sm:$0xff]
        %v406 = vld [vmem:[#allocation5 + $0x1b8] sm:$0xff]
        %v407 = vld [vmem:[#allocation5 + $0x1c0] sm:$0xff]
        %v408 = vld [vmem:[#allocation5 + $0x1c8] sm:$0xff]
        %v409 = vld [vmem:[#allocation5 + $0x1d0] sm:$0xff]
        %v410 = vld [vmem:[#allocation5 + $0x1d8] sm:$0xff]
        %v411 = vld [vmem:[#allocation5 + $0x1e0] sm:$0xff]
        %v412 = vld [vmem:[#allocation5 + $0x1e8] sm:$0xff]
        %v413 = vld [vmem:[#allocation5 + $0x1f0] sm:$0xff]
        %v414 = vld [vmem:[#allocation5 + $0x1f8] sm:$0xff]
        %v415 = vld [vmem:[#allocation5 + $0x200] sm:$0xff]
        %v416 = vld [vmem:[#allocation5 + $0x208] sm:$0xff]
        %v417 = vld [vmem:[#allocation5 + $0x210] sm:$0xff]
        %v418 = vld [vmem:[#allocation5 + $0x218] sm:$0xff]
        %v419 = vld [vmem:[#allocation5 + $0x220] sm:$0xff]
        %v420 = vld [vmem:[#allocation5 + $0x228] sm:$0xff]
        %v421 = vld [vmem:[#allocation5 + $0x230] sm:$0xff]
        %v422 = vld [vmem:[#allocation5 + $0x238] sm:$0xff]
        %v423 = vld [vmem:[#allocation5 + $0x240] sm:$0xff]
        %v424 = vld [vmem:[#allocation5 + $0x248] sm:$0xff]
        %v425 = vld [vmem:[#allocation5 + $0x250] sm:$0xff]
        %v426 = vld [vmem:[#allocation5 + $0x258] sm:$0xff]
        %v427 = vld [vmem:[#allocation5 + $0x260] sm:$0xff]
        %v428 = vld [vmem:[#allocation5 + $0x268] sm:$0xff]
        %v429 = vld [vmem:[#allocation5 + $0x270] sm:$0xff]
        %v430 = vld [vmem:[#allocation5 + $0x278] sm:$0xff]
        %v431 = vld [vmem:[#allocation5 + $0x280] sm:$0xff]
        %v432 = vld [vmem:[#allocation5 + $0x288] sm:$0xff]
        %v433 = vld [vmem:[#allocation5 + $0x290] sm:$0xff]
        %v434 = vld [vmem:[#allocation5 + $0x298] sm:$0xff]
        %v435 = vld [vmem:[#allocation5 + $0x2a0] sm:$0xff]
        %v436 = vld [vmem:[#allocation5 + $0x2a8] sm:$0xff]
        %v437 = vld [vmem:[#allocation5 + $0x2b0] sm:$0xff]
        %v438 = vld [vmem:[#allocation5 + $0x2b8] sm:$0xff]
        %v439 = vld [vmem:[#allocation5 + $0x2c0] sm:$0xff]
        %v440 = vld [vmem:[#allocation5 + $0x2c8] sm:$0xff]
        %v441 = vld [vmem:[#allocation5 + $0x2d0] sm:$0xff]
        %v442 = vld [vmem:[#allocation5 + $0x2d8] sm:$0xff]
        %v443 = vld [vmem:[#allocation5 + $0x2e0] sm:$0xff]
        %v444 = vld [vmem:[#allocation5 + $0x2e8] sm:$0xff]
        %v445 = vld [vmem:[#allocation5 + $0x2f0] sm:$0xff]
        %v446 = vld [vmem:[#allocation5 + $0x2f8] sm:$0xff]
        %v543 = vunpack.c.l.b16 %v351
        %v544 = vunpack.c.h.b16 %v351
        %v545 = vunpack.c.l.b16 %v352
        %v546 = vunpack.c.h.b16 %v352
        %v547 = vunpack.c.l.b16 %v353
        %v548 = vunpack.c.h.b16 %v353
        %v549 = vunpack.c.l.b16 %v354
        %v550 = vunpack.c.h.b16 %v354
        %v551 = vunpack.c.l.b16 %v355
        %v552 = vunpack.c.h.b16 %v355
        %v553 = vunpack.c.l.b16 %v356
        %v554 = vunpack.c.h.b16 %v356
        %v555 = vunpack.c.l.b16 %v357
        %v556 = vunpack.c.h.b16 %v357
        %v557 = vunpack.c.l.b16 %v358
        %v558 = vunpack.c.h.b16 %v358
        %v559 = vunpack.c.l.b16 %v359
        %v560 = vunpack.c.h.b16 %v359
        %v561 = vunpack.c.l.b16 %v360
        %v562 = vunpack.c.h.b16 %v360
        %v563 = vunpack.c.l.b16 %v361
        %v564 = vunpack.c.h.b16 %v361
        %v565 = vunpack.c.l.b16 %v362
        %v566 = vunpack.c.h.b16 %v362
        %v567 = vunpack.c.l.b16 %v363
        %v568 = vunpack.c.h.b16 %v363
        %v569 = vunpack.c.l.b16 %v364
        %v570 = vunpack.c.h.b16 %v364
        %v571 = vunpack.c.l.b16 %v365
        %v572 = vunpack.c.h.b16 %v365
        %v573 = vunpack.c.l.b16 %v366
        %v574 = vunpack.c.h.b16 %v366
        %v575 = vunpack.c.l.b16 %v367
        %v576 = vunpack.c.h.b16 %v367
        %v577 = vunpack.c.l.b16 %v368
        %v578 = vunpack.c.h.b16 %v368
        %v579 = vunpack.c.l.b16 %v369
        %v580 = vunpack.c.h.b16 %v369
        %v581 = vunpack.c.l.b16 %v370
        %v582 = vunpack.c.h.b16 %v370
        %v583 = vunpack.c.l.b16 %v371
        %v584 = vunpack.c.h.b16 %v371
        %v585 = vunpack.c.l.b16 %v372
        %v586 = vunpack.c.h.b16 %v372
        %v587 = vunpack.c.l.b16 %v373
        %v588 = vunpack.c.h.b16 %v373
        %v589 = vunpack.c.l.b16 %v374
        %v590 = vunpack.c.h.b16 %v374
        %v591 = vunpack.c.l.b16 %v375
        %v592 = vunpack.c.h.b16 %v375
        %v593 = vunpack.c.l.b16 %v376
        %v594 = vunpack.c.h.b16 %v376
        %v595 = vunpack.c.l.b16 %v377
        %v596 = vunpack.c.h.b16 %v377
        %v597 = vunpack.c.l.b16 %v378
        %v598 = vunpack.c.h.b16 %v378
        %v599 = vunpack.c.l.b16 %v379
        %v600 = vunpack.c.h.b16 %v379
        %v601 = vunpack.c.l.b16 %v380
        %v602 = vunpack.c.h.b16 %v380
        %v603 = vunpack.c.l.b16 %v381
        %v604 = vunpack.c.h.b16 %v381
        %v605 = vunpack.c.l.b16 %v382
        %v606 = vunpack.c.h.b16 %v382
        %v607 = vunpack.c.l.b16 %v383
        %v608 = vunpack.c.h.b16 %v383
        %v609 = vunpack.c.l.b16 %v384
        %v610 = vunpack.c.h.b16 %v384
        %v611 = vunpack.c.l.b16 %v385
        %v612 = vunpack.c.h.b16 %v385
        %v613 = vunpack.c.l.b16 %v386
        %v614 = vunpack.c.h.b16 %v386
        %v615 = vunpack.c.l.b16 %v387
        %v616 = vunpack.c.h.b16 %v387
        %v617 = vunpack.c.l.b16 %v388
        %v618 = vunpack.c.h.b16 %v388
        %v619 = vunpack.c.l.b16 %v389
        %v620 = vunpack.c.h.b16 %v389
        %v621 = vunpack.c.l.b16 %v390
        %v622 = vunpack.c.h.b16 %v390
        %v623 = vunpack.c.l.b16 %v391
        %v624 = vunpack.c.h.b16 %v391
        %v625 = vunpack.c.l.b16 %v392
        %v626 = vunpack.c.h.b16 %v392
        %v627 = vunpack.c.l.b16 %v393
        %v628 = vunpack.c.h.b16 %v393
        %v629 = vunpack.c.l.b16 %v394
        %v630 = vunpack.c.h.b16 %v394
        %v631 = vunpack.c.l.b16 %v395
        %v632 = vunpack.c.h.b16 %v395
        %v633 = vunpack.c.l.b16 %v396
        %v634 = vunpack.c.h.b16 %v396
        %v635 = vunpack.c.l.b16 %v397
        %v636 = vunpack.c.h.b16 %v397
        %v637 = vunpack.c.l.b16 %v398
        %v638 = vunpack.c.h.b16 %v398
        %v639 = vunpack.c.l.b16 %v399
        %v640 = vunpack.c.h.b16 %v399
        %v641 = vunpack.c.l.b16 %v400
        %v642 = vunpack.c.h.b16 %v400
        %v643 = vunpack.c.l.b16 %v401
        %v644 = vunpack.c.h.b16 %v401
        %v645 = vunpack.c.l.b16 %v402
        %v646 = vunpack.c.h.b16 %v402
        %v647 = vunpack.c.l.b16 %v403
        %v648 = vunpack.c.h.b16 %v403
        %v649 = vunpack.c.l.b16 %v404
        %v650 = vunpack.c.h.b16 %v404
        %v651 = vunpack.c.l.b16 %v405
        %v652 = vunpack.c.h.b16 %v405
        %v653 = vunpack.c.l.b16 %v406
        %v654 = vunpack.c.h.b16 %v406
        %v655 = vunpack.c.l.b16 %v407
        %v656 = vunpack.c.h.b16 %v407
        %v657 = vunpack.c.l.b16 %v408
        %v658 = vunpack.c.h.b16 %v408
        %v659 = vunpack.c.l.b16 %v409
        %v660 = vunpack.c.h.b16 %v409
        %v661 = vunpack.c.l.b16 %v410
        %v662 = vunpack.c.h.b16 %v410
        %v663 = vunpack.c.l.b16 %v411
        %v664 = vunpack.c.h.b16 %v411
        %v665 = vunpack.c.l.b16 %v412
        %v666 = vunpack.c.h.b16 %v412
        %v667 = vunpack.c.l.b16 %v413
        %v668 = vunpack.c.h.b16 %v413
        %v669 = vunpack.c.l.b16 %v414
        %v670 = vunpack.c.h.b16 %v414
        %v671 = vunpack.c.l.b16 %v415
        %v672 = vunpack.c.h.b16 %v415
        %v673 = vunpack.c.l.b16 %v416
        %v674 = vunpack.c.h.b16 %v416
        %v675 = vunpack.c.l.b16 %v417
        %v676 = vunpack.c.h.b16 %v417
        %v677 = vunpack.c.l.b16 %v418
        %v678 = vunpack.c.h.b16 %v418
        %v679 = vunpack.c.l.b16 %v419
        %v680 = vunpack.c.h.b16 %v419
        %v681 = vunpack.c.l.b16 %v420
        %v682 = vunpack.c.h.b16 %v420
        %v683 = vunpack.c.l.b16 %v421
        %v684 = vunpack.c.h.b16 %v421
        %v685 = vunpack.c.l.b16 %v422
        %v686 = vunpack.c.h.b16 %v422
        %v687 = vunpack.c.l.b16 %v423
        %v688 = vunpack.c.h.b16 %v423
        %v689 = vunpack.c.l.b16 %v424
        %v690 = vunpack.c.h.b16 %v424
        %v691 = vunpack.c.l.b16 %v425
        %v692 = vunpack.c.h.b16 %v425
        %v693 = vunpack.c.l.b16 %v426
        %v694 = vunpack.c.h.b16 %v426
        %v695 = vunpack.c.l.b16 %v427
        %v696 = vunpack.c.h.b16 %v427
        %v697 = vunpack.c.l.b16 %v428
        %v698 = vunpack.c.h.b16 %v428
        %v699 = vunpack.c.l.b16 %v429
        %v700 = vunpack.c.h.b16 %v429
        %v701 = vunpack.c.l.b16 %v430
        %v702 = vunpack.c.h.b16 %v430
        %v703 = vunpack.c.l.b16 %v431
        %v704 = vunpack.c.h.b16 %v431
        %v705 = vunpack.c.l.b16 %v432
        %v706 = vunpack.c.h.b16 %v432
        %v707 = vunpack.c.l.b16 %v433
        %v708 = vunpack.c.h.b16 %v433
        %v709 = vunpack.c.l.b16 %v434
        %v710 = vunpack.c.h.b16 %v434
        %v711 = vunpack.c.l.b16 %v435
        %v712 = vunpack.c.h.b16 %v435
        %v713 = vunpack.c.l.b16 %v436
        %v714 = vunpack.c.h.b16 %v436
        %v715 = vunpack.c.l.b16 %v437
        %v716 = vunpack.c.h.b16 %v437
        %v717 = vunpack.c.l.b16 %v438
        %v718 = vunpack.c.h.b16 %v438
        %v719 = vunpack.c.l.b16 %v439
        %v720 = vunpack.c.h.b16 %v439
        %v721 = vunpack.c.l.b16 %v440
        %v722 = vunpack.c.h.b16 %v440
        %v723 = vunpack.c.l.b16 %v441
        %v724 = vunpack.c.h.b16 %v441
        %v725 = vunpack.c.l.b16 %v442
        %v726 = vunpack.c.h.b16 %v442
        %v727 = vunpack.c.l.b16 %v443
        %v728 = vunpack.c.h.b16 %v443
        %v729 = vunpack.c.l.b16 %v444
        %v730 = vunpack.c.h.b16 %v444
        %v731 = vunpack.c.l.b16 %v445
        %v732 = vunpack.c.h.b16 %v445
        %v733 = vunpack.c.l.b16 %v446
        %v734 = vunpack.c.h.b16 %v446
        %v735 = vpack.c.b16 %v555, %v543
        %v736 = vpack.c.b16 %v556, %v544
        %v737 = vpack.c.b16 %v557, %v545
        %v738 = vpack.c.b16 %v558, %v546
        %v739 = vpack.c.b16 %v559, %v547
        %v740 = vpack.c.b16 %v560, %v548
        %v741 = vpack.c.b16 %v561, %v549
        %v742 = vpack.c.b16 %v562, %v550
        %v743 = vpack.c.b16 %v563, %v551
        %v744 = vpack.c.b16 %v564, %v552
        %v745 = vpack.c.b16 %v565, %v553
        %v746 = vpack.c.b16 %v566, %v554
        %v747 = vpack.c.b16 %v579, %v567
        %v748 = vpack.c.b16 %v580, %v568
        %v749 = vpack.c.b16 %v581, %v569
        %v750 = vpack.c.b16 %v582, %v570
        %v751 = vpack.c.b16 %v583, %v571
        %v752 = vpack.c.b16 %v584, %v572
        %v753 = vpack.c.b16 %v585, %v573
        %v754 = vpack.c.b16 %v586, %v574
        %v755 = vpack.c.b16 %v587, %v575
        %v756 = vpack.c.b16 %v588, %v576
        %v757 = vpack.c.b16 %v589, %v577
        %v758 = vpack.c.b16 %v590, %v578
        %v759 = vpack.c.b16 %v603, %v591
        %v760 = vpack.c.b16 %v604, %v592
        %v761 = vpack.c.b16 %v605, %v593
        %v762 = vpack.c.b16 %v606, %v594
        %v763 = vpack.c.b16 %v607, %v595
        %v764 = vpack.c.b16 %v608, %v596
        %v765 = vpack.c.b16 %v609, %v597
        %v766 = vpack.c.b16 %v610, %v598
        %v767 = vpack.c.b16 %v611, %v599
        %v768 = vpack.c.b16 %v612, %v600
        %v769 = vpack.c.b16 %v613, %v601
        %v770 = vpack.c.b16 %v614, %v602
        %v771 = vpack.c.b16 %v627, %v615
        %v772 = vpack.c.b16 %v628, %v616
        %v773 = vpack.c.b16 %v629, %v617
        %v774 = vpack.c.b16 %v630, %v618
        %v775 = vpack.c.b16 %v631, %v619
        %v776 = vpack.c.b16 %v632, %v620
        %v777 = vpack.c.b16 %v633, %v621
        %v778 = vpack.c.b16 %v634, %v622
        %v779 = vpack.c.b16 %v635, %v623
        %v780 = vpack.c.b16 %v636, %v624
        %v781 = vpack.c.b16 %v637, %v625
        %v782 = vpack.c.b16 %v638, %v626
        %v783 = vpack.c.b16 %v651, %v639
        %v784 = vpack.c.b16 %v652, %v640
        %v785 = vpack.c.b16 %v653, %v641
        %v786 = vpack.c.b16 %v654, %v642
        %v787 = vpack.c.b16 %v655, %v643
        %v788 = vpack.c.b16 %v656, %v644
        %v789 = vpack.c.b16 %v657, %v645
        %v790 = vpack.c.b16 %v658, %v646
        %v791 = vpack.c.b16 %v659, %v647
        %v792 = vpack.c.b16 %v660, %v648
        %v793 = vpack.c.b16 %v661, %v649
        %v794 = vpack.c.b16 %v662, %v650
        %v795 = vpack.c.b16 %v675, %v663
        %v796 = vpack.c.b16 %v676, %v664
        %v797 = vpack.c.b16 %v677, %v665
        %v798 = vpack.c.b16 %v678, %v666
        %v799 = vpack.c.b16 %v679, %v667
        %v800 = vpack.c.b16 %v680, %v668
        %v801 = vpack.c.b16 %v681, %v669
        %v802 = vpack.c.b16 %v682, %v670
        %v803 = vpack.c.b16 %v683, %v671
        %v804 = vpack.c.b16 %v684, %v672
        %v805 = vpack.c.b16 %v685, %v673
        %v806 = vpack.c.b16 %v686, %v674
        %v807 = vpack.c.b16 %v699, %v687
        %v808 = vpack.c.b16 %v700, %v688
        %v809 = vpack.c.b16 %v701, %v689
        %v810 = vpack.c.b16 %v702, %v690
        %v811 = vpack.c.b16 %v703, %v691
        %v812 = vpack.c.b16 %v704, %v692
        %v813 = vpack.c.b16 %v705, %v693
        %v814 = vpack.c.b16 %v706, %v694
        %v815 = vpack.c.b16 %v707, %v695
        %v816 = vpack.c.b16 %v708, %v696
        %v817 = vpack.c.b16 %v709, %v697
        %v818 = vpack.c.b16 %v710, %v698
        %v819 = vpack.c.b16 %v723, %v711
        %v820 = vpack.c.b16 %v724, %v712
        %v821 = vpack.c.b16 %v725, %v713
        %v822 = vpack.c.b16 %v726, %v714
        %v823 = vpack.c.b16 %v727, %v715
        %v824 = vpack.c.b16 %v728, %v716
        %v825 = vpack.c.b16 %v729, %v717
        %v826 = vpack.c.b16 %v730, %v718
        %v827 = vpack.c.b16 %v731, %v719
        %v828 = vpack.c.b16 %v732, %v720
        %v829 = vpack.c.b16 %v733, %v721
        %v830 = vpack.c.b16 %v734, %v722
        %927 = vmatprep.subr.bf16.mxu0 %v736
        %928 = vmatpush1.bf16.msra.mxu0 %v735
        %929 = vmatprep.subr.bf16.mxu0 %v748
        %930 = vmatpush1.bf16.msra.mxu0 %v747
        %931 = vmatprep.subr.bf16.mxu0 %v760
        %932 = vmatpush1.bf16.msra.mxu0 %v759
        %933 = vmatprep.subr.bf16.mxu0 %v772
        %934 = vmatpush1.bf16.msra.mxu0 %v771
        %935 = vmatprep.subr.bf16.mxu0 %v784
        %936 = vmatpush1.bf16.msra.mxu0 %v783
        %937 = vmatprep.subr.bf16.mxu0 %v796
        %938 = vmatpush1.bf16.msra.mxu0 %v795
        %939 = vmatprep.subr.bf16.mxu0 %v808
        %940 = vmatpush1.bf16.msra.mxu0 %v807
        %941 = vmatprep.subr.bf16.mxu0 %v820
        %942 = vmatpush1.bf16.msra.mxu0 %v819
        %943 = vmatprep.subr.bf16.mxu0 0
        %944 = vmatpush1.bf16.msra.mxu0 0
        %945 = vmatprep.subr.bf16.mxu0 0
        %946 = vmatpush1.bf16.msra.mxu0 0
        %947 = vmatprep.subr.bf16.mxu0 0
        %948 = vmatpush1.bf16.msra.mxu0 0
        %949 = vmatprep.subr.bf16.mxu0 0
        %950 = vmatpush1.bf16.msra.mxu0 0
        %951 = vmatprep.subr.bf16.mxu0 0
        %952 = vmatpush1.bf16.msra.mxu0 0
        %953 = vmatprep.subr.bf16.mxu0 0
        %954 = vmatpush1.bf16.msra.mxu0 0
        %955 = vmatprep.subr.bf16.mxu0 0
        %956 = vmatpush1.bf16.msra.mxu0 0
        %957 = vmatprep.subr.bf16.mxu0 0
        %958 = vmatpush1.bf16.msra.mxu0 0
        %959 = vmatprep.mubr.bf16.mxu0 0
        %960 = vmatmul.mubr.bf16.gmra.mrb[0].mxu0 %v343
        %v961 = vpop.f32.mrb[0].mxu0
        %v962 = vadd.f32 0.0, %v961
        %v963 = vpop.f32.mrb[0].mxu0
        %v964 = vadd.f32 0.0, %v963
        %v965 = vpop.f32.mrb[0].mxu0
        %v966 = vadd.f32 0.0, %v965
        %v967 = vpop.f32.mrb[0].mxu0
        %v968 = vadd.f32 0.0, %v967
        %969 = vmatprep.mubr.bf16.mxu0 0
        %970 = vmatmul.mubr.bf16.gmra.mrb[0].mxu0 %v344
        %v971 = vpop.f32.mrb[0].mxu0
        %v972 = vadd.f32 0.0, %v971
        %v973 = vpop.f32.mrb[0].mxu0
        %v974 = vadd.f32 0.0, %v973
        %v975 = vpop.f32.mrb[0].mxu0
        %v976 = vadd.f32 0.0, %v975
        %v977 = vpop.f32.mrb[0].mxu0
        %v978 = vadd.f32 0.0, %v977
        %979 = vmatprep.mubr.bf16.mxu0 0
        %980 = vmatmul.mubr.bf16.gmra.mrb[0].mxu0 %v345
        %v981 = vpop.f32.mrb[0].mxu0
        %v982 = vadd.f32 0.0, %v981
        %v983 = vpop.f32.mrb[0].mxu0
        %v984 = vadd.f32 0.0, %v983
        %v985 = vpop.f32.mrb[0].mxu0
        %v986 = vadd.f32 0.0, %v985
        %v987 = vpop.f32.mrb[0].mxu0
        %v988 = vadd.f32 0.0, %v987
        %989 = vmatprep.mubr.bf16.mxu0 0
        %990 = vmatmul.mubr.bf16.gmra.mrb[0].mxu0 %v346
        %v991 = vpop.f32.mrb[0].mxu0
        %v992 = vadd.f32 0.0, %v991
        %v993 = vpop.f32.mrb[0].mxu0
        %v994 = vadd.f32 0.0, %v993
        %v995 = vpop.f32.mrb[0].mxu0
        %v996 = vadd.f32 0.0, %v995
        %v997 = vpop.f32.mrb[0].mxu0
        %v998 = vadd.f32 0.0, %v997
        %999 = vmatprep.mubr.bf16.mxu0 0
        %1000 = vmatmul.mubr.bf16.gmra.mrb[0].mxu0 %v347
        %v1001 = vpop.f32.mrb[0].mxu0
        %v1002 = vadd.f32 0.0, %v1001
        %v1003 = vpop.f32.mrb[0].mxu0
        %v1004 = vadd.f32 0.0, %v1003
        %v1005 = vpop.f32.mrb[0].mxu0
        %v1006 = vadd.f32 0.0, %v1005
        %v1007 = vpop.f32.mrb[0].mxu0
        %v1008 = vadd.f32 0.0, %v1007
        %1009 = vmatprep.mubr.bf16.mxu0 0
        %1010 = vmatmul.mubr.bf16.gmra.mrb[0].mxu0 %v348
        %v1011 = vpop.f32.mrb[0].mxu0
        %v1012 = vadd.f32 0.0, %v1011
        %v1013 = vpop.f32.mrb[0].mxu0
        %v1014 = vadd.f32 0.0, %v1013
        %v1015 = vpop.f32.mrb[0].mxu0
        %v1016 = vadd.f32 0.0, %v1015
        %v1017 = vpop.f32.mrb[0].mxu0
        %v1018 = vadd.f32 0.0, %v1017
        %1019 = vmatprep.mubr.bf16.mxu0 0
        %1020 = vmatmul.mubr.bf16.gmra.mrb[0].mxu0 %v349
        %v1021 = vpop.f32.mrb[0].mxu0
        %v1022 = vadd.f32 0.0, %v1021
        %v1023 = vpop.f32.mrb[0].mxu0
        %v1024 = vadd.f32 0.0, %v1023
        %v1025 = vpop.f32.mrb[0].mxu0
        %v1026 = vadd.f32 0.0, %v1025
        %v1027 = vpop.f32.mrb[0].mxu0
        %v1028 = vadd.f32 0.0, %v1027
        %1029 = vmatprep.mubr.bf16.mxu0 0
        %1030 = vmatmul.mubr.bf16.gmra.mrb[0].mxu0 %v350
        %v1031 = vpop.f32.mrb[0].mxu0
        %v1032 = vadd.f32 0.0, %v1031
        %v1033 = vpop.f32.mrb[0].mxu0
        %v1034 = vadd.f32 0.0, %v1033
        %v1035 = vpop.f32.mrb[0].mxu0
        %v1036 = vadd.f32 0.0, %v1035
        %v1037 = vpop.f32.mrb[0].mxu0
        %v1038 = vadd.f32 0.0, %v1037
        %1039 = vdwg.mxu0
        %1040 = vmatprep.subr.bf16.mxu0 %v738
        %1041 = vmatpush1.bf16.msra.mxu0 %v737
        %1042 = vmatprep.subr.bf16.mxu0 %v750
        %1043 = vmatpush1.bf16.msra.mxu0 %v749
        %1044 = vmatprep.subr.bf16.mxu0 %v762
        %1045 = vmatpush1.bf16.msra.mxu0 %v761
        %1046 = vmatprep.subr.bf16.mxu0 %v774
        %1047 = vmatpush1.bf16.msra.mxu0 %v773
        %1048 = vmatprep.subr.bf16.mxu0 %v786
        %1049 = vmatpush1.bf16.msra.mxu0 %v785
        %1050 = vmatprep.subr.bf16.mxu0 %v798
        %1051 = vmatpush1.bf16.msra.mxu0 %v797
        %1052 = vmatprep.subr.bf16.mxu0 %v810
        %1053 = vmatpush1.bf16.msra.mxu0 %v809
        %1054 = vmatprep.subr.bf16.mxu0 %v822
        %1055 = vmatpush1.bf16.msra.mxu0 %v821
        %1056 = vmatprep.subr.bf16.mxu0 0
        %1057 = vmatpush1.bf16.msra.mxu0 0
        %1058 = vmatprep.subr.bf16.mxu0 0
        %1059 = vmatpush1.bf16.msra.mxu0 0
        %1060 = vmatprep.subr.bf16.mxu0 0
        %1061 = vmatpush1.bf16.msra.mxu0 0
        %1062 = vmatprep.subr.bf16.mxu0 0
        %1063 = vmatpush1.bf16.msra.mxu0 0
        %1064 = vmatprep.subr.bf16.mxu0 0
        %1065 = vmatpush1.bf16.msra.mxu0 0
        %1066 = vmatprep.subr.bf16.mxu0 0
        %1067 = vmatpush1.bf16.msra.mxu0 0
        %1068 = vmatprep.subr.bf16.mxu0 0
        %1069 = vmatpush1.bf16.msra.mxu0 0
        %1070 = vmatprep.subr.bf16.mxu0 0
        %1071 = vmatpush1.bf16.msra.mxu0 0
        %1072 = vmatprep.mubr.bf16.mxu0 0
        %1073 = vmatmul.mubr.bf16.gmra.mrb[0].mxu0 %v343
        %v1074 = vpop.f32.mrb[0].mxu0
        %v1075 = vadd.f32 0.0, %v1074
        %v1076 = vpop.f32.mrb[0].mxu0
        %v1077 = vadd.f32 0.0, %v1076
        %v1078 = vpop.f32.mrb[0].mxu0
        %v1079 = vadd.f32 0.0, %v1078
        %v1080 = vpop.f32.mrb[0].mxu0
        %v1081 = vadd.f32 0.0, %v1080
        %1082 = vmatprep.mubr.bf16.mxu0 0
        %1083 = vmatmul.mubr.bf16.gmra.mrb[0].mxu0 %v344
        %v1084 = vpop.f32.mrb[0].mxu0
        %v1085 = vadd.f32 0.0, %v1084
        %v1086 = vpop.f32.mrb[0].mxu0
        %v1087 = vadd.f32 0.0, %v1086
        %v1088 = vpop.f32.mrb[0].mxu0
        %v1089 = vadd.f32 0.0, %v1088
        %v1090 = vpop.f32.mrb[0].mxu0
        %v1091 = vadd.f32 0.0, %v1090
        %1092 = vmatprep.mubr.bf16.mxu0 0
        %1093 = vmatmul.mubr.bf16.gmra.mrb[0].mxu0 %v345
        %v1094 = vpop.f32.mrb[0].mxu0
        %v1095 = vadd.f32 0.0, %v1094
        %v1096 = vpop.f32.mrb[0].mxu0
        %v1097 = vadd.f32 0.0, %v1096
        %v1098 = vpop.f32.mrb[0].mxu0
        %v1099 = vadd.f32 0.0, %v1098
        %v1100 = vpop.f32.mrb[0].mxu0
        %v1101 = vadd.f32 0.0, %v1100
        %1102 = vmatprep.mubr.bf16.mxu0 0
        %1103 = vmatmul.mubr.bf16.gmra.mrb[0].mxu0 %v346
        %v1104 = vpop.f32.mrb[0].mxu0
        %v1105 = vadd.f32 0.0, %v1104
        %v1106 = vpop.f32.mrb[0].mxu0
        %v1107 = vadd.f32 0.0, %v1106
        %v1108 = vpop.f32.mrb[0].mxu0
        %v1109 = vadd.f32 0.0, %v1108
        %v1110 = vpop.f32.mrb[0].mxu0
        %v1111 = vadd.f32 0.0, %v1110
        %1112 = vmatprep.mubr.bf16.mxu0 0
        %1113 = vmatmul.mubr.bf16.gmra.mrb[0].mxu0 %v347
        %v1114 = vpop.f32.mrb[0].mxu0
        %v1115 = vadd.f32 0.0, %v1114
        %v1116 = vpop.f32.mrb[0].mxu0
        %v1117 = vadd.f32 0.0, %v1116
        %v1118 = vpop.f32.mrb[0].mxu0
        %v1119 = vadd.f32 0.0, %v1118
        %v1120 = vpop.f32.mrb[0].mxu0
        %v1121 = vadd.f32 0.0, %v1120
        %1122 = vmatprep.mubr.bf16.mxu0 0
        %1123 = vmatmul.mubr.bf16.gmra.mrb[0].mxu0 %v348
        %v1124 = vpop.f32.mrb[0].mxu0
        %v1125 = vadd.f32 0.0, %v1124
        %v1126 = vpop.f32.mrb[0].mxu0
        %v1127 = vadd.f32 0.0, %v1126
        %v1128 = vpop.f32.mrb[0].mxu0
        %v1129 = vadd.f32 0.0, %v1128
        %v1130 = vpop.f32.mrb[0].mxu0
        %v1131 = vadd.f32 0.0, %v1130
        %1132 = vmatprep.mubr.bf16.mxu0 0
        %1133 = vmatmul.mubr.bf16.gmra.mrb[0].mxu0 %v349
        %v1134 = vpop.f32.mrb[0].mxu0
        %v1135 = vadd.f32 0.0, %v1134
        %v1136 = vpop.f32.mrb[0].mxu0
        %v1137 = vadd.f32 0.0, %v1136
        %v1138 = vpop.f32.mrb[0].mxu0
        %v1139 = vadd.f32 0.0, %v1138
        %v1140 = vpop.f32.mrb[0].mxu0
        %v1141 = vadd.f32 0.0, %v1140
        %1142 = vmatprep.mubr.bf16.mxu0 0
        %1143 = vmatmul.mubr.bf16.gmra.mrb[0].mxu0 %v350
        %v1144 = vpop.f32.mrb[0].mxu0
        %v1145 = vadd.f32 0.0, %v1144
        %v1146 = vpop.f32.mrb[0].mxu0
        %v1147 = vadd.f32 0.0, %v1146
        %v1148 = vpop.f32.mrb[0].mxu0
        %v1149 = vadd.f32 0.0, %v1148
        %v1150 = vpop.f32.mrb[0].mxu0
        %v1151 = vadd.f32 0.0, %v1150
        %1152 = vdwg.mxu0
        %1153 = vmatprep.subr.bf16.mxu0 %v740
        %1154 = vmatpush1.bf16.msra.mxu0 %v739
        %1155 = vmatprep.subr.bf16.mxu0 %v752
        %1156 = vmatpush1.bf16.msra.mxu0 %v751
        %1157 = vmatprep.subr.bf16.mxu0 %v764
        %1158 = vmatpush1.bf16.msra.mxu0 %v763
        %1159 = vmatprep.subr.bf16.mxu0 %v776
        %1160 = vmatpush1.bf16.msra.mxu0 %v775
        %1161 = vmatprep.subr.bf16.mxu0 %v788
        %1162 = vmatpush1.bf16.msra.mxu0 %v787
        %1163 = vmatprep.subr.bf16.mxu0 %v800
        %1164 = vmatpush1.bf16.msra.mxu0 %v799
        %1165 = vmatprep.subr.bf16.mxu0 %v812
        %1166 = vmatpush1.bf16.msra.mxu0 %v811
        %1167 = vmatprep.subr.bf16.mxu0 %v824
        %1168 = vmatpush1.bf16.msra.mxu0 %v823
        %1169 = vmatprep.subr.bf16.mxu0 0
        %1170 = vmatpush1.bf16.msra.mxu0 0
        %1171 = vmatprep.subr.bf16.mxu0 0
        %1172 = vmatpush1.bf16.msra.mxu0 0
        %1173 = vmatprep.subr.bf16.mxu0 0
        %1174 = vmatpush1.bf16.msra.mxu0 0
        %1175 = vmatprep.subr.bf16.mxu0 0
        %1176 = vmatpush1.bf16.msra.mxu0 0
        %1177 = vmatprep.subr.bf16.mxu0 0
        %1178 = vmatpush1.bf16.msra.mxu0 0
        %1179 = vmatprep.subr.bf16.mxu0 0
        %1180 = vmatpush1.bf16.msra.mxu0 0
        %1181 = vmatprep.subr.bf16.mxu0 0
        %1182 = vmatpush1.bf16.msra.mxu0 0
        %1183 = vmatprep.subr.bf16.mxu0 0
        %1184 = vmatpush1.bf16.msra.mxu0 0
        %1185 = vmatprep.mubr.bf16.mxu0 0
        %1186 = vmatmul.mubr.bf16.gmra.mrb[0].mxu0 %v343
        %v1187 = vpop.f32.mrb[0].mxu0
        %v1188 = vadd.f32 0.0, %v1187
        %v1189 = vpop.f32.mrb[0].mxu0
        %v1190 = vadd.f32 0.0, %v1189
        %v1191 = vpop.f32.mrb[0].mxu0
        %v1192 = vadd.f32 0.0, %v1191
        %v1193 = vpop.f32.mrb[0].mxu0
        %v1194 = vadd.f32 0.0, %v1193
        %1195 = vmatprep.mubr.bf16.mxu0 0
        %1196 = vmatmul.mubr.bf16.gmra.mrb[0].mxu0 %v344
        %v1197 = vpop.f32.mrb[0].mxu0
        %v1198 = vadd.f32 0.0, %v1197
        %v1199 = vpop.f32.mrb[0].mxu0
        %v1200 = vadd.f32 0.0, %v1199
        %v1201 = vpop.f32.mrb[0].mxu0
        %v1202 = vadd.f32 0.0, %v1201
        %v1203 = vpop.f32.mrb[0].mxu0
        %v1204 = vadd.f32 0.0, %v1203
        %1205 = vmatprep.mubr.bf16.mxu0 0
        %1206 = vmatmul.mubr.bf16.gmra.mrb[0].mxu0 %v345
        %v1207 = vpop.f32.mrb[0].mxu0
        %v1208 = vadd.f32 0.0, %v1207
        %v1209 = vpop.f32.mrb[0].mxu0
        %v1210 = vadd.f32 0.0, %v1209
        %v1211 = vpop.f32.mrb[0].mxu0
        %v1212 = vadd.f32 0.0, %v1211
        %v1213 = vpop.f32.mrb[0].mxu0
        %v1214 = vadd.f32 0.0, %v1213
        %1215 = vmatprep.mubr.bf16.mxu0 0
        %1216 = vmatmul.mubr.bf16.gmra.mrb[0].mxu0 %v346
        %v1217 = vpop.f32.mrb[0].mxu0
        %v1218 = vadd.f32 0.0, %v1217
        %v1219 = vpop.f32.mrb[0].mxu0
        %v1220 = vadd.f32 0.0, %v1219
        %v1221 = vpop.f32.mrb[0].mxu0
        %v1222 = vadd.f32 0.0, %v1221
        %v1223 = vpop.f32.mrb[0].mxu0
        %v1224 = vadd.f32 0.0, %v1223
        %1225 = vmatprep.mubr.bf16.mxu0 0
        %1226 = vmatmul.mubr.bf16.gmra.mrb[0].mxu0 %v347
        %v1227 = vpop.f32.mrb[0].mxu0
        %v1228 = vadd.f32 0.0, %v1227
        %v1229 = vpop.f32.mrb[0].mxu0
        %v1230 = vadd.f32 0.0, %v1229
        %v1231 = vpop.f32.mrb[0].mxu0
        %v1232 = vadd.f32 0.0, %v1231
        %v1233 = vpop.f32.mrb[0].mxu0
        %v1234 = vadd.f32 0.0, %v1233
        %1235 = vmatprep.mubr.bf16.mxu0 0
        %1236 = vmatmul.mubr.bf16.gmra.mrb[0].mxu0 %v348
        %v1237 = vpop.f32.mrb[0].mxu0
        %v1238 = vadd.f32 0.0, %v1237
        %v1239 = vpop.f32.mrb[0].mxu0
        %v1240 = vadd.f32 0.0, %v1239
        %v1241 = vpop.f32.mrb[0].mxu0
        %v1242 = vadd.f32 0.0, %v1241
        %v1243 = vpop.f32.mrb[0].mxu0
        %v1244 = vadd.f32 0.0, %v1243
        %1245 = vmatprep.mubr.bf16.mxu0 0
        %1246 = vmatmul.mubr.bf16.gmra.mrb[0].mxu0 %v349
        %v1247 = vpop.f32.mrb[0].mxu0
        %v1248 = vadd.f32 0.0, %v1247
        %v1249 = vpop.f32.mrb[0].mxu0
        %v1250 = vadd.f32 0.0, %v1249
        %v1251 = vpop.f32.mrb[0].mxu0
        %v1252 = vadd.f32 0.0, %v1251
        %v1253 = vpop.f32.mrb[0].mxu0
        %v1254 = vadd.f32 0.0, %v1253
        %1255 = vmatprep.mubr.bf16.mxu0 0
        %1256 = vmatmul.mubr.bf16.gmra.mrb[0].mxu0 %v350
        %v1257 = vpop.f32.mrb[0].mxu0
        %v1258 = vadd.f32 0.0, %v1257
        %v1259 = vpop.f32.mrb[0].mxu0
        %v1260 = vadd.f32 0.0, %v1259
        %v1261 = vpop.f32.mrb[0].mxu0
        %v1262 = vadd.f32 0.0, %v1261
        %v1263 = vpop.f32.mrb[0].mxu0
        %v1264 = vadd.f32 0.0, %v1263
        %1265 = vdwg.mxu0
        %1266 = vmatprep.subr.bf16.mxu0 %v742
        %1267 = vmatpush1.bf16.msra.mxu0 %v741
        %1268 = vmatprep.subr.bf16.mxu0 %v754
        %1269 = vmatpush1.bf16.msra.mxu0 %v753
        %1270 = vmatprep.subr.bf16.mxu0 %v766
        %1271 = vmatpush1.bf16.msra.mxu0 %v765
        %1272 = vmatprep.subr.bf16.mxu0 %v778
        %1273 = vmatpush1.bf16.msra.mxu0 %v777
        %1274 = vmatprep.subr.bf16.mxu0 %v790
        %1275 = vmatpush1.bf16.msra.mxu0 %v789
        %1276 = vmatprep.subr.bf16.mxu0 %v802
        %1277 = vmatpush1.bf16.msra.mxu0 %v801
        %1278 = vmatprep.subr.bf16.mxu0 %v814
        %1279 = vmatpush1.bf16.msra.mxu0 %v813
        %1280 = vmatprep.subr.bf16.mxu0 %v826
        %1281 = vmatpush1.bf16.msra.mxu0 %v825
        %1282 = vmatprep.subr.bf16.mxu0 0
        %1283 = vmatpush1.bf16.msra.mxu0 0
        %1284 = vmatprep.subr.bf16.mxu0 0
        %1285 = vmatpush1.bf16.msra.mxu0 0
        %1286 = vmatprep.subr.bf16.mxu0 0
        %1287 = vmatpush1.bf16.msra.mxu0 0
        %1288 = vmatprep.subr.bf16.mxu0 0
        %1289 = vmatpush1.bf16.msra.mxu0 0
        %1290 = vmatprep.subr.bf16.mxu0 0
        %1291 = vmatpush1.bf16.msra.mxu0 0
        %1292 = vmatprep.subr.bf16.mxu0 0
        %1293 = vmatpush1.bf16.msra.mxu0 0
        %1294 = vmatprep.subr.bf16.mxu0 0
        %1295 = vmatpush1.bf16.msra.mxu0 0
        %1296 = vmatprep.subr.bf16.mxu0 0
        %1297 = vmatpush1.bf16.msra.mxu0 0
        %1298 = vmatprep.mubr.bf16.mxu0 0
        %1299 = vmatmul.mubr.bf16.gmra.mrb[0].mxu0 %v343
        %v1300 = vpop.f32.mrb[0].mxu0
        %v1301 = vadd.f32 0.0, %v1300
        %v1302 = vpop.f32.mrb[0].mxu0
        %v1303 = vadd.f32 0.0, %v1302
        %v1304 = vpop.f32.mrb[0].mxu0
        %v1305 = vadd.f32 0.0, %v1304
        %v1306 = vpop.f32.mrb[0].mxu0
        %v1307 = vadd.f32 0.0, %v1306
        %1308 = vmatprep.mubr.bf16.mxu0 0
        %1309 = vmatmul.mubr.bf16.gmra.mrb[0].mxu0 %v344
        %v1310 = vpop.f32.mrb[0].mxu0
        %v1311 = vadd.f32 0.0, %v1310
        %v1312 = vpop.f32.mrb[0].mxu0
        %v1313 = vadd.f32 0.0, %v1312
        %v1314 = vpop.f32.mrb[0].mxu0
        %v1315 = vadd.f32 0.0, %v1314
        %v1316 = vpop.f32.mrb[0].mxu0
        %v1317 = vadd.f32 0.0, %v1316
        %1318 = vmatprep.mubr.bf16.mxu0 0
        %1319 = vmatmul.mubr.bf16.gmra.mrb[0].mxu0 %v345
        %v1320 = vpop.f32.mrb[0].mxu0
        %v1321 = vadd.f32 0.0, %v1320
        %v1322 = vpop.f32.mrb[0].mxu0
        %v1323 = vadd.f32 0.0, %v1322
        %v1324 = vpop.f32.mrb[0].mxu0
        %v1325 = vadd.f32 0.0, %v1324
        %v1326 = vpop.f32.mrb[0].mxu0
        %v1327 = vadd.f32 0.0, %v1326
        %1328 = vmatprep.mubr.bf16.mxu0 0
        %1329 = vmatmul.mubr.bf16.gmra.mrb[0].mxu0 %v346
        %v1330 = vpop.f32.mrb[0].mxu0
        %v1331 = vadd.f32 0.0, %v1330
        %v1332 = vpop.f32.mrb[0].mxu0
        %v1333 = vadd.f32 0.0, %v1332
        %v1334 = vpop.f32.mrb[0].mxu0
        %v1335 = vadd.f32 0.0, %v1334
        %v1336 = vpop.f32.mrb[0].mxu0
        %v1337 = vadd.f32 0.0, %v1336
        %1338 = vmatprep.mubr.bf16.mxu0 0
        %1339 = vmatmul.mubr.bf16.gmra.mrb[0].mxu0 %v347
        %v1340 = vpop.f32.mrb[0].mxu0
        %v1341 = vadd.f32 0.0, %v1340
        %v1342 = vpop.f32.mrb[0].mxu0
        %v1343 = vadd.f32 0.0, %v1342
        %v1344 = vpop.f32.mrb[0].mxu0
        %v1345 = vadd.f32 0.0, %v1344
        %v1346 = vpop.f32.mrb[0].mxu0
        %v1347 = vadd.f32 0.0, %v1346
        %1348 = vmatprep.mubr.bf16.mxu0 0
        %1349 = vmatmul.mubr.bf16.gmra.mrb[0].mxu0 %v348
        %v1350 = vpop.f32.mrb[0].mxu0
        %v1351 = vadd.f32 0.0, %v1350
        %v1352 = vpop.f32.mrb[0].mxu0
        %v1353 = vadd.f32 0.0, %v1352
        %v1354 = vpop.f32.mrb[0].mxu0
        %v1355 = vadd.f32 0.0, %v1354
        %v1356 = vpop.f32.mrb[0].mxu0
        %v1357 = vadd.f32 0.0, %v1356
        %1358 = vmatprep.mubr.bf16.mxu0 0
        %1359 = vmatmul.mubr.bf16.gmra.mrb[0].mxu0 %v349
        %v1360 = vpop.f32.mrb[0].mxu0
        %v1361 = vadd.f32 0.0, %v1360
        %v1362 = vpop.f32.mrb[0].mxu0
        %v1363 = vadd.f32 0.0, %v1362
        %v1364 = vpop.f32.mrb[0].mxu0
        %v1365 = vadd.f32 0.0, %v1364
        %v1366 = vpop.f32.mrb[0].mxu0
        %v1367 = vadd.f32 0.0, %v1366
        %1368 = vmatprep.mubr.bf16.mxu0 0
        %1369 = vmatmul.mubr.bf16.gmra.mrb[0].mxu0 %v350
        %v1370 = vpop.f32.mrb[0].mxu0
        %v1371 = vadd.f32 0.0, %v1370
        %v1372 = vpop.f32.mrb[0].mxu0
        %v1373 = vadd.f32 0.0, %v1372
        %v1374 = vpop.f32.mrb[0].mxu0
        %v1375 = vadd.f32 0.0, %v1374
        %v1376 = vpop.f32.mrb[0].mxu0
        %v1377 = vadd.f32 0.0, %v1376
        %1378 = vdwg.mxu0
        %1379 = vmatprep.subr.bf16.mxu0 %v744
        %1380 = vmatpush1.bf16.msra.mxu0 %v743
        %1381 = vmatprep.subr.bf16.mxu0 %v756
        %1382 = vmatpush1.bf16.msra.mxu0 %v755
        %1383 = vmatprep.subr.bf16.mxu0 %v768
        %1384 = vmatpush1.bf16.msra.mxu0 %v767
        %1385 = vmatprep.subr.bf16.mxu0 %v780
        %1386 = vmatpush1.bf16.msra.mxu0 %v779
        %1387 = vmatprep.subr.bf16.mxu0 %v792
        %1388 = vmatpush1.bf16.msra.mxu0 %v791
        %1389 = vmatprep.subr.bf16.mxu0 %v804
        %1390 = vmatpush1.bf16.msra.mxu0 %v803
        %1391 = vmatprep.subr.bf16.mxu0 %v816
        %1392 = vmatpush1.bf16.msra.mxu0 %v815
        %1393 = vmatprep.subr.bf16.mxu0 %v828
        %1394 = vmatpush1.bf16.msra.mxu0 %v827
        %1395 = vmatprep.subr.bf16.mxu0 0
        %1396 = vmatpush1.bf16.msra.mxu0 0
        %1397 = vmatprep.subr.bf16.mxu0 0
        %1398 = vmatpush1.bf16.msra.mxu0 0
        %1399 = vmatprep.subr.bf16.mxu0 0
        %1400 = vmatpush1.bf16.msra.mxu0 0
        %1401 = vmatprep.subr.bf16.mxu0 0
        %1402 = vmatpush1.bf16.msra.mxu0 0
        %1403 = vmatprep.subr.bf16.mxu0 0
        %1404 = vmatpush1.bf16.msra.mxu0 0
        %1405 = vmatprep.subr.bf16.mxu0 0
        %1406 = vmatpush1.bf16.msra.mxu0 0
        %1407 = vmatprep.subr.bf16.mxu0 0
        %1408 = vmatpush1.bf16.msra.mxu0 0
        %1409 = vmatprep.subr.bf16.mxu0 0
        %1410 = vmatpush1.bf16.msra.mxu0 0
        %1411 = vmatprep.mubr.bf16.mxu0 0
        %1412 = vmatmul.mubr.bf16.gmra.mrb[0].mxu0 %v343
        %v1413 = vpop.f32.mrb[0].mxu0
        %v1414 = vadd.f32 0.0, %v1413
        %v1415 = vpop.f32.mrb[0].mxu0
        %v1416 = vadd.f32 0.0, %v1415
        %v1417 = vpop.f32.mrb[0].mxu0
        %v1418 = vadd.f32 0.0, %v1417
        %v1419 = vpop.f32.mrb[0].mxu0
        %v1420 = vadd.f32 0.0, %v1419
        %1421 = vmatprep.mubr.bf16.mxu0 0
        %1422 = vmatmul.mubr.bf16.gmra.mrb[0].mxu0 %v344
        %v1423 = vpop.f32.mrb[0].mxu0
        %v1424 = vadd.f32 0.0, %v1423
        %v1425 = vpop.f32.mrb[0].mxu0
        %v1426 = vadd.f32 0.0, %v1425
        %v1427 = vpop.f32.mrb[0].mxu0
        %v1428 = vadd.f32 0.0, %v1427
        %v1429 = vpop.f32.mrb[0].mxu0
        %v1430 = vadd.f32 0.0, %v1429
        %1431 = vmatprep.mubr.bf16.mxu0 0
        %1432 = vmatmul.mubr.bf16.gmra.mrb[0].mxu0 %v345
        %v1433 = vpop.f32.mrb[0].mxu0
        %v1434 = vadd.f32 0.0, %v1433
        %v1435 = vpop.f32.mrb[0].mxu0
        %v1436 = vadd.f32 0.0, %v1435
        %v1437 = vpop.f32.mrb[0].mxu0
        %v1438 = vadd.f32 0.0, %v1437
        %v1439 = vpop.f32.mrb[0].mxu0
        %v1440 = vadd.f32 0.0, %v1439
        %1441 = vmatprep.mubr.bf16.mxu0 0
        %1442 = vmatmul.mubr.bf16.gmra.mrb[0].mxu0 %v346
        %v1443 = vpop.f32.mrb[0].mxu0
        %v1444 = vadd.f32 0.0, %v1443
        %v1445 = vpop.f32.mrb[0].mxu0
        %v1446 = vadd.f32 0.0, %v1445
        %v1447 = vpop.f32.mrb[0].mxu0
        %v1448 = vadd.f32 0.0, %v1447
        %v1449 = vpop.f32.mrb[0].mxu0
        %v1450 = vadd.f32 0.0, %v1449
        %1451 = vmatprep.mubr.bf16.mxu0 0
        %1452 = vmatmul.mubr.bf16.gmra.mrb[0].mxu0 %v347
        %v1453 = vpop.f32.mrb[0].mxu0
        %v1454 = vadd.f32 0.0, %v1453
        %v1455 = vpop.f32.mrb[0].mxu0
        %v1456 = vadd.f32 0.0, %v1455
        %v1457 = vpop.f32.mrb[0].mxu0
        %v1458 = vadd.f32 0.0, %v1457
        %v1459 = vpop.f32.mrb[0].mxu0
        %v1460 = vadd.f32 0.0, %v1459
        %1461 = vmatprep.mubr.bf16.mxu0 0
        %1462 = vmatmul.mubr.bf16.gmra.mrb[0].mxu0 %v348
        %v1463 = vpop.f32.mrb[0].mxu0
        %v1464 = vadd.f32 0.0, %v1463
        %v1465 = vpop.f32.mrb[0].mxu0
        %v1466 = vadd.f32 0.0, %v1465
        %v1467 = vpop.f32.mrb[0].mxu0
        %v1468 = vadd.f32 0.0, %v1467
        %v1469 = vpop.f32.mrb[0].mxu0
        %v1470 = vadd.f32 0.0, %v1469
        %1471 = vmatprep.mubr.bf16.mxu0 0
        %1472 = vmatmul.mubr.bf16.gmra.mrb[0].mxu0 %v349
        %v1473 = vpop.f32.mrb[0].mxu0
        %v1474 = vadd.f32 0.0, %v1473
        %v1475 = vpop.f32.mrb[0].mxu0
        %v1476 = vadd.f32 0.0, %v1475
        %v1477 = vpop.f32.mrb[0].mxu0
        %v1478 = vadd.f32 0.0, %v1477
        %v1479 = vpop.f32.mrb[0].mxu0
        %v1480 = vadd.f32 0.0, %v1479
        %1481 = vmatprep.mubr.bf16.mxu0 0
        %1482 = vmatmul.mubr.bf16.gmra.mrb[0].mxu0 %v350
        %v1483 = vpop.f32.mrb[0].mxu0
        %v1484 = vadd.f32 0.0, %v1483
        %v1485 = vpop.f32.mrb[0].mxu0
        %v1486 = vadd.f32 0.0, %v1485
        %v1487 = vpop.f32.mrb[0].mxu0
        %v1488 = vadd.f32 0.0, %v1487
        %v1489 = vpop.f32.mrb[0].mxu0
        %v1490 = vadd.f32 0.0, %v1489
        %1491 = vdwg.mxu0
        %1492 = vmatprep.subr.bf16.mxu0 %v746
        %1493 = vmatpush1.bf16.msra.mxu0 %v745
        %1494 = vmatprep.subr.bf16.mxu0 %v758
        %1495 = vmatpush1.bf16.msra.mxu0 %v757
        %1496 = vmatprep.subr.bf16.mxu0 %v770
        %1497 = vmatpush1.bf16.msra.mxu0 %v769
        %1498 = vmatprep.subr.bf16.mxu0 %v782
        %1499 = vmatpush1.bf16.msra.mxu0 %v781
        %1500 = vmatprep.subr.bf16.mxu0 %v794
        %1501 = vmatpush1.bf16.msra.mxu0 %v793
        %1502 = vmatprep.subr.bf16.mxu0 %v806
        %1503 = vmatpush1.bf16.msra.mxu0 %v805
        %1504 = vmatprep.subr.bf16.mxu0 %v818
        %1505 = vmatpush1.bf16.msra.mxu0 %v817
        %1506 = vmatprep.subr.bf16.mxu0 %v830
        %1507 = vmatpush1.bf16.msra.mxu0 %v829
        %1508 = vmatprep.subr.bf16.mxu0 0
        %1509 = vmatpush1.bf16.msra.mxu0 0
        %1510 = vmatprep.subr.bf16.mxu0 0
        %1511 = vmatpush1.bf16.msra.mxu0 0
        %1512 = vmatprep.subr.bf16.mxu0 0
        %1513 = vmatpush1.bf16.msra.mxu0 0
        %1514 = vmatprep.subr.bf16.mxu0 0
        %1515 = vmatpush1.bf16.msra.mxu0 0
        %1516 = vmatprep.subr.bf16.mxu0 0
        %1517 = vmatpush1.bf16.msra.mxu0 0
        %1518 = vmatprep.subr.bf16.mxu0 0
        %1519 = vmatpush1.bf16.msra.mxu0 0
        %1520 = vmatprep.subr.bf16.mxu0 0
        %1521 = vmatpush1.bf16.msra.mxu0 0
        %1522 = vmatprep.subr.bf16.mxu0 0
        %1523 = vmatpush1.bf16.msra.mxu0 0
        %1524 = vmatprep.mubr.bf16.mxu0 0
        %1525 = vmatmul.mubr.bf16.gmra.mrb[0].mxu0 %v343
        %v1526 = vpop.f32.mrb[0].mxu0
        %v1527 = vadd.f32 0.0, %v1526
        %v1528 = vpop.f32.mrb[0].mxu0
        %v1529 = vadd.f32 0.0, %v1528
        %v1530 = vpop.f32.mrb[0].mxu0
        %v1531 = vadd.f32 0.0, %v1530
        %v1532 = vpop.f32.mrb[0].mxu0
        %v1533 = vadd.f32 0.0, %v1532
        %1534 = vmatprep.mubr.bf16.mxu0 0
        %1535 = vmatmul.mubr.bf16.gmra.mrb[0].mxu0 %v344
        %v1536 = vpop.f32.mrb[0].mxu0
        %v1537 = vadd.f32 0.0, %v1536
        %v1538 = vpop.f32.mrb[0].mxu0
        %v1539 = vadd.f32 0.0, %v1538
        %v1540 = vpop.f32.mrb[0].mxu0
        %v1541 = vadd.f32 0.0, %v1540
        %v1542 = vpop.f32.mrb[0].mxu0
        %v1543 = vadd.f32 0.0, %v1542
        %1544 = vmatprep.mubr.bf16.mxu0 0
        %1545 = vmatmul.mubr.bf16.gmra.mrb[0].mxu0 %v345
        %v1546 = vpop.f32.mrb[0].mxu0
        %v1547 = vadd.f32 0.0, %v1546
        %v1548 = vpop.f32.mrb[0].mxu0
        %v1549 = vadd.f32 0.0, %v1548
        %v1550 = vpop.f32.mrb[0].mxu0
        %v1551 = vadd.f32 0.0, %v1550
        %v1552 = vpop.f32.mrb[0].mxu0
        %v1553 = vadd.f32 0.0, %v1552
        %1554 = vmatprep.mubr.bf16.mxu0 0
        %1555 = vmatmul.mubr.bf16.gmra.mrb[0].mxu0 %v346
        %v1556 = vpop.f32.mrb[0].mxu0
        %v1557 = vadd.f32 0.0, %v1556
        %v1558 = vpop.f32.mrb[0].mxu0
        %v1559 = vadd.f32 0.0, %v1558
        %v1560 = vpop.f32.mrb[0].mxu0
        %v1561 = vadd.f32 0.0, %v1560
        %v1562 = vpop.f32.mrb[0].mxu0
        %v1563 = vadd.f32 0.0, %v1562
        %1564 = vmatprep.mubr.bf16.mxu0 0
        %1565 = vmatmul.mubr.bf16.gmra.mrb[0].mxu0 %v347
        %v1566 = vpop.f32.mrb[0].mxu0
        %v1567 = vadd.f32 0.0, %v1566
        %v1568 = vpop.f32.mrb[0].mxu0
        %v1569 = vadd.f32 0.0, %v1568
        %v1570 = vpop.f32.mrb[0].mxu0
        %v1571 = vadd.f32 0.0, %v1570
        %v1572 = vpop.f32.mrb[0].mxu0
        %v1573 = vadd.f32 0.0, %v1572
        %1574 = vmatprep.mubr.bf16.mxu0 0
        %1575 = vmatmul.mubr.bf16.gmra.mrb[0].mxu0 %v348
        %v1576 = vpop.f32.mrb[0].mxu0
        %v1577 = vadd.f32 0.0, %v1576
        %v1578 = vpop.f32.mrb[0].mxu0
        %v1579 = vadd.f32 0.0, %v1578
        %v1580 = vpop.f32.mrb[0].mxu0
        %v1581 = vadd.f32 0.0, %v1580
        %v1582 = vpop.f32.mrb[0].mxu0
        %v1583 = vadd.f32 0.0, %v1582
        %1584 = vmatprep.mubr.bf16.mxu0 0
        %1585 = vmatmul.mubr.bf16.gmra.mrb[0].mxu0 %v349
        %v1586 = vpop.f32.mrb[0].mxu0
        %v1587 = vadd.f32 0.0, %v1586
        %v1588 = vpop.f32.mrb[0].mxu0
        %v1589 = vadd.f32 0.0, %v1588
        %v1590 = vpop.f32.mrb[0].mxu0
        %v1591 = vadd.f32 0.0, %v1590
        %v1592 = vpop.f32.mrb[0].mxu0
        %v1593 = vadd.f32 0.0, %v1592
        %1594 = vmatprep.mubr.bf16.mxu0 0
        %1595 = vmatmul.mubr.bf16.gmra.mrb[0].mxu0 %v350
        %v1596 = vpop.f32.mrb[0].mxu0
        %v1597 = vadd.f32 0.0, %v1596
        %v1598 = vpop.f32.mrb[0].mxu0
        %v1599 = vadd.f32 0.0, %v1598
        %v1600 = vpop.f32.mrb[0].mxu0
        %v1601 = vadd.f32 0.0, %v1600
        %v1602 = vpop.f32.mrb[0].mxu0
        %v1603 = vadd.f32 0.0, %v1602
        %1604 = vdwg.mxu0
        %v1605 = vpack.c.bf16 %v966, %v962
        %v1606 = vpack.c.bf16 %v968, %v964
        %v1607 = vpack.c.bf16 %v1079, %v1075
        %v1608 = vpack.c.bf16 %v1081, %v1077
        %v1609 = vpack.c.bf16 %v1192, %v1188
        %v1610 = vpack.c.bf16 %v1194, %v1190
        %v1611 = vpack.c.bf16 %v1305, %v1301
        %v1612 = vpack.c.bf16 %v1307, %v1303
        %v1613 = vpack.c.bf16 %v1418, %v1414
        %v1614 = vpack.c.bf16 %v1420, %v1416
        %v1615 = vpack.c.bf16 %v1531, %v1527
        %v1616 = vpack.c.bf16 %v1533, %v1529
        %v1617 = vpack.c.bf16 %v976, %v972
        %v1618 = vpack.c.bf16 %v978, %v974
        %v1619 = vpack.c.bf16 %v1089, %v1085
        %v1620 = vpack.c.bf16 %v1091, %v1087
        %v1621 = vpack.c.bf16 %v1202, %v1198
        %v1622 = vpack.c.bf16 %v1204, %v1200
        %v1623 = vpack.c.bf16 %v1315, %v1311
        %v1624 = vpack.c.bf16 %v1317, %v1313
        %v1625 = vpack.c.bf16 %v1428, %v1424
        %v1626 = vpack.c.bf16 %v1430, %v1426
        %v1627 = vpack.c.bf16 %v1541, %v1537
        %v1628 = vpack.c.bf16 %v1543, %v1539
        %v1629 = vpack.c.bf16 %v986, %v982
        %v1630 = vpack.c.bf16 %v988, %v984
        %v1631 = vpack.c.bf16 %v1099, %v1095
        %v1632 = vpack.c.bf16 %v1101, %v1097
        %v1633 = vpack.c.bf16 %v1212, %v1208
        %v1634 = vpack.c.bf16 %v1214, %v1210
        %v1635 = vpack.c.bf16 %v1325, %v1321
        %v1636 = vpack.c.bf16 %v1327, %v1323
        %v1637 = vpack.c.bf16 %v1438, %v1434
        %v1638 = vpack.c.bf16 %v1440, %v1436
        %v1639 = vpack.c.bf16 %v1551, %v1547
        %v1640 = vpack.c.bf16 %v1553, %v1549
        %v1641 = vpack.c.bf16 %v996, %v992
        %v1642 = vpack.c.bf16 %v998, %v994
        %v1643 = vpack.c.bf16 %v1109, %v1105
        %v1644 = vpack.c.bf16 %v1111, %v1107
        %v1645 = vpack.c.bf16 %v1222, %v1218
        %v1646 = vpack.c.bf16 %v1224, %v1220
        %v1647 = vpack.c.bf16 %v1335, %v1331
        %v1648 = vpack.c.bf16 %v1337, %v1333
        %v1649 = vpack.c.bf16 %v1448, %v1444
        %v1650 = vpack.c.bf16 %v1450, %v1446
        %v1651 = vpack.c.bf16 %v1561, %v1557
        %v1652 = vpack.c.bf16 %v1563, %v1559
        %v1653 = vpack.c.bf16 %v1006, %v1002
        %v1654 = vpack.c.bf16 %v1008, %v1004
        %v1655 = vpack.c.bf16 %v1119, %v1115
        %v1656 = vpack.c.bf16 %v1121, %v1117
        %v1657 = vpack.c.bf16 %v1232, %v1228
        %v1658 = vpack.c.bf16 %v1234, %v1230
        %v1659 = vpack.c.bf16 %v1345, %v1341
        %v1660 = vpack.c.bf16 %v1347, %v1343
        %v1661 = vpack.c.bf16 %v1458, %v1454
        %v1662 = vpack.c.bf16 %v1460, %v1456
        %v1663 = vpack.c.bf16 %v1571, %v1567
        %v1664 = vpack.c.bf16 %v1573, %v1569
        %v1665 = vpack.c.bf16 %v1016, %v1012
        %v1666 = vpack.c.bf16 %v1018, %v1014
        %v1667 = vpack.c.bf16 %v1129, %v1125
        %v1668 = vpack.c.bf16 %v1131, %v1127
        %v1669 = vpack.c.bf16 %v1242, %v1238
        %v1670 = vpack.c.bf16 %v1244, %v1240
        %v1671 = vpack.c.bf16 %v1355, %v1351
        %v1672 = vpack.c.bf16 %v1357, %v1353
        %v1673 = vpack.c.bf16 %v1468, %v1464
        %v1674 = vpack.c.bf16 %v1470, %v1466
        %v1675 = vpack.c.bf16 %v1581, %v1577
        %v1676 = vpack.c.bf16 %v1583, %v1579
        %v1677 = vpack.c.bf16 %v1026, %v1022
        %v1678 = vpack.c.bf16 %v1028, %v1024
        %v1679 = vpack.c.bf16 %v1139, %v1135
        %v1680 = vpack.c.bf16 %v1141, %v1137
        %v1681 = vpack.c.bf16 %v1252, %v1248
        %v1682 = vpack.c.bf16 %v1254, %v1250
        %v1683 = vpack.c.bf16 %v1365, %v1361
        %v1684 = vpack.c.bf16 %v1367, %v1363
        %v1685 = vpack.c.bf16 %v1478, %v1474
        %v1686 = vpack.c.bf16 %v1480, %v1476
        %v1687 = vpack.c.bf16 %v1591, %v1587
        %v1688 = vpack.c.bf16 %v1593, %v1589
        %v1689 = vpack.c.bf16 %v1036, %v1032
        %v1690 = vpack.c.bf16 %v1038, %v1034
        %v1691 = vpack.c.bf16 %v1149, %v1145
        %v1692 = vpack.c.bf16 %v1151, %v1147
        %v1693 = vpack.c.bf16 %v1262, %v1258
        %v1694 = vpack.c.bf16 %v1264, %v1260
        %v1695 = vpack.c.bf16 %v1375, %v1371
        %v1696 = vpack.c.bf16 %v1377, %v1373
        %v1697 = vpack.c.bf16 %v1488, %v1484
        %v1698 = vpack.c.bf16 %v1490, %v1486
        %v1699 = vpack.c.bf16 %v1601, %v1597
        %v1700 = vpack.c.bf16 %v1603, %v1599
        %v1701 = vld [vmem:[#allocation7] sm:$0xf]
        %v1702 = vld [vmem:[#allocation7 + $0x4] sm:$0xf]
        %v1703 = vld [vmem:[#allocation7 + $0x8] sm:$0xf]
        %v1704 = vld [vmem:[#allocation7 + $0xc] sm:$0xf]
        %v1705 = vld [vmem:[#allocation7 + $0x10] sm:$0xf]
        %v1706 = vld [vmem:[#allocation7 + $0x14] sm:$0xf]
        %v1707 = vld [vmem:[#allocation7 + $0x18] sm:$0xf]
        %v1708 = vld [vmem:[#allocation7 + $0x1c] sm:$0xf]
        %v1709 = vld [vmem:[#allocation7 + $0x20] sm:$0xf]
        %v1710 = vld [vmem:[#allocation7 + $0x24] sm:$0xf]
        %v1711 = vld [vmem:[#allocation7 + $0x28] sm:$0xf]
        %v1712 = vld [vmem:[#allocation7 + $0x2c] sm:$0xf]
        %v1713 = vld [vmem:[#allocation7 + $0x30] sm:$0xf]
        %v1714 = vld [vmem:[#allocation7 + $0x34] sm:$0xf]
        %v1715 = vld [vmem:[#allocation7 + $0x38] sm:$0xf]
        %v1716 = vld [vmem:[#allocation7 + $0x3c] sm:$0xf]
        %v1717 = vunpack.c.l.bf16 %v1701
        %v1718 = vunpack.c.l.bf16 %v1702
        %v1719 = vunpack.c.l.bf16 %v1703
        %v1720 = vunpack.c.l.bf16 %v1704
        %v1721 = vunpack.c.l.bf16 %v1705
        %v1722 = vunpack.c.l.bf16 %v1706
        %v1723 = vunpack.c.l.bf16 %v1707
        %v1724 = vunpack.c.l.bf16 %v1708
        %v1725 = vunpack.c.l.bf16 %v1709
        %v1726 = vunpack.c.l.bf16 %v1710
        %v1727 = vunpack.c.l.bf16 %v1711
        %v1728 = vunpack.c.l.bf16 %v1712
        %v1729 = vunpack.c.l.bf16 %v1713
        %v1730 = vunpack.c.l.bf16 %v1714
        %v1731 = vunpack.c.l.bf16 %v1715
        %v1732 = vunpack.c.l.bf16 %v1716
        %1733 = vmatprep.subr.bf16.mxu0 0
        %1734 = vmatpush1.bf16.xpose.msra.mxu0 %v1609
        %1735 = vmatprep.subr.bf16.mxu0 0
        %1736 = vmatpush1.bf16.xpose.msra.mxu0 %v1621
        %1737 = vmatprep.subr.bf16.mxu0 0
        %1738 = vmatpush1.bf16.xpose.msra.mxu0 %v1633
        %1739 = vmatprep.subr.bf16.mxu0 0
        %1740 = vmatpush1.bf16.xpose.msra.mxu0 %v1645
        %1741 = vmatprep.subr.bf16.mxu0 0
        %1742 = vmatpush1.bf16.xpose.msra.mxu0 %v1657
        %1743 = vmatprep.subr.bf16.mxu0 0
        %1744 = vmatpush1.bf16.xpose.msra.mxu0 %v1669
        %1745 = vmatprep.subr.bf16.mxu0 0
        %1746 = vmatpush1.bf16.xpose.msra.mxu0 %v1681
        %1747 = vmatprep.subr.bf16.mxu0 0
        %1748 = vmatpush1.bf16.xpose.msra.mxu0 %v1693
        %1749 = vmatprep.subr.bf16.mxu0 0
        %1750 = vmatpush1.bf16.xpose.msra.mxu0 0
        %1751 = vmatprep.subr.bf16.mxu0 0
        %1752 = vmatpush1.bf16.xpose.msra.mxu0 0
        %1753 = vmatprep.subr.bf16.mxu0 0
        %1754 = vmatpush1.bf16.xpose.msra.mxu0 0
        %1755 = vmatprep.subr.bf16.mxu0 0
        %1756 = vmatpush1.bf16.xpose.msra.mxu0 0
        %1757 = vmatprep.subr.bf16.mxu0 0
        %1758 = vmatpush1.bf16.xpose.msra.mxu0 0
        %1759 = vmatprep.subr.bf16.mxu0 0
        %1760 = vmatpush1.bf16.xpose.msra.mxu0 0
        %1761 = vmatprep.subr.bf16.mxu0 0
        %1762 = vmatpush1.bf16.xpose.msra.mxu0 0
        %1763 = vmatprep.subr.bf16.mxu0 0
        %1764 = vmatpush1.bf16.xpose.msra.mxu0 0
        %1765 = vmatprep.mubr.bf16.mxu0 0
        %1766 = vmatmul.mubr.bf16.gmra.mrb[0].mxu0 %v1605
        %v1767 = vpop.f32.mrb[0].mxu0
        %v1768 = vadd.f32 %v1717, %v1767
        %v1769 = vpop.f32.mrb[0].mxu0
        %v1770 = vpop.f32.mrb[0].mxu0
        %v1771 = vadd.f32 %v1718, %v1770
        %v1772 = vpop.f32.mrb[0].mxu0
        %1773 = vmatprep.mubr.bf16.mxu0 0
        %1774 = vmatmul.mubr.bf16.gmra.mrb[0].mxu0 %v1617
        %v1775 = vpop.f32.mrb[0].mxu0
        %v1776 = vadd.f32 %v1719, %v1775
        %v1777 = vpop.f32.mrb[0].mxu0
        %v1778 = vpop.f32.mrb[0].mxu0
        %v1779 = vadd.f32 %v1720, %v1778
        %v1780 = vpop.f32.mrb[0].mxu0
        %1781 = vmatprep.mubr.bf16.mxu0 0
        %1782 = vmatmul.mubr.bf16.gmra.mrb[0].mxu0 %v1629
        %v1783 = vpop.f32.mrb[0].mxu0
        %v1784 = vadd.f32 %v1721, %v1783
        %v1785 = vpop.f32.mrb[0].mxu0
        %v1786 = vpop.f32.mrb[0].mxu0
        %v1787 = vadd.f32 %v1722, %v1786
        %v1788 = vpop.f32.mrb[0].mxu0
        %1789 = vmatprep.mubr.bf16.mxu0 0
        %1790 = vmatmul.mubr.bf16.gmra.mrb[0].mxu0 %v1641
        %v1791 = vpop.f32.mrb[0].mxu0
        %v1792 = vadd.f32 %v1723, %v1791
        %v1793 = vpop.f32.mrb[0].mxu0
        %v1794 = vpop.f32.mrb[0].mxu0
        %v1795 = vadd.f32 %v1724, %v1794
        %v1796 = vpop.f32.mrb[0].mxu0
        %1797 = vmatprep.mubr.bf16.mxu0 0
        %1798 = vmatmul.mubr.bf16.gmra.mrb[0].mxu0 %v1653
        %v1799 = vpop.f32.mrb[0].mxu0
        %v1800 = vadd.f32 %v1725, %v1799
        %v1801 = vpop.f32.mrb[0].mxu0
        %v1802 = vpop.f32.mrb[0].mxu0
        %v1803 = vadd.f32 %v1726, %v1802
        %v1804 = vpop.f32.mrb[0].mxu0
        %1805 = vmatprep.mubr.bf16.mxu0 0
        %1806 = vmatmul.mubr.bf16.gmra.mrb[0].mxu0 %v1665
        %v1807 = vpop.f32.mrb[0].mxu0
        %v1808 = vadd.f32 %v1727, %v1807
        %v1809 = vpop.f32.mrb[0].mxu0
        %v1810 = vpop.f32.mrb[0].mxu0
        %v1811 = vadd.f32 %v1728, %v1810
        %v1812 = vpop.f32.mrb[0].mxu0
        %1813 = vmatprep.mubr.bf16.mxu0 0
        %1814 = vmatmul.mubr.bf16.gmra.mrb[0].mxu0 %v1677
        %v1815 = vpop.f32.mrb[0].mxu0
        %v1816 = vadd.f32 %v1729, %v1815
        %v1817 = vpop.f32.mrb[0].mxu0
        %v1818 = vpop.f32.mrb[0].mxu0
        %v1819 = vadd.f32 %v1730, %v1818
        %v1820 = vpop.f32.mrb[0].mxu0
        %1821 = vmatprep.mubr.bf16.mxu0 0
        %1822 = vmatmul.mubr.bf16.gmra.mrb[0].mxu0 %v1689
        %v1823 = vpop.f32.mrb[0].mxu0
        %v1824 = vadd.f32 %v1731, %v1823
        %v1825 = vpop.f32.mrb[0].mxu0
        %v1826 = vpop.f32.mrb[0].mxu0
        %v1827 = vadd.f32 %v1732, %v1826
        %v1828 = vpop.f32.mrb[0].mxu0
        %1829 = vdwg.mxu0
        %1830 = vmax.xlane.f32.xlu0 %v1768
        %v1831 = vpop.xlane.xlu0 %1830
        %1832 = vmax.xlane.f32.xlu0 %v1771
        %v1833 = vpop.xlane.xlu0 %1832
        %1834 = vmax.xlane.f32.xlu0 %v1776
        %v1835 = vpop.xlane.xlu0 %1834
        %1836 = vmax.xlane.f32.xlu0 %v1779
        %v1837 = vpop.xlane.xlu0 %1836
        %1838 = vmax.xlane.f32.xlu0 %v1784
        %v1839 = vpop.xlane.xlu0 %1838
        %1840 = vmax.xlane.f32.xlu0 %v1787
        %v1841 = vpop.xlane.xlu0 %1840
        %1842 = vmax.xlane.f32.xlu0 %v1792
        %v1843 = vpop.xlane.xlu0 %1842
        %1844 = vmax.xlane.f32.xlu0 %v1795
        %v1845 = vpop.xlane.xlu0 %1844
        %1846 = vmax.xlane.f32.xlu0 %v1800
        %v1847 = vpop.xlane.xlu0 %1846
        %1848 = vmax.xlane.f32.xlu0 %v1803
        %v1849 = vpop.xlane.xlu0 %1848
        %1850 = vmax.xlane.f32.xlu0 %v1808
        %v1851 = vpop.xlane.xlu0 %1850
        %1852 = vmax.xlane.f32.xlu0 %v1811
        %v1853 = vpop.xlane.xlu0 %1852
        %1854 = vmax.xlane.f32.xlu0 %v1816
        %v1855 = vpop.xlane.xlu0 %1854
        %1856 = vmax.xlane.f32.xlu0 %v1819
        %v1857 = vpop.xlane.xlu0 %1856
        %1858 = vmax.xlane.f32.xlu0 %v1824
        %v1859 = vpop.xlane.xlu0 %1858
        %1860 = vmax.xlane.f32.xlu0 %v1827
        %v1861 = vpop.xlane.xlu0 %1860
        %v1862 = vsub.f32 %v1768, %v1831
        %v1863 = vsub.f32 %v1771, %v1833
        %v1864 = vsub.f32 %v1776, %v1835
        %v1865 = vsub.f32 %v1779, %v1837
        %v1866 = vsub.f32 %v1784, %v1839
        %v1867 = vsub.f32 %v1787, %v1841
        %v1868 = vsub.f32 %v1792, %v1843
        %v1869 = vsub.f32 %v1795, %v1845
        %v1870 = vsub.f32 %v1800, %v1847
        %v1871 = vsub.f32 %v1803, %v1849
        %v1872 = vsub.f32 %v1808, %v1851
        %v1873 = vsub.f32 %v1811, %v1853
        %v1874 = vsub.f32 %v1816, %v1855
        %v1875 = vsub.f32 %v1819, %v1857
        %v1876 = vsub.f32 %v1824, %v1859
        %v1877 = vsub.f32 %v1827, %v1861
        %v1878 = vmul.f32 %v1862, 1.442695
        %v1879 = vpow.pop %v1878
        %v1880 = vmul.f32 %v1863, 1.442695
        %v1881 = vpow.pop %v1880
        %v1882 = vmul.f32 %v1864, 1.442695
        %v1883 = vpow.pop %v1882
        %v1884 = vmul.f32 %v1865, 1.442695
        %v1885 = vpow.pop %v1884
        %v1886 = vmul.f32 %v1866, 1.442695
        %v1887 = vpow.pop %v1886
        %v1888 = vmul.f32 %v1867, 1.442695
        %v1889 = vpow.pop %v1888
        %v1890 = vmul.f32 %v1868, 1.442695
        %v1891 = vpow.pop %v1890
        %v1892 = vmul.f32 %v1869, 1.442695
        %v1893 = vpow.pop %v1892
        %v1894 = vmul.f32 %v1870, 1.442695
        %v1895 = vpow.pop %v1894
        %v1896 = vmul.f32 %v1871, 1.442695
        %v1897 = vpow.pop %v1896
        %v1898 = vmul.f32 %v1872, 1.442695
        %v1899 = vpow.pop %v1898
        %v1900 = vmul.f32 %v1873, 1.442695
        %v1901 = vpow.pop %v1900
        %v1902 = vmul.f32 %v1874, 1.442695
        %v1903 = vpow.pop %v1902
        %v1904 = vmul.f32 %v1875, 1.442695
        %v1905 = vpow.pop %v1904
        %v1906 = vmul.f32 %v1876, 1.442695
        %v1907 = vpow.pop %v1906
        %v1908 = vmul.f32 %v1877, 1.442695
        %v1909 = vpow.pop %v1908
        %1910 = vadd.xlane.f32.xlu0 %v1879
        %v1911 = vpop.xlane.xlu0 %1910
        %1912 = vadd.xlane.f32.xlu0 %v1881
        %v1913 = vpop.xlane.xlu0 %1912
        %1914 = vadd.xlane.f32.xlu0 %v1883
        %v1915 = vpop.xlane.xlu0 %1914
        %1916 = vadd.xlane.f32.xlu0 %v1885
        %v1917 = vpop.xlane.xlu0 %1916
        %1918 = vadd.xlane.f32.xlu0 %v1887
        %v1919 = vpop.xlane.xlu0 %1918
        %1920 = vadd.xlane.f32.xlu0 %v1889
        %v1921 = vpop.xlane.xlu0 %1920
        %1922 = vadd.xlane.f32.xlu0 %v1891
        %v1923 = vpop.xlane.xlu0 %1922
        %1924 = vadd.xlane.f32.xlu0 %v1893
        %v1925 = vpop.xlane.xlu0 %1924
        %1926 = vadd.xlane.f32.xlu0 %v1895
        %v1927 = vpop.xlane.xlu0 %1926
        %1928 = vadd.xlane.f32.xlu0 %v1897
        %v1929 = vpop.xlane.xlu0 %1928
        %1930 = vadd.xlane.f32.xlu0 %v1899
        %v1931 = vpop.xlane.xlu0 %1930
        %1932 = vadd.xlane.f32.xlu0 %v1901
        %v1933 = vpop.xlane.xlu0 %1932
        %1934 = vadd.xlane.f32.xlu0 %v1903
        %v1935 = vpop.xlane.xlu0 %1934
        %1936 = vadd.xlane.f32.xlu0 %v1905
        %v1937 = vpop.xlane.xlu0 %1936
        %1938 = vadd.xlane.f32.xlu0 %v1907
        %v1939 = vpop.xlane.xlu0 %1938
        %1940 = vadd.xlane.f32.xlu0 %v1909
        %v1941 = vpop.xlane.xlu0 %1940
        %v1942 = vrcp.pop %v1911
        %v1943 = vrcp.pop %v1913
        %v1944 = vrcp.pop %v1915
        %v1945 = vrcp.pop %v1917
        %v1946 = vrcp.pop %v1919
        %v1947 = vrcp.pop %v1921
        %v1948 = vrcp.pop %v1923
        %v1949 = vrcp.pop %v1925
        %v1950 = vrcp.pop %v1927
        %v1951 = vrcp.pop %v1929
        %v1952 = vrcp.pop %v1931
        %v1953 = vrcp.pop %v1933
        %v1954 = vrcp.pop %v1935
        %v1955 = vrcp.pop %v1937
        %v1956 = vrcp.pop %v1939
        %v1957 = vrcp.pop %v1941
        %v1958 = vmul.f32 %v1879, %v1942
        %v1959 = vmul.f32 %v1881, %v1943
        %v1960 = vmul.f32 %v1883, %v1944
        %v1961 = vmul.f32 %v1885, %v1945
        %v1962 = vmul.f32 %v1887, %v1946
        %v1963 = vmul.f32 %v1889, %v1947
        %v1964 = vmul.f32 %v1891, %v1948
        %v1965 = vmul.f32 %v1893, %v1949
        %v1966 = vmul.f32 %v1895, %v1950
        %v1967 = vmul.f32 %v1897, %v1951
        %v1968 = vmul.f32 %v1899, %v1952
        %v1969 = vmul.f32 %v1901, %v1953
        %v1970 = vmul.f32 %v1903, %v1954
        %v1971 = vmul.f32 %v1905, %v1955
        %v1972 = vmul.f32 %v1907, %v1956
        %v1973 = vmul.f32 %v1909, %v1957
        %v1974 = vpack.c.bf16 %v1959, %v1958
        %v1975 = vpack.c.bf16 %v1961, %v1960
        %v1976 = vpack.c.bf16 %v1963, %v1962
        %v1977 = vpack.c.bf16 %v1965, %v1964
        %v1978 = vpack.c.bf16 %v1967, %v1966
        %v1979 = vpack.c.bf16 %v1969, %v1968
        %v1980 = vpack.c.bf16 %v1971, %v1970
        %v1981 = vpack.c.bf16 %v1973, %v1972
        %1982 = vmatprep.subr.bf16.mxu0 0
        %1983 = vmatpush1.bf16.xpose.msra.mxu0 %v1610
        %1984 = vmatprep.subr.bf16.mxu0 0
        %1985 = vmatpush1.bf16.xpose.msra.mxu0 %v1622
        %1986 = vmatprep.subr.bf16.mxu0 0
        %1987 = vmatpush1.bf16.xpose.msra.mxu0 %v1634
        %1988 = vmatprep.subr.bf16.mxu0 0
        %1989 = vmatpush1.bf16.xpose.msra.mxu0 %v1646
        %1990 = vmatprep.subr.bf16.mxu0 0
        %1991 = vmatpush1.bf16.xpose.msra.mxu0 %v1658
        %1992 = vmatprep.subr.bf16.mxu0 0
        %1993 = vmatpush1.bf16.xpose.msra.mxu0 %v1670
        %1994 = vmatprep.subr.bf16.mxu0 0
        %1995 = vmatpush1.bf16.xpose.msra.mxu0 %v1682
        %1996 = vmatprep.subr.bf16.mxu0 0
        %1997 = vmatpush1.bf16.xpose.msra.mxu0 %v1694
        %1998 = vmatprep.subr.bf16.mxu0 0
        %1999 = vmatpush1.bf16.xpose.msra.mxu0 0
        %2000 = vmatprep.subr.bf16.mxu0 0
        %2001 = vmatpush1.bf16.xpose.msra.mxu0 0
        %2002 = vmatprep.subr.bf16.mxu0 0
        %2003 = vmatpush1.bf16.xpose.msra.mxu0 0
        %2004 = vmatprep.subr.bf16.mxu0 0
        %2005 = vmatpush1.bf16.xpose.msra.mxu0 0
        %2006 = vmatprep.subr.bf16.mxu0 0
        %2007 = vmatpush1.bf16.xpose.msra.mxu0 0
        %2008 = vmatprep.subr.bf16.mxu0 0
        %2009 = vmatpush1.bf16.xpose.msra.mxu0 0
        %2010 = vmatprep.subr.bf16.mxu0 0
        %2011 = vmatpush1.bf16.xpose.msra.mxu0 0
        %2012 = vmatprep.subr.bf16.mxu0 0
        %2013 = vmatpush1.bf16.xpose.msra.mxu0 0
        %2014 = vmatprep.mubr.bf16.mxu0 0
        %2015 = vmatmul.mubr.bf16.gmra.mrb[0].mxu0 %v1606
        %v2016 = vpop.f32.mrb[0].mxu0
        %v2017 = vadd.f32 %v1717, %v2016
        %v2018 = vpop.f32.mrb[0].mxu0
        %v2019 = vpop.f32.mrb[0].mxu0
        %v2020 = vadd.f32 %v1718, %v2019
        %v2021 = vpop.f32.mrb[0].mxu0
        %2022 = vmatprep.mubr.bf16.mxu0 0
        %2023 = vmatmul.mubr.bf16.gmra.mrb[0].mxu0 %v1618
        %v2024 = vpop.f32.mrb[0].mxu0
        %v2025 = vadd.f32 %v1719, %v2024
        %v2026 = vpop.f32.mrb[0].mxu0
        %v2027 = vpop.f32.mrb[0].mxu0
        %v2028 = vadd.f32 %v1720, %v2027
        %v2029 = vpop.f32.mrb[0].mxu0
        %2030 = vmatprep.mubr.bf16.mxu0 0
        %2031 = vmatmul.mubr.bf16.gmra.mrb[0].mxu0 %v1630
        %v2032 = vpop.f32.mrb[0].mxu0
        %v2033 = vadd.f32 %v1721, %v2032
        %v2034 = vpop.f32.mrb[0].mxu0
        %v2035 = vpop.f32.mrb[0].mxu0
        %v2036 = vadd.f32 %v1722, %v2035
        %v2037 = vpop.f32.mrb[0].mxu0
        %2038 = vmatprep.mubr.bf16.mxu0 0
        %2039 = vmatmul.mubr.bf16.gmra.mrb[0].mxu0 %v1642
        %v2040 = vpop.f32.mrb[0].mxu0
        %v2041 = vadd.f32 %v1723, %v2040
        %v2042 = vpop.f32.mrb[0].mxu0
        %v2043 = vpop.f32.mrb[0].mxu0
        %v2044 = vadd.f32 %v1724, %v2043
        %v2045 = vpop.f32.mrb[0].mxu0
        %2046 = vmatprep.mubr.bf16.mxu0 0
        %2047 = vmatmul.mubr.bf16.gmra.mrb[0].mxu0 %v1654
        %v2048 = vpop.f32.mrb[0].mxu0
        %v2049 = vadd.f32 %v1725, %v2048
        %v2050 = vpop.f32.mrb[0].mxu0
        %v2051 = vpop.f32.mrb[0].mxu0
        %v2052 = vadd.f32 %v1726, %v2051
        %v2053 = vpop.f32.mrb[0].mxu0
        %2054 = vmatprep.mubr.bf16.mxu0 0
        %2055 = vmatmul.mubr.bf16.gmra.mrb[0].mxu0 %v1666
        %v2056 = vpop.f32.mrb[0].mxu0
        %v2057 = vadd.f32 %v1727, %v2056
        %v2058 = vpop.f32.mrb[0].mxu0
        %v2059 = vpop.f32.mrb[0].mxu0
        %v2060 = vadd.f32 %v1728, %v2059
        %v2061 = vpop.f32.mrb[0].mxu0
        %2062 = vmatprep.mubr.bf16.mxu0 0
        %2063 = vmatmul.mubr.bf16.gmra.mrb[0].mxu0 %v1678
        %v2064 = vpop.f32.mrb[0].mxu0
        %v2065 = vadd.f32 %v1729, %v2064
        %v2066 = vpop.f32.mrb[0].mxu0
        %v2067 = vpop.f32.mrb[0].mxu0
        %v2068 = vadd.f32 %v1730, %v2067
        %v2069 = vpop.f32.mrb[0].mxu0
        %2070 = vmatprep.mubr.bf16.mxu0 0
        %2071 = vmatmul.mubr.bf16.gmra.mrb[0].mxu0 %v1690
        %v2072 = vpop.f32.mrb[0].mxu0
        %v2073 = vadd.f32 %v1731, %v2072
        %v2074 = vpop.f32.mrb[0].mxu0
        %v2075 = vpop.f32.mrb[0].mxu0
        %v2076 = vadd.f32 %v1732, %v2075
        %v2077 = vpop.f32.mrb[0].mxu0
        %2078 = vdwg.mxu0
        %2079 = vmax.xlane.f32.xlu0 %v2017
        %v2080 = vpop.xlane.xlu0 %2079
        %2081 = vmax.xlane.f32.xlu0 %v2020
        %v2082 = vpop.xlane.xlu0 %2081
        %2083 = vmax.xlane.f32.xlu0 %v2025
        %v2084 = vpop.xlane.xlu0 %2083
        %2085 = vmax.xlane.f32.xlu0 %v2028
        %v2086 = vpop.xlane.xlu0 %2085
        %2087 = vmax.xlane.f32.xlu0 %v2033
        %v2088 = vpop.xlane.xlu0 %2087
        %2089 = vmax.xlane.f32.xlu0 %v2036
        %v2090 = vpop.xlane.xlu0 %2089
        %2091 = vmax.xlane.f32.xlu0 %v2041
        %v2092 = vpop.xlane.xlu0 %2091
        %2093 = vmax.xlane.f32.xlu0 %v2044
        %v2094 = vpop.xlane.xlu0 %2093
        %2095 = vmax.xlane.f32.xlu0 %v2049
        %v2096 = vpop.xlane.xlu0 %2095
        %2097 = vmax.xlane.f32.xlu0 %v2052
        %v2098 = vpop.xlane.xlu0 %2097
        %2099 = vmax.xlane.f32.xlu0 %v2057
        %v2100 = vpop.xlane.xlu0 %2099
        %2101 = vmax.xlane.f32.xlu0 %v2060
        %v2102 = vpop.xlane.xlu0 %2101
        %2103 = vmax.xlane.f32.xlu0 %v2065
        %v2104 = vpop.xlane.xlu0 %2103
        %2105 = vmax.xlane.f32.xlu0 %v2068
        %v2106 = vpop.xlane.xlu0 %2105
        %2107 = vmax.xlane.f32.xlu0 %v2073
        %v2108 = vpop.xlane.xlu0 %2107
        %2109 = vmax.xlane.f32.xlu0 %v2076
        %v2110 = vpop.xlane.xlu0 %2109
        %v2111 = vsub.f32 %v2017, %v2080
        %v2112 = vsub.f32 %v2020, %v2082
        %v2113 = vsub.f32 %v2025, %v2084
        %v2114 = vsub.f32 %v2028, %v2086
        %v2115 = vsub.f32 %v2033, %v2088
        %v2116 = vsub.f32 %v2036, %v2090
        %v2117 = vsub.f32 %v2041, %v2092
        %v2118 = vsub.f32 %v2044, %v2094
        %v2119 = vsub.f32 %v2049, %v2096
        %v2120 = vsub.f32 %v2052, %v2098
        %v2121 = vsub.f32 %v2057, %v2100
        %v2122 = vsub.f32 %v2060, %v2102
        %v2123 = vsub.f32 %v2065, %v2104
        %v2124 = vsub.f32 %v2068, %v2106
        %v2125 = vsub.f32 %v2073, %v2108
        %v2126 = vsub.f32 %v2076, %v2110
        %v2127 = vmul.f32 %v2111, 1.442695
        %v2128 = vpow.pop %v2127
        %v2129 = vmul.f32 %v2112, 1.442695
        %v2130 = vpow.pop %v2129
        %v2131 = vmul.f32 %v2113, 1.442695
        %v2132 = vpow.pop %v2131
        %v2133 = vmul.f32 %v2114, 1.442695
        %v2134 = vpow.pop %v2133
        %v2135 = vmul.f32 %v2115, 1.442695
        %v2136 = vpow.pop %v2135
        %v2137 = vmul.f32 %v2116, 1.442695
        %v2138 = vpow.pop %v2137
        %v2139 = vmul.f32 %v2117, 1.442695
        %v2140 = vpow.pop %v2139
        %v2141 = vmul.f32 %v2118, 1.442695
        %v2142 = vpow.pop %v2141
        %v2143 = vmul.f32 %v2119, 1.442695
        %v2144 = vpow.pop %v2143
        %v2145 = vmul.f32 %v2120, 1.442695
        %v2146 = vpow.pop %v2145
        %v2147 = vmul.f32 %v2121, 1.442695
        %v2148 = vpow.pop %v2147
        %v2149 = vmul.f32 %v2122, 1.442695
        %v2150 = vpow.pop %v2149
        %v2151 = vmul.f32 %v2123, 1.442695
        %v2152 = vpow.pop %v2151
        %v2153 = vmul.f32 %v2124, 1.442695
        %v2154 = vpow.pop %v2153
        %v2155 = vmul.f32 %v2125, 1.442695
        %v2156 = vpow.pop %v2155
        %v2157 = vmul.f32 %v2126, 1.442695
        %v2158 = vpow.pop %v2157
        %2159 = vadd.xlane.f32.xlu0 %v2128
        %v2160 = vpop.xlane.xlu0 %2159
        %2161 = vadd.xlane.f32.xlu0 %v2130
        %v2162 = vpop.xlane.xlu0 %2161
        %2163 = vadd.xlane.f32.xlu0 %v2132
        %v2164 = vpop.xlane.xlu0 %2163
        %2165 = vadd.xlane.f32.xlu0 %v2134
        %v2166 = vpop.xlane.xlu0 %2165
        %2167 = vadd.xlane.f32.xlu0 %v2136
        %v2168 = vpop.xlane.xlu0 %2167
        %2169 = vadd.xlane.f32.xlu0 %v2138
        %v2170 = vpop.xlane.xlu0 %2169
        %2171 = vadd.xlane.f32.xlu0 %v2140
        %v2172 = vpop.xlane.xlu0 %2171
        %2173 = vadd.xlane.f32.xlu0 %v2142
        %v2174 = vpop.xlane.xlu0 %2173
        %2175 = vadd.xlane.f32.xlu0 %v2144
        %v2176 = vpop.xlane.xlu0 %2175
        %2177 = vadd.xlane.f32.xlu0 %v2146
        %v2178 = vpop.xlane.xlu0 %2177
        %2179 = vadd.xlane.f32.xlu0 %v2148
        %v2180 = vpop.xlane.xlu0 %2179
        %2181 = vadd.xlane.f32.xlu0 %v2150
        %v2182 = vpop.xlane.xlu0 %2181
        %2183 = vadd.xlane.f32.xlu0 %v2152
        %v2184 = vpop.xlane.xlu0 %2183
        %2185 = vadd.xlane.f32.xlu0 %v2154
        %v2186 = vpop.xlane.xlu0 %2185
        %2187 = vadd.xlane.f32.xlu0 %v2156
        %v2188 = vpop.xlane.xlu0 %2187
        %2189 = vadd.xlane.f32.xlu0 %v2158
        %v2190 = vpop.xlane.xlu0 %2189
        %v2191 = vrcp.pop %v2160
        %v2192 = vrcp.pop %v2162
        %v2193 = vrcp.pop %v2164
        %v2194 = vrcp.pop %v2166
        %v2195 = vrcp.pop %v2168
        %v2196 = vrcp.pop %v2170
        %v2197 = vrcp.pop %v2172
        %v2198 = vrcp.pop %v2174
        %v2199 = vrcp.pop %v2176
        %v2200 = vrcp.pop %v2178
        %v2201 = vrcp.pop %v2180
        %v2202 = vrcp.pop %v2182
        %v2203 = vrcp.pop %v2184
        %v2204 = vrcp.pop %v2186
        %v2205 = vrcp.pop %v2188
        %v2206 = vrcp.pop %v2190
        %v2207 = vmul.f32 %v2128, %v2191
        %v2208 = vmul.f32 %v2130, %v2192
        %v2209 = vmul.f32 %v2132, %v2193
        %v2210 = vmul.f32 %v2134, %v2194
        %v2211 = vmul.f32 %v2136, %v2195
        %v2212 = vmul.f32 %v2138, %v2196
        %v2213 = vmul.f32 %v2140, %v2197
        %v2214 = vmul.f32 %v2142, %v2198
        %v2215 = vmul.f32 %v2144, %v2199
        %v2216 = vmul.f32 %v2146, %v2200
        %v2217 = vmul.f32 %v2148, %v2201
        %v2218 = vmul.f32 %v2150, %v2202
        %v2219 = vmul.f32 %v2152, %v2203
        %v2220 = vmul.f32 %v2154, %v2204
        %v2221 = vmul.f32 %v2156, %v2205
        %v2222 = vmul.f32 %v2158, %v2206
        %v2223 = vpack.c.bf16 %v2208, %v2207
        %v2224 = vpack.c.bf16 %v2210, %v2209
        %v2225 = vpack.c.bf16 %v2212, %v2211
        %v2226 = vpack.c.bf16 %v2214, %v2213
        %v2227 = vpack.c.bf16 %v2216, %v2215
        %v2228 = vpack.c.bf16 %v2218, %v2217
        %v2229 = vpack.c.bf16 %v2220, %v2219
        %v2230 = vpack.c.bf16 %v2222, %v2221
        %2231 = vmatprep.subr.bf16.mxu0 0
        %2232 = vmatpush1.bf16.msra.mxu0 %v1614
        %2233 = vmatprep.subr.bf16.mxu0 0
        %2234 = vmatpush1.bf16.msra.mxu0 %v1626
        %2235 = vmatprep.subr.bf16.mxu0 0
        %2236 = vmatpush1.bf16.msra.mxu0 %v1638
        %2237 = vmatprep.subr.bf16.mxu0 0
        %2238 = vmatpush1.bf16.msra.mxu0 %v1650
        %2239 = vmatprep.subr.bf16.mxu0 0
        %2240 = vmatpush1.bf16.msra.mxu0 %v1662
        %2241 = vmatprep.subr.bf16.mxu0 0
        %2242 = vmatpush1.bf16.msra.mxu0 %v1674
        %2243 = vmatprep.subr.bf16.mxu0 0
        %2244 = vmatpush1.bf16.msra.mxu0 %v1686
        %2245 = vmatprep.subr.bf16.mxu0 0
        %2246 = vmatpush1.bf16.msra.mxu0 %v1698
        %2247 = vmatprep.subr.bf16.mxu0 0
        %2248 = vmatpush1.bf16.msra.mxu0 0
        %2249 = vmatprep.subr.bf16.mxu0 0
        %2250 = vmatpush1.bf16.msra.mxu0 0
        %2251 = vmatprep.subr.bf16.mxu0 0
        %2252 = vmatpush1.bf16.msra.mxu0 0
        %2253 = vmatprep.subr.bf16.mxu0 0
        %2254 = vmatpush1.bf16.msra.mxu0 0
        %2255 = vmatprep.subr.bf16.mxu0 0
        %2256 = vmatpush1.bf16.msra.mxu0 0
        %2257 = vmatprep.subr.bf16.mxu0 0
        %2258 = vmatpush1.bf16.msra.mxu0 0
        %2259 = vmatprep.subr.bf16.mxu0 0
        %2260 = vmatpush1.bf16.msra.mxu0 0
        %2261 = vmatprep.subr.bf16.mxu0 0
        %2262 = vmatpush1.bf16.msra.mxu0 0
        %2263 = vmatprep.mubr.bf16.mxu0 0
        %2264 = vmatmul.mubr.bf16.gmra.mrb[0].mxu0 %v2223
        %v2265 = vpop.f32.mrb[0].mxu0
        %v2266 = vadd.f32 0.0, %v2265
        %v2267 = vpop.f32.mrb[0].mxu0
        %v2268 = vpop.f32.mrb[0].mxu0
        %v2269 = vadd.f32 0.0, %v2268
        %v2270 = vpop.f32.mrb[0].mxu0
        %2271 = vmatprep.mubr.bf16.mxu0 0
        %2272 = vmatmul.mubr.bf16.gmra.mrb[0].mxu0 %v2224
        %v2273 = vpop.f32.mrb[0].mxu0
        %v2274 = vadd.f32 0.0, %v2273
        %v2275 = vpop.f32.mrb[0].mxu0
        %v2276 = vpop.f32.mrb[0].mxu0
        %v2277 = vadd.f32 0.0, %v2276
        %v2278 = vpop.f32.mrb[0].mxu0
        %2279 = vmatprep.mubr.bf16.mxu0 0
        %2280 = vmatmul.mubr.bf16.gmra.mrb[0].mxu0 %v2225
        %v2281 = vpop.f32.mrb[0].mxu0
        %v2282 = vadd.f32 0.0, %v2281
        %v2283 = vpop.f32.mrb[0].mxu0
        %v2284 = vpop.f32.mrb[0].mxu0
        %v2285 = vadd.f32 0.0, %v2284
        %v2286 = vpop.f32.mrb[0].mxu0
        %2287 = vmatprep.mubr.bf16.mxu0 0
        %2288 = vmatmul.mubr.bf16.gmra.mrb[0].mxu0 %v2226
        %v2289 = vpop.f32.mrb[0].mxu0
        %v2290 = vadd.f32 0.0, %v2289
        %v2291 = vpop.f32.mrb[0].mxu0
        %v2292 = vpop.f32.mrb[0].mxu0
        %v2293 = vadd.f32 0.0, %v2292
        %v2294 = vpop.f32.mrb[0].mxu0
        %2295 = vmatprep.mubr.bf16.mxu0 0
        %2296 = vmatmul.mubr.bf16.gmra.mrb[0].mxu0 %v2227
        %v2297 = vpop.f32.mrb[0].mxu0
        %v2298 = vadd.f32 0.0, %v2297
        %v2299 = vpop.f32.mrb[0].mxu0
        %v2300 = vpop.f32.mrb[0].mxu0
        %v2301 = vadd.f32 0.0, %v2300
        %v2302 = vpop.f32.mrb[0].mxu0
        %2303 = vmatprep.mubr.bf16.mxu0 0
        %2304 = vmatmul.mubr.bf16.gmra.mrb[0].mxu0 %v2228
        %v2305 = vpop.f32.mrb[0].mxu0
        %v2306 = vadd.f32 0.0, %v2305
        %v2307 = vpop.f32.mrb[0].mxu0
        %v2308 = vpop.f32.mrb[0].mxu0
        %v2309 = vadd.f32 0.0, %v2308
        %v2310 = vpop.f32.mrb[0].mxu0
        %2311 = vmatprep.mubr.bf16.mxu0 0
        %2312 = vmatmul.mubr.bf16.gmra.mrb[0].mxu0 %v2229
        %v2313 = vpop.f32.mrb[0].mxu0
        %v2314 = vadd.f32 0.0, %v2313
        %v2315 = vpop.f32.mrb[0].mxu0
        %v2316 = vpop.f32.mrb[0].mxu0
        %v2317 = vadd.f32 0.0, %v2316
        %v2318 = vpop.f32.mrb[0].mxu0
        %2319 = vmatprep.mubr.bf16.mxu0 0
        %2320 = vmatmul.mubr.bf16.gmra.mrb[0].mxu0 %v2230
        %v2321 = vpop.f32.mrb[0].mxu0
        %v2322 = vadd.f32 0.0, %v2321
        %v2323 = vpop.f32.mrb[0].mxu0
        %v2324 = vpop.f32.mrb[0].mxu0
        %v2325 = vadd.f32 0.0, %v2324
        %v2326 = vpop.f32.mrb[0].mxu0
        %2327 = vdwg.mxu0
        %2328 = vmatprep.subr.bf16.mxu0 0
        %2329 = vmatpush1.bf16.msra.mxu0 %v1613
        %2330 = vmatprep.subr.bf16.mxu0 0
        %2331 = vmatpush1.bf16.msra.mxu0 %v1625
        %2332 = vmatprep.subr.bf16.mxu0 0
        %2333 = vmatpush1.bf16.msra.mxu0 %v1637
        %2334 = vmatprep.subr.bf16.mxu0 0
        %2335 = vmatpush1.bf16.msra.mxu0 %v1649
        %2336 = vmatprep.subr.bf16.mxu0 0
        %2337 = vmatpush1.bf16.msra.mxu0 %v1661
        %2338 = vmatprep.subr.bf16.mxu0 0
        %2339 = vmatpush1.bf16.msra.mxu0 %v1673
        %2340 = vmatprep.subr.bf16.mxu0 0
        %2341 = vmatpush1.bf16.msra.mxu0 %v1685
        %2342 = vmatprep.subr.bf16.mxu0 0
        %2343 = vmatpush1.bf16.msra.mxu0 %v1697
        %2344 = vmatprep.subr.bf16.mxu0 0
        %2345 = vmatpush1.bf16.msra.mxu0 0
        %2346 = vmatprep.subr.bf16.mxu0 0
        %2347 = vmatpush1.bf16.msra.mxu0 0
        %2348 = vmatprep.subr.bf16.mxu0 0
        %2349 = vmatpush1.bf16.msra.mxu0 0
        %2350 = vmatprep.subr.bf16.mxu0 0
        %2351 = vmatpush1.bf16.msra.mxu0 0
        %2352 = vmatprep.subr.bf16.mxu0 0
        %2353 = vmatpush1.bf16.msra.mxu0 0
        %2354 = vmatprep.subr.bf16.mxu0 0
        %2355 = vmatpush1.bf16.msra.mxu0 0
        %2356 = vmatprep.subr.bf16.mxu0 0
        %2357 = vmatpush1.bf16.msra.mxu0 0
        %2358 = vmatprep.subr.bf16.mxu0 0
        %2359 = vmatpush1.bf16.msra.mxu0 0
        %2360 = vmatprep.mubr.bf16.mxu0 0
        %2361 = vmatmul.mubr.bf16.gmra.mrb[0].mxu0 %v1974
        %v2362 = vpop.f32.mrb[0].mxu0
        %v2363 = vadd.f32 %v2266, %v2362
        %v2364 = vpop.f32.mrb[0].mxu0
        %v2365 = vpop.f32.mrb[0].mxu0
        %v2366 = vadd.f32 %v2269, %v2365
        %v2367 = vpop.f32.mrb[0].mxu0
        %2368 = vmatprep.mubr.bf16.mxu0 0
        %2369 = vmatmul.mubr.bf16.gmra.mrb[0].mxu0 %v1975
        %v2370 = vpop.f32.mrb[0].mxu0
        %v2371 = vadd.f32 %v2274, %v2370
        %v2372 = vpop.f32.mrb[0].mxu0
        %v2373 = vpop.f32.mrb[0].mxu0
        %v2374 = vadd.f32 %v2277, %v2373
        %v2375 = vpop.f32.mrb[0].mxu0
        %2376 = vmatprep.mubr.bf16.mxu0 0
        %2377 = vmatmul.mubr.bf16.gmra.mrb[0].mxu0 %v1976
        %v2378 = vpop.f32.mrb[0].mxu0
        %v2379 = vadd.f32 %v2282, %v2378
        %v2380 = vpop.f32.mrb[0].mxu0
        %v2381 = vpop.f32.mrb[0].mxu0
        %v2382 = vadd.f32 %v2285, %v2381
        %v2383 = vpop.f32.mrb[0].mxu0
        %2384 = vmatprep.mubr.bf16.mxu0 0
        %2385 = vmatmul.mubr.bf16.gmra.mrb[0].mxu0 %v1977
        %v2386 = vpop.f32.mrb[0].mxu0
        %v2387 = vadd.f32 %v2290, %v2386
        %v2388 = vpop.f32.mrb[0].mxu0
        %v2389 = vpop.f32.mrb[0].mxu0
        %v2390 = vadd.f32 %v2293, %v2389
        %v2391 = vpop.f32.mrb[0].mxu0
        %2392 = vmatprep.mubr.bf16.mxu0 0
        %2393 = vmatmul.mubr.bf16.gmra.mrb[0].mxu0 %v1978
        %v2394 = vpop.f32.mrb[0].mxu0
        %v2395 = vadd.f32 %v2298, %v2394
        %v2396 = vpop.f32.mrb[0].mxu0
        %v2397 = vpop.f32.mrb[0].mxu0
        %v2398 = vadd.f32 %v2301, %v2397
        %v2399 = vpop.f32.mrb[0].mxu0
        %2400 = vmatprep.mubr.bf16.mxu0 0
        %2401 = vmatmul.mubr.bf16.gmra.mrb[0].mxu0 %v1979
        %v2402 = vpop.f32.mrb[0].mxu0
        %v2403 = vadd.f32 %v2306, %v2402
        %v2404 = vpop.f32.mrb[0].mxu0
        %v2405 = vpop.f32.mrb[0].mxu0
        %v2406 = vadd.f32 %v2309, %v2405
        %v2407 = vpop.f32.mrb[0].mxu0
        %2408 = vmatprep.mubr.bf16.mxu0 0
        %2409 = vmatmul.mubr.bf16.gmra.mrb[0].mxu0 %v1980
        %v2410 = vpop.f32.mrb[0].mxu0
        %v2411 = vadd.f32 %v2314, %v2410
        %v2412 = vpop.f32.mrb[0].mxu0
        %v2413 = vpop.f32.mrb[0].mxu0
        %v2414 = vadd.f32 %v2317, %v2413
        %v2415 = vpop.f32.mrb[0].mxu0
        %2416 = vmatprep.mubr.bf16.mxu0 0
        %2417 = vmatmul.mubr.bf16.gmra.mrb[0].mxu0 %v1981
        %v2418 = vpop.f32.mrb[0].mxu0
        %v2419 = vadd.f32 %v2322, %v2418
        %v2420 = vpop.f32.mrb[0].mxu0
        %v2421 = vpop.f32.mrb[0].mxu0
        %v2422 = vadd.f32 %v2325, %v2421
        %v2423 = vpop.f32.mrb[0].mxu0
        %2424 = vdwg.mxu0
        %2425 = vmatprep.subr.bf16.mxu0 0
        %2426 = vmatpush1.bf16.xpose.msra.mxu0 %v1611
        %2427 = vmatprep.subr.bf16.mxu0 0
        %2428 = vmatpush1.bf16.xpose.msra.mxu0 %v1623
        %2429 = vmatprep.subr.bf16.mxu0 0
        %2430 = vmatpush1.bf16.xpose.msra.mxu0 %v1635
        %2431 = vmatprep.subr.bf16.mxu0 0
        %2432 = vmatpush1.bf16.xpose.msra.mxu0 %v1647
        %2433 = vmatprep.subr.bf16.mxu0 0
        %2434 = vmatpush1.bf16.xpose.msra.mxu0 %v1659
        %2435 = vmatprep.subr.bf16.mxu0 0
        %2436 = vmatpush1.bf16.xpose.msra.mxu0 %v1671
        %2437 = vmatprep.subr.bf16.mxu0 0
        %2438 = vmatpush1.bf16.xpose.msra.mxu0 %v1683
        %2439 = vmatprep.subr.bf16.mxu0 0
        %2440 = vmatpush1.bf16.xpose.msra.mxu0 %v1695
        %2441 = vmatprep.subr.bf16.mxu0 0
        %2442 = vmatpush1.bf16.xpose.msra.mxu0 0
        %2443 = vmatprep.subr.bf16.mxu0 0
        %2444 = vmatpush1.bf16.xpose.msra.mxu0 0
        %2445 = vmatprep.subr.bf16.mxu0 0
        %2446 = vmatpush1.bf16.xpose.msra.mxu0 0
        %2447 = vmatprep.subr.bf16.mxu0 0
        %2448 = vmatpush1.bf16.xpose.msra.mxu0 0
        %2449 = vmatprep.subr.bf16.mxu0 0
        %2450 = vmatpush1.bf16.xpose.msra.mxu0 0
        %2451 = vmatprep.subr.bf16.mxu0 0
        %2452 = vmatpush1.bf16.xpose.msra.mxu0 0
        %2453 = vmatprep.subr.bf16.mxu0 0
        %2454 = vmatpush1.bf16.xpose.msra.mxu0 0
        %2455 = vmatprep.subr.bf16.mxu0 0
        %2456 = vmatpush1.bf16.xpose.msra.mxu0 0
        %2457 = vmatprep.mubr.bf16.mxu0 0
        %2458 = vmatmul.mubr.bf16.gmra.mrb[0].mxu0 %v1607
        %v2459 = vpop.f32.mrb[0].mxu0
        %v2460 = vadd.f32 %v1717, %v2459
        %v2461 = vpop.f32.mrb[0].mxu0
        %v2462 = vpop.f32.mrb[0].mxu0
        %v2463 = vadd.f32 %v1718, %v2462
        %v2464 = vpop.f32.mrb[0].mxu0
        %2465 = vmatprep.mubr.bf16.mxu0 0
        %2466 = vmatmul.mubr.bf16.gmra.mrb[0].mxu0 %v1619
        %v2467 = vpop.f32.mrb[0].mxu0
        %v2468 = vadd.f32 %v1719, %v2467
        %v2469 = vpop.f32.mrb[0].mxu0
        %v2470 = vpop.f32.mrb[0].mxu0
        %v2471 = vadd.f32 %v1720, %v2470
        %v2472 = vpop.f32.mrb[0].mxu0
        %2473 = vmatprep.mubr.bf16.mxu0 0
        %2474 = vmatmul.mubr.bf16.gmra.mrb[0].mxu0 %v1631
        %v2475 = vpop.f32.mrb[0].mxu0
        %v2476 = vadd.f32 %v1721, %v2475
        %v2477 = vpop.f32.mrb[0].mxu0
        %v2478 = vpop.f32.mrb[0].mxu0
        %v2479 = vadd.f32 %v1722, %v2478
        %v2480 = vpop.f32.mrb[0].mxu0
        %2481 = vmatprep.mubr.bf16.mxu0 0
        %2482 = vmatmul.mubr.bf16.gmra.mrb[0].mxu0 %v1643
        %v2483 = vpop.f32.mrb[0].mxu0
        %v2484 = vadd.f32 %v1723, %v2483
        %v2485 = vpop.f32.mrb[0].mxu0
        %v2486 = vpop.f32.mrb[0].mxu0
        %v2487 = vadd.f32 %v1724, %v2486
        %v2488 = vpop.f32.mrb[0].mxu0
        %2489 = vmatprep.mubr.bf16.mxu0 0
        %2490 = vmatmul.mubr.bf16.gmra.mrb[0].mxu0 %v1655
        %v2491 = vpop.f32.mrb[0].mxu0
        %v2492 = vadd.f32 %v1725, %v2491
        %v2493 = vpop.f32.mrb[0].mxu0
        %v2494 = vpop.f32.mrb[0].mxu0
        %v2495 = vadd.f32 %v1726, %v2494
        %v2496 = vpop.f32.mrb[0].mxu0
        %2497 = vmatprep.mubr.bf16.mxu0 0
        %2498 = vmatmul.mubr.bf16.gmra.mrb[0].mxu0 %v1667
        %v2499 = vpop.f32.mrb[0].mxu0
        %v2500 = vadd.f32 %v1727, %v2499
        %v2501 = vpop.f32.mrb[0].mxu0
        %v2502 = vpop.f32.mrb[0].mxu0
        %v2503 = vadd.f32 %v1728, %v2502
        %v2504 = vpop.f32.mrb[0].mxu0
        %2505 = vmatprep.mubr.bf16.mxu0 0
        %2506 = vmatmul.mubr.bf16.gmra.mrb[0].mxu0 %v1679
        %v2507 = vpop.f32.mrb[0].mxu0
        %v2508 = vadd.f32 %v1729, %v2507
        %v2509 = vpop.f32.mrb[0].mxu0
        %v2510 = vpop.f32.mrb[0].mxu0
        %v2511 = vadd.f32 %v1730, %v2510
        %v2512 = vpop.f32.mrb[0].mxu0
        %2513 = vmatprep.mubr.bf16.mxu0 0
        %2514 = vmatmul.mubr.bf16.gmra.mrb[0].mxu0 %v1691
        %v2515 = vpop.f32.mrb[0].mxu0
        %v2516 = vadd.f32 %v1731, %v2515
        %v2517 = vpop.f32.mrb[0].mxu0
        %v2518 = vpop.f32.mrb[0].mxu0
        %v2519 = vadd.f32 %v1732, %v2518
        %v2520 = vpop.f32.mrb[0].mxu0
        %2521 = vdwg.mxu0
        %2522 = vmax.xlane.f32.xlu0 %v2460
        %v2523 = vpop.xlane.xlu0 %2522
        %2524 = vmax.xlane.f32.xlu0 %v2463
        %v2525 = vpop.xlane.xlu0 %2524
        %2526 = vmax.xlane.f32.xlu0 %v2468
        %v2527 = vpop.xlane.xlu0 %2526
        %2528 = vmax.xlane.f32.xlu0 %v2471
        %v2529 = vpop.xlane.xlu0 %2528
        %2530 = vmax.xlane.f32.xlu0 %v2476
        %v2531 = vpop.xlane.xlu0 %2530
        %2532 = vmax.xlane.f32.xlu0 %v2479
        %v2533 = vpop.xlane.xlu0 %2532
        %2534 = vmax.xlane.f32.xlu0 %v2484
        %v2535 = vpop.xlane.xlu0 %2534
        %2536 = vmax.xlane.f32.xlu0 %v2487
        %v2537 = vpop.xlane.xlu0 %2536
        %2538 = vmax.xlane.f32.xlu0 %v2492
        %v2539 = vpop.xlane.xlu0 %2538
        %2540 = vmax.xlane.f32.xlu0 %v2495
        %v2541 = vpop.xlane.xlu0 %2540
        %2542 = vmax.xlane.f32.xlu0 %v2500
        %v2543 = vpop.xlane.xlu0 %2542
        %2544 = vmax.xlane.f32.xlu0 %v2503
        %v2545 = vpop.xlane.xlu0 %2544
        %2546 = vmax.xlane.f32.xlu0 %v2508
        %v2547 = vpop.xlane.xlu0 %2546
        %2548 = vmax.xlane.f32.xlu0 %v2511
        %v2549 = vpop.xlane.xlu0 %2548
        %2550 = vmax.xlane.f32.xlu0 %v2516
        %v2551 = vpop.xlane.xlu0 %2550
        %2552 = vmax.xlane.f32.xlu0 %v2519
        %v2553 = vpop.xlane.xlu0 %2552
        %v2554 = vsub.f32 %v2460, %v2523
        %v2555 = vsub.f32 %v2463, %v2525
        %v2556 = vsub.f32 %v2468, %v2527
        %v2557 = vsub.f32 %v2471, %v2529
        %v2558 = vsub.f32 %v2476, %v2531
        %v2559 = vsub.f32 %v2479, %v2533
        %v2560 = vsub.f32 %v2484, %v2535
        %v2561 = vsub.f32 %v2487, %v2537
        %v2562 = vsub.f32 %v2492, %v2539
        %v2563 = vsub.f32 %v2495, %v2541
        %v2564 = vsub.f32 %v2500, %v2543
        %v2565 = vsub.f32 %v2503, %v2545
        %v2566 = vsub.f32 %v2508, %v2547
        %v2567 = vsub.f32 %v2511, %v2549
        %v2568 = vsub.f32 %v2516, %v2551
        %v2569 = vsub.f32 %v2519, %v2553
        %v2570 = vmul.f32 %v2554, 1.442695
        %v2571 = vpow.pop %v2570
        %v2572 = vmul.f32 %v2555, 1.442695
        %v2573 = vpow.pop %v2572
        %v2574 = vmul.f32 %v2556, 1.442695
        %v2575 = vpow.pop %v2574
        %v2576 = vmul.f32 %v2557, 1.442695
        %v2577 = vpow.pop %v2576
        %v2578 = vmul.f32 %v2558, 1.442695
        %v2579 = vpow.pop %v2578
        %v2580 = vmul.f32 %v2559, 1.442695
        %v2581 = vpow.pop %v2580
        %v2582 = vmul.f32 %v2560, 1.442695
        %v2583 = vpow.pop %v2582
        %v2584 = vmul.f32 %v2561, 1.442695
        %v2585 = vpow.pop %v2584
        %v2586 = vmul.f32 %v2562, 1.442695
        %v2587 = vpow.pop %v2586
        %v2588 = vmul.f32 %v2563, 1.442695
        %v2589 = vpow.pop %v2588
        %v2590 = vmul.f32 %v2564, 1.442695
        %v2591 = vpow.pop %v2590
        %v2592 = vmul.f32 %v2565, 1.442695
        %v2593 = vpow.pop %v2592
        %v2594 = vmul.f32 %v2566, 1.442695
        %v2595 = vpow.pop %v2594
        %v2596 = vmul.f32 %v2567, 1.442695
        %v2597 = vpow.pop %v2596
        %v2598 = vmul.f32 %v2568, 1.442695
        %v2599 = vpow.pop %v2598
        %v2600 = vmul.f32 %v2569, 1.442695
        %v2601 = vpow.pop %v2600
        %2602 = vadd.xlane.f32.xlu0 %v2571
        %v2603 = vpop.xlane.xlu0 %2602
        %2604 = vadd.xlane.f32.xlu0 %v2573
        %v2605 = vpop.xlane.xlu0 %2604
        %2606 = vadd.xlane.f32.xlu0 %v2575
        %v2607 = vpop.xlane.xlu0 %2606
        %2608 = vadd.xlane.f32.xlu0 %v2577
        %v2609 = vpop.xlane.xlu0 %2608
        %2610 = vadd.xlane.f32.xlu0 %v2579
        %v2611 = vpop.xlane.xlu0 %2610
        %2612 = vadd.xlane.f32.xlu0 %v2581
        %v2613 = vpop.xlane.xlu0 %2612
        %2614 = vadd.xlane.f32.xlu0 %v2583
        %v2615 = vpop.xlane.xlu0 %2614
        %2616 = vadd.xlane.f32.xlu0 %v2585
        %v2617 = vpop.xlane.xlu0 %2616
        %2618 = vadd.xlane.f32.xlu0 %v2587
        %v2619 = vpop.xlane.xlu0 %2618
        %2620 = vadd.xlane.f32.xlu0 %v2589
        %v2621 = vpop.xlane.xlu0 %2620
        %2622 = vadd.xlane.f32.xlu0 %v2591
        %v2623 = vpop.xlane.xlu0 %2622
        %2624 = vadd.xlane.f32.xlu0 %v2593
        %v2625 = vpop.xlane.xlu0 %2624
        %2626 = vadd.xlane.f32.xlu0 %v2595
        %v2627 = vpop.xlane.xlu0 %2626
        %2628 = vadd.xlane.f32.xlu0 %v2597
        %v2629 = vpop.xlane.xlu0 %2628
        %2630 = vadd.xlane.f32.xlu0 %v2599
        %v2631 = vpop.xlane.xlu0 %2630
        %2632 = vadd.xlane.f32.xlu0 %v2601
        %v2633 = vpop.xlane.xlu0 %2632
        %v2634 = vrcp.pop %v2603
        %v2635 = vrcp.pop %v2605
        %v2636 = vrcp.pop %v2607
        %v2637 = vrcp.pop %v2609
        %v2638 = vrcp.pop %v2611
        %v2639 = vrcp.pop %v2613
        %v2640 = vrcp.pop %v2615
        %v2641 = vrcp.pop %v2617
        %v2642 = vrcp.pop %v2619
        %v2643 = vrcp.pop %v2621
        %v2644 = vrcp.pop %v2623
        %v2645 = vrcp.pop %v2625
        %v2646 = vrcp.pop %v2627
        %v2647 = vrcp.pop %v2629
        %v2648 = vrcp.pop %v2631
        %v2649 = vrcp.pop %v2633
        %v2650 = vmul.f32 %v2571, %v2634
        %v2651 = vmul.f32 %v2573, %v2635
        %v2652 = vmul.f32 %v2575, %v2636
        %v2653 = vmul.f32 %v2577, %v2637
        %v2654 = vmul.f32 %v2579, %v2638
        %v2655 = vmul.f32 %v2581, %v2639
        %v2656 = vmul.f32 %v2583, %v2640
        %v2657 = vmul.f32 %v2585, %v2641
        %v2658 = vmul.f32 %v2587, %v2642
        %v2659 = vmul.f32 %v2589, %v2643
        %v2660 = vmul.f32 %v2591, %v2644
        %v2661 = vmul.f32 %v2593, %v2645
        %v2662 = vmul.f32 %v2595, %v2646
        %v2663 = vmul.f32 %v2597, %v2647
        %v2664 = vmul.f32 %v2599, %v2648
        %v2665 = vmul.f32 %v2601, %v2649
        %v2666 = vpack.c.bf16 %v2651, %v2650
        %v2667 = vpack.c.bf16 %v2653, %v2652
        %v2668 = vpack.c.bf16 %v2655, %v2654
        %v2669 = vpack.c.bf16 %v2657, %v2656
        %v2670 = vpack.c.bf16 %v2659, %v2658
        %v2671 = vpack.c.bf16 %v2661, %v2660
        %v2672 = vpack.c.bf16 %v2663, %v2662
        %v2673 = vpack.c.bf16 %v2665, %v2664
        %2674 = vmatprep.subr.bf16.mxu0 0
        %2675 = vmatpush1.bf16.msra.mxu0 %v1615
        %2676 = vmatprep.subr.bf16.mxu0 0
        %2677 = vmatpush1.bf16.msra.mxu0 %v1627
        %2678 = vmatprep.subr.bf16.mxu0 0
        %2679 = vmatpush1.bf16.msra.mxu0 %v1639
        %2680 = vmatprep.subr.bf16.mxu0 0
        %2681 = vmatpush1.bf16.msra.mxu0 %v1651
        %2682 = vmatprep.subr.bf16.mxu0 0
        %2683 = vmatpush1.bf16.msra.mxu0 %v1663
        %2684 = vmatprep.subr.bf16.mxu0 0
        %2685 = vmatpush1.bf16.msra.mxu0 %v1675
        %2686 = vmatprep.subr.bf16.mxu0 0
        %2687 = vmatpush1.bf16.msra.mxu0 %v1687
        %2688 = vmatprep.subr.bf16.mxu0 0
        %2689 = vmatpush1.bf16.msra.mxu0 %v1699
        %2690 = vmatprep.subr.bf16.mxu0 0
        %2691 = vmatpush1.bf16.msra.mxu0 0
        %2692 = vmatprep.subr.bf16.mxu0 0
        %2693 = vmatpush1.bf16.msra.mxu0 0
        %2694 = vmatprep.subr.bf16.mxu0 0
        %2695 = vmatpush1.bf16.msra.mxu0 0
        %2696 = vmatprep.subr.bf16.mxu0 0
        %2697 = vmatpush1.bf16.msra.mxu0 0
        %2698 = vmatprep.subr.bf16.mxu0 0
        %2699 = vmatpush1.bf16.msra.mxu0 0
        %2700 = vmatprep.subr.bf16.mxu0 0
        %2701 = vmatpush1.bf16.msra.mxu0 0
        %2702 = vmatprep.subr.bf16.mxu0 0
        %2703 = vmatpush1.bf16.msra.mxu0 0
        %2704 = vmatprep.subr.bf16.mxu0 0
        %2705 = vmatpush1.bf16.msra.mxu0 0
        %2706 = vmatprep.mubr.bf16.mxu0 0
        %2707 = vmatmul.mubr.bf16.gmra.mrb[0].mxu0 %v2666
        %v2708 = vpop.f32.mrb[0].mxu0
        %v2709 = vadd.f32 0.0, %v2708
        %v2710 = vpop.f32.mrb[0].mxu0
        %v2711 = vpop.f32.mrb[0].mxu0
        %v2712 = vadd.f32 0.0, %v2711
        %v2713 = vpop.f32.mrb[0].mxu0
        %2714 = vmatprep.mubr.bf16.mxu0 0
        %2715 = vmatmul.mubr.bf16.gmra.mrb[0].mxu0 %v2667
        %v2716 = vpop.f32.mrb[0].mxu0
        %v2717 = vadd.f32 0.0, %v2716
        %v2718 = vpop.f32.mrb[0].mxu0
        %v2719 = vpop.f32.mrb[0].mxu0
        %v2720 = vadd.f32 0.0, %v2719
        %v2721 = vpop.f32.mrb[0].mxu0
        %2722 = vmatprep.mubr.bf16.mxu0 0
        %2723 = vmatmul.mubr.bf16.gmra.mrb[0].mxu0 %v2668
        %v2724 = vpop.f32.mrb[0].mxu0
        %v2725 = vadd.f32 0.0, %v2724
        %v2726 = vpop.f32.mrb[0].mxu0
        %v2727 = vpop.f32.mrb[0].mxu0
        %v2728 = vadd.f32 0.0, %v2727
        %v2729 = vpop.f32.mrb[0].mxu0
        %2730 = vmatprep.mubr.bf16.mxu0 0
        %2731 = vmatmul.mubr.bf16.gmra.mrb[0].mxu0 %v2669
        %v2732 = vpop.f32.mrb[0].mxu0
        %v2733 = vadd.f32 0.0, %v2732
        %v2734 = vpop.f32.mrb[0].mxu0
        %v2735 = vpop.f32.mrb[0].mxu0
        %v2736 = vadd.f32 0.0, %v2735
        %v2737 = vpop.f32.mrb[0].mxu0
        %2738 = vmatprep.mubr.bf16.mxu0 0
        %2739 = vmatmul.mubr.bf16.gmra.mrb[0].mxu0 %v2670
        %v2740 = vpop.f32.mrb[0].mxu0
        %v2741 = vadd.f32 0.0, %v2740
        %v2742 = vpop.f32.mrb[0].mxu0
        %v2743 = vpop.f32.mrb[0].mxu0
        %v2744 = vadd.f32 0.0, %v2743
        %v2745 = vpop.f32.mrb[0].mxu0
        %2746 = vmatprep.mubr.bf16.mxu0 0
        %2747 = vmatmul.mubr.bf16.gmra.mrb[0].mxu0 %v2671
        %v2748 = vpop.f32.mrb[0].mxu0
        %v2749 = vadd.f32 0.0, %v2748
        %v2750 = vpop.f32.mrb[0].mxu0
        %v2751 = vpop.f32.mrb[0].mxu0
        %v2752 = vadd.f32 0.0, %v2751
        %v2753 = vpop.f32.mrb[0].mxu0
        %2754 = vmatprep.mubr.bf16.mxu0 0
        %2755 = vmatmul.mubr.bf16.gmra.mrb[0].mxu0 %v2672
        %v2756 = vpop.f32.mrb[0].mxu0
        %v2757 = vadd.f32 0.0, %v2756
        %v2758 = vpop.f32.mrb[0].mxu0
        %v2759 = vpop.f32.mrb[0].mxu0
        %v2760 = vadd.f32 0.0, %v2759
        %v2761 = vpop.f32.mrb[0].mxu0
        %2762 = vmatprep.mubr.bf16.mxu0 0
        %2763 = vmatmul.mubr.bf16.gmra.mrb[0].mxu0 %v2673
        %v2764 = vpop.f32.mrb[0].mxu0
        %v2765 = vadd.f32 0.0, %v2764
        %v2766 = vpop.f32.mrb[0].mxu0
        %v2767 = vpop.f32.mrb[0].mxu0
        %v2768 = vadd.f32 0.0, %v2767
        %v2769 = vpop.f32.mrb[0].mxu0
        %2770 = vdwg.mxu0
        %v2771 = vadd.f32 %v2363, %v2709
        %v2772 = vadd.f32 %v2366, %v2712
        %v2773 = vadd.f32 %v2371, %v2717
        %v2774 = vadd.f32 %v2374, %v2720
        %v2775 = vadd.f32 %v2379, %v2725
        %v2776 = vadd.f32 %v2382, %v2728
        %v2777 = vadd.f32 %v2387, %v2733
        %v2778 = vadd.f32 %v2390, %v2736
        %v2779 = vadd.f32 %v2395, %v2741
        %v2780 = vadd.f32 %v2398, %v2744
        %v2781 = vadd.f32 %v2403, %v2749
        %v2782 = vadd.f32 %v2406, %v2752
        %v2783 = vadd.f32 %v2411, %v2757
        %v2784 = vadd.f32 %v2414, %v2760
        %v2785 = vadd.f32 %v2419, %v2765
        %v2786 = vadd.f32 %v2422, %v2768
        %2787 = vmatprep.subr.bf16.mxu0 0
        %2788 = vmatpush1.bf16.xpose.msra.mxu0 %v1612
        %2789 = vmatprep.subr.bf16.mxu0 0
        %2790 = vmatpush1.bf16.xpose.msra.mxu0 %v1624
        %2791 = vmatprep.subr.bf16.mxu0 0
        %2792 = vmatpush1.bf16.xpose.msra.mxu0 %v1636
        %2793 = vmatprep.subr.bf16.mxu0 0
        %2794 = vmatpush1.bf16.xpose.msra.mxu0 %v1648
        %2795 = vmatprep.subr.bf16.mxu0 0
        %2796 = vmatpush1.bf16.xpose.msra.mxu0 %v1660
        %2797 = vmatprep.subr.bf16.mxu0 0
        %2798 = vmatpush1.bf16.xpose.msra.mxu0 %v1672
        %2799 = vmatprep.subr.bf16.mxu0 0
        %2800 = vmatpush1.bf16.xpose.msra.mxu0 %v1684
        %2801 = vmatprep.subr.bf16.mxu0 0
        %2802 = vmatpush1.bf16.xpose.msra.mxu0 %v1696
        %2803 = vmatprep.subr.bf16.mxu0 0
        %2804 = vmatpush1.bf16.xpose.msra.mxu0 0
        %2805 = vmatprep.subr.bf16.mxu0 0
        %2806 = vmatpush1.bf16.xpose.msra.mxu0 0
        %2807 = vmatprep.subr.bf16.mxu0 0
        %2808 = vmatpush1.bf16.xpose.msra.mxu0 0
        %2809 = vmatprep.subr.bf16.mxu0 0
        %2810 = vmatpush1.bf16.xpose.msra.mxu0 0
        %2811 = vmatprep.subr.bf16.mxu0 0
        %2812 = vmatpush1.bf16.xpose.msra.mxu0 0
        %2813 = vmatprep.subr.bf16.mxu0 0
        %2814 = vmatpush1.bf16.xpose.msra.mxu0 0
        %2815 = vmatprep.subr.bf16.mxu0 0
        %2816 = vmatpush1.bf16.xpose.msra.mxu0 0
        %2817 = vmatprep.subr.bf16.mxu0 0
        %2818 = vmatpush1.bf16.xpose.msra.mxu0 0
        %2819 = vmatprep.mubr.bf16.mxu0 0
        %2820 = vmatmul.mubr.bf16.gmra.mrb[0].mxu0 %v1608
        %v2821 = vpop.f32.mrb[0].mxu0
        %v2822 = vadd.f32 %v1717, %v2821
        %v2823 = vpop.f32.mrb[0].mxu0
        %v2824 = vpop.f32.mrb[0].mxu0
        %v2825 = vadd.f32 %v1718, %v2824
        %v2826 = vpop.f32.mrb[0].mxu0
        %2827 = vmatprep.mubr.bf16.mxu0 0
        %2828 = vmatmul.mubr.bf16.gmra.mrb[0].mxu0 %v1620
        %v2829 = vpop.f32.mrb[0].mxu0
        %v2830 = vadd.f32 %v1719, %v2829
        %v2831 = vpop.f32.mrb[0].mxu0
        %v2832 = vpop.f32.mrb[0].mxu0
        %v2833 = vadd.f32 %v1720, %v2832
        %v2834 = vpop.f32.mrb[0].mxu0
        %2835 = vmatprep.mubr.bf16.mxu0 0
        %2836 = vmatmul.mubr.bf16.gmra.mrb[0].mxu0 %v1632
        %v2837 = vpop.f32.mrb[0].mxu0
        %v2838 = vadd.f32 %v1721, %v2837
        %v2839 = vpop.f32.mrb[0].mxu0
        %v2840 = vpop.f32.mrb[0].mxu0
        %v2841 = vadd.f32 %v1722, %v2840
        %v2842 = vpop.f32.mrb[0].mxu0
        %2843 = vmatprep.mubr.bf16.mxu0 0
        %2844 = vmatmul.mubr.bf16.gmra.mrb[0].mxu0 %v1644
        %v2845 = vpop.f32.mrb[0].mxu0
        %v2846 = vadd.f32 %v1723, %v2845
        %v2847 = vpop.f32.mrb[0].mxu0
        %v2848 = vpop.f32.mrb[0].mxu0
        %v2849 = vadd.f32 %v1724, %v2848
        %v2850 = vpop.f32.mrb[0].mxu0
        %2851 = vmatprep.mubr.bf16.mxu0 0
        %2852 = vmatmul.mubr.bf16.gmra.mrb[0].mxu0 %v1656
        %v2853 = vpop.f32.mrb[0].mxu0
        %v2854 = vadd.f32 %v1725, %v2853
        %v2855 = vpop.f32.mrb[0].mxu0
        %v2856 = vpop.f32.mrb[0].mxu0
        %v2857 = vadd.f32 %v1726, %v2856
        %v2858 = vpop.f32.mrb[0].mxu0
        %2859 = vmatprep.mubr.bf16.mxu0 0
        %2860 = vmatmul.mubr.bf16.gmra.mrb[0].mxu0 %v1668
        %v2861 = vpop.f32.mrb[0].mxu0
        %v2862 = vadd.f32 %v1727, %v2861
        %v2863 = vpop.f32.mrb[0].mxu0
        %v2864 = vpop.f32.mrb[0].mxu0
        %v2865 = vadd.f32 %v1728, %v2864
        %v2866 = vpop.f32.mrb[0].mxu0
        %2867 = vmatprep.mubr.bf16.mxu0 0
        %2868 = vmatmul.mubr.bf16.gmra.mrb[0].mxu0 %v1680
        %v2869 = vpop.f32.mrb[0].mxu0
        %v2870 = vadd.f32 %v1729, %v2869
        %v2871 = vpop.f32.mrb[0].mxu0
        %v2872 = vpop.f32.mrb[0].mxu0
        %v2873 = vadd.f32 %v1730, %v2872
        %v2874 = vpop.f32.mrb[0].mxu0
        %2875 = vmatprep.mubr.bf16.mxu0 0
        %2876 = vmatmul.mubr.bf16.gmra.mrb[0].mxu0 %v1692
        %v2877 = vpop.f32.mrb[0].mxu0
        %v2878 = vadd.f32 %v1731, %v2877
        %v2879 = vpop.f32.mrb[0].mxu0
        %v2880 = vpop.f32.mrb[0].mxu0
        %v2881 = vadd.f32 %v1732, %v2880
        %v2882 = vpop.f32.mrb[0].mxu0
        %2883 = vdwg.mxu0
        %2884 = vmax.xlane.f32.xlu0 %v2822
        %v2885 = vpop.xlane.xlu0 %2884
        %2886 = vmax.xlane.f32.xlu0 %v2825
        %v2887 = vpop.xlane.xlu0 %2886
        %2888 = vmax.xlane.f32.xlu0 %v2830
        %v2889 = vpop.xlane.xlu0 %2888
        %2890 = vmax.xlane.f32.xlu0 %v2833
        %v2891 = vpop.xlane.xlu0 %2890
        %2892 = vmax.xlane.f32.xlu0 %v2838
        %v2893 = vpop.xlane.xlu0 %2892
        %2894 = vmax.xlane.f32.xlu0 %v2841
        %v2895 = vpop.xlane.xlu0 %2894
        %2896 = vmax.xlane.f32.xlu0 %v2846
        %v2897 = vpop.xlane.xlu0 %2896
        %2898 = vmax.xlane.f32.xlu0 %v2849
        %v2899 = vpop.xlane.xlu0 %2898
        %2900 = vmax.xlane.f32.xlu0 %v2854
        %v2901 = vpop.xlane.xlu0 %2900
        %2902 = vmax.xlane.f32.xlu0 %v2857
        %v2903 = vpop.xlane.xlu0 %2902
        %2904 = vmax.xlane.f32.xlu0 %v2862
        %v2905 = vpop.xlane.xlu0 %2904
        %2906 = vmax.xlane.f32.xlu0 %v2865
        %v2907 = vpop.xlane.xlu0 %2906
        %2908 = vmax.xlane.f32.xlu0 %v2870
        %v2909 = vpop.xlane.xlu0 %2908
        %2910 = vmax.xlane.f32.xlu0 %v2873
        %v2911 = vpop.xlane.xlu0 %2910
        %2912 = vmax.xlane.f32.xlu0 %v2878
        %v2913 = vpop.xlane.xlu0 %2912
        %2914 = vmax.xlane.f32.xlu0 %v2881
        %v2915 = vpop.xlane.xlu0 %2914
        %v2916 = vsub.f32 %v2822, %v2885
        %v2917 = vsub.f32 %v2825, %v2887
        %v2918 = vsub.f32 %v2830, %v2889
        %v2919 = vsub.f32 %v2833, %v2891
        %v2920 = vsub.f32 %v2838, %v2893
        %v2921 = vsub.f32 %v2841, %v2895
        %v2922 = vsub.f32 %v2846, %v2897
        %v2923 = vsub.f32 %v2849, %v2899
        %v2924 = vsub.f32 %v2854, %v2901
        %v2925 = vsub.f32 %v2857, %v2903
        %v2926 = vsub.f32 %v2862, %v2905
        %v2927 = vsub.f32 %v2865, %v2907
        %v2928 = vsub.f32 %v2870, %v2909
        %v2929 = vsub.f32 %v2873, %v2911
        %v2930 = vsub.f32 %v2878, %v2913
        %v2931 = vsub.f32 %v2881, %v2915
        %v2932 = vmul.f32 %v2916, 1.442695
        %v2933 = vpow.pop %v2932
        %v2934 = vmul.f32 %v2917, 1.442695
        %v2935 = vpow.pop %v2934
        %v2936 = vmul.f32 %v2918, 1.442695
        %v2937 = vpow.pop %v2936
        %v2938 = vmul.f32 %v2919, 1.442695
        %v2939 = vpow.pop %v2938
        %v2940 = vmul.f32 %v2920, 1.442695
        %v2941 = vpow.pop %v2940
        %v2942 = vmul.f32 %v2921, 1.442695
        %v2943 = vpow.pop %v2942
        %v2944 = vmul.f32 %v2922, 1.442695
        %v2945 = vpow.pop %v2944
        %v2946 = vmul.f32 %v2923, 1.442695
        %v2947 = vpow.pop %v2946
        %v2948 = vmul.f32 %v2924, 1.442695
        %v2949 = vpow.pop %v2948
        %v2950 = vmul.f32 %v2925, 1.442695
        %v2951 = vpow.pop %v2950
        %v2952 = vmul.f32 %v2926, 1.442695
        %v2953 = vpow.pop %v2952
        %v2954 = vmul.f32 %v2927, 1.442695
        %v2955 = vpow.pop %v2954
        %v2956 = vmul.f32 %v2928, 1.442695
        %v2957 = vpow.pop %v2956
        %v2958 = vmul.f32 %v2929, 1.442695
        %v2959 = vpow.pop %v2958
        %v2960 = vmul.f32 %v2930, 1.442695
        %v2961 = vpow.pop %v2960
        %v2962 = vmul.f32 %v2931, 1.442695
        %v2963 = vpow.pop %v2962
        %2964 = vadd.xlane.f32.xlu0 %v2933
        %v2965 = vpop.xlane.xlu0 %2964
        %2966 = vadd.xlane.f32.xlu0 %v2935
        %v2967 = vpop.xlane.xlu0 %2966
        %2968 = vadd.xlane.f32.xlu0 %v2937
        %v2969 = vpop.xlane.xlu0 %2968
        %2970 = vadd.xlane.f32.xlu0 %v2939
        %v2971 = vpop.xlane.xlu0 %2970
        %2972 = vadd.xlane.f32.xlu0 %v2941
        %v2973 = vpop.xlane.xlu0 %2972
        %2974 = vadd.xlane.f32.xlu0 %v2943
        %v2975 = vpop.xlane.xlu0 %2974
        %2976 = vadd.xlane.f32.xlu0 %v2945
        %v2977 = vpop.xlane.xlu0 %2976
        %2978 = vadd.xlane.f32.xlu0 %v2947
        %v2979 = vpop.xlane.xlu0 %2978
        %2980 = vadd.xlane.f32.xlu0 %v2949
        %v2981 = vpop.xlane.xlu0 %2980
        %2982 = vadd.xlane.f32.xlu0 %v2951
        %v2983 = vpop.xlane.xlu0 %2982
        %2984 = vadd.xlane.f32.xlu0 %v2953
        %v2985 = vpop.xlane.xlu0 %2984
        %2986 = vadd.xlane.f32.xlu0 %v2955
        %v2987 = vpop.xlane.xlu0 %2986
        %2988 = vadd.xlane.f32.xlu0 %v2957
        %v2989 = vpop.xlane.xlu0 %2988
        %2990 = vadd.xlane.f32.xlu0 %v2959
        %v2991 = vpop.xlane.xlu0 %2990
        %2992 = vadd.xlane.f32.xlu0 %v2961
        %v2993 = vpop.xlane.xlu0 %2992
        %2994 = vadd.xlane.f32.xlu0 %v2963
        %v2995 = vpop.xlane.xlu0 %2994
        %v2996 = vrcp.pop %v2965
        %v2997 = vrcp.pop %v2967
        %v2998 = vrcp.pop %v2969
        %v2999 = vrcp.pop %v2971
        %v3000 = vrcp.pop %v2973
        %v3001 = vrcp.pop %v2975
        %v3002 = vrcp.pop %v2977
        %v3003 = vrcp.pop %v2979
        %v3004 = vrcp.pop %v2981
        %v3005 = vrcp.pop %v2983
        %v3006 = vrcp.pop %v2985
        %v3007 = vrcp.pop %v2987
        %v3008 = vrcp.pop %v2989
        %v3009 = vrcp.pop %v2991
        %v3010 = vrcp.pop %v2993
        %v3011 = vrcp.pop %v2995
        %v3012 = vmul.f32 %v2933, %v2996
        %v3013 = vmul.f32 %v2935, %v2997
        %v3014 = vmul.f32 %v2937, %v2998
        %v3015 = vmul.f32 %v2939, %v2999
        %v3016 = vmul.f32 %v2941, %v3000
        %v3017 = vmul.f32 %v2943, %v3001
        %v3018 = vmul.f32 %v2945, %v3002
        %v3019 = vmul.f32 %v2947, %v3003
        %v3020 = vmul.f32 %v2949, %v3004
        %v3021 = vmul.f32 %v2951, %v3005
        %v3022 = vmul.f32 %v2953, %v3006
        %v3023 = vmul.f32 %v2955, %v3007
        %v3024 = vmul.f32 %v2957, %v3008
        %v3025 = vmul.f32 %v2959, %v3009
        %v3026 = vmul.f32 %v2961, %v3010
        %v3027 = vmul.f32 %v2963, %v3011
        %v3028 = vpack.c.bf16 %v3013, %v3012
        %v3029 = vpack.c.bf16 %v3015, %v3014
        %v3030 = vpack.c.bf16 %v3017, %v3016
        %v3031 = vpack.c.bf16 %v3019, %v3018
        %v3032 = vpack.c.bf16 %v3021, %v3020
        %v3033 = vpack.c.bf16 %v3023, %v3022
        %v3034 = vpack.c.bf16 %v3025, %v3024
        %v3035 = vpack.c.bf16 %v3027, %v3026
        %3036 = vmatprep.subr.bf16.mxu0 0
        %3037 = vmatpush1.bf16.msra.mxu0 %v1616
        %3038 = vmatprep.subr.bf16.mxu0 0
        %3039 = vmatpush1.bf16.msra.mxu0 %v1628
        %3040 = vmatprep.subr.bf16.mxu0 0
        %3041 = vmatpush1.bf16.msra.mxu0 %v1640
        %3042 = vmatprep.subr.bf16.mxu0 0
        %3043 = vmatpush1.bf16.msra.mxu0 %v1652
        %3044 = vmatprep.subr.bf16.mxu0 0
        %3045 = vmatpush1.bf16.msra.mxu0 %v1664
        %3046 = vmatprep.subr.bf16.mxu0 0
        %3047 = vmatpush1.bf16.msra.mxu0 %v1676
        %3048 = vmatprep.subr.bf16.mxu0 0
        %3049 = vmatpush1.bf16.msra.mxu0 %v1688
        %3050 = vmatprep.subr.bf16.mxu0 0
        %3051 = vmatpush1.bf16.msra.mxu0 %v1700
        %3052 = vmatprep.subr.bf16.mxu0 0
        %3053 = vmatpush1.bf16.msra.mxu0 0
        %3054 = vmatprep.subr.bf16.mxu0 0
        %3055 = vmatpush1.bf16.msra.mxu0 0
        %3056 = vmatprep.subr.bf16.mxu0 0
        %3057 = vmatpush1.bf16.msra.mxu0 0
        %3058 = vmatprep.subr.bf16.mxu0 0
        %3059 = vmatpush1.bf16.msra.mxu0 0
        %3060 = vmatprep.subr.bf16.mxu0 0
        %3061 = vmatpush1.bf16.msra.mxu0 0
        %3062 = vmatprep.subr.bf16.mxu0 0
        %3063 = vmatpush1.bf16.msra.mxu0 0
        %3064 = vmatprep.subr.bf16.mxu0 0
        %3065 = vmatpush1.bf16.msra.mxu0 0
        %3066 = vmatprep.subr.bf16.mxu0 0
        %3067 = vmatpush1.bf16.msra.mxu0 0
        %3068 = vmatprep.mubr.bf16.mxu0 0
        %3069 = vmatmul.mubr.bf16.gmra.mrb[0].mxu0 %v3028
        %v3070 = vpop.f32.mrb[0].mxu0
        %v3071 = vadd.f32 0.0, %v3070
        %v3072 = vpop.f32.mrb[0].mxu0
        %v3073 = vpop.f32.mrb[0].mxu0
        %v3074 = vadd.f32 0.0, %v3073
        %v3075 = vpop.f32.mrb[0].mxu0
        %3076 = vmatprep.mubr.bf16.mxu0 0
        %3077 = vmatmul.mubr.bf16.gmra.mrb[0].mxu0 %v3029
        %v3078 = vpop.f32.mrb[0].mxu0
        %v3079 = vadd.f32 0.0, %v3078
        %v3080 = vpop.f32.mrb[0].mxu0
        %v3081 = vpop.f32.mrb[0].mxu0
        %v3082 = vadd.f32 0.0, %v3081
        %v3083 = vpop.f32.mrb[0].mxu0
        %3084 = vmatprep.mubr.bf16.mxu0 0
        %3085 = vmatmul.mubr.bf16.gmra.mrb[0].mxu0 %v3030
        %v3086 = vpop.f32.mrb[0].mxu0
        %v3087 = vadd.f32 0.0, %v3086
        %v3088 = vpop.f32.mrb[0].mxu0
        %v3089 = vpop.f32.mrb[0].mxu0
        %v3090 = vadd.f32 0.0, %v3089
        %v3091 = vpop.f32.mrb[0].mxu0
        %3092 = vmatprep.mubr.bf16.mxu0 0
        %3093 = vmatmul.mubr.bf16.gmra.mrb[0].mxu0 %v3031
        %v3094 = vpop.f32.mrb[0].mxu0
        %v3095 = vadd.f32 0.0, %v3094
        %v3096 = vpop.f32.mrb[0].mxu0
        %v3097 = vpop.f32.mrb[0].mxu0
        %v3098 = vadd.f32 0.0, %v3097
        %v3099 = vpop.f32.mrb[0].mxu0
        %3100 = vmatprep.mubr.bf16.mxu0 0
        %3101 = vmatmul.mubr.bf16.gmra.mrb[0].mxu0 %v3032
        %v3102 = vpop.f32.mrb[0].mxu0
        %v3103 = vadd.f32 0.0, %v3102
        %v3104 = vpop.f32.mrb[0].mxu0
        %v3105 = vpop.f32.mrb[0].mxu0
        %v3106 = vadd.f32 0.0, %v3105
        %v3107 = vpop.f32.mrb[0].mxu0
        %3108 = vmatprep.mubr.bf16.mxu0 0
        %3109 = vmatmul.mubr.bf16.gmra.mrb[0].mxu0 %v3033
        %v3110 = vpop.f32.mrb[0].mxu0
        %v3111 = vadd.f32 0.0, %v3110
        %v3112 = vpop.f32.mrb[0].mxu0
        %v3113 = vpop.f32.mrb[0].mxu0
        %v3114 = vadd.f32 0.0, %v3113
        %v3115 = vpop.f32.mrb[0].mxu0
        %3116 = vmatprep.mubr.bf16.mxu0 0
        %3117 = vmatmul.mubr.bf16.gmra.mrb[0].mxu0 %v3034
        %v3118 = vpop.f32.mrb[0].mxu0
        %v3119 = vadd.f32 0.0, %v3118
        %v3120 = vpop.f32.mrb[0].mxu0
        %v3121 = vpop.f32.mrb[0].mxu0
        %v3122 = vadd.f32 0.0, %v3121
        %v3123 = vpop.f32.mrb[0].mxu0
        %3124 = vmatprep.mubr.bf16.mxu0 0
        %3125 = vmatmul.mubr.bf16.gmra.mrb[0].mxu0 %v3035
        %v3126 = vpop.f32.mrb[0].mxu0
        %v3127 = vadd.f32 0.0, %v3126
        %v3128 = vpop.f32.mrb[0].mxu0
        %v3129 = vpop.f32.mrb[0].mxu0
        %v3130 = vadd.f32 0.0, %v3129
        %v3131 = vpop.f32.mrb[0].mxu0
        %3132 = vdwg.mxu0
        %v3133 = vadd.f32 %v2771, %v3071
        %v3134 = vadd.f32 %v2772, %v3074
        %v3135 = vadd.f32 %v2773, %v3079
        %v3136 = vadd.f32 %v2774, %v3082
        %v3137 = vadd.f32 %v2775, %v3087
        %v3138 = vadd.f32 %v2776, %v3090
        %v3139 = vadd.f32 %v2777, %v3095
        %v3140 = vadd.f32 %v2778, %v3098
        %v3141 = vadd.f32 %v2779, %v3103
        %v3142 = vadd.f32 %v2780, %v3106
        %v3143 = vadd.f32 %v2781, %v3111
        %v3144 = vadd.f32 %v2782, %v3114
        %v3145 = vadd.f32 %v2783, %v3119
        %v3146 = vadd.f32 %v2784, %v3122
        %v3147 = vadd.f32 %v2785, %v3127
        %v3148 = vadd.f32 %v2786, %v3130
        %v3149 = vld [vmem:[%s2] sm:$0x1]
        %v3151 = vlaneseq
        %v3152 = vshrl.u32 %v3151, 7
        %v3153 = vsub.s32 0, %v3152
        %v3154 = vrot.slane %v3149, %v3153
        %v3156 = vadd.f32 %v3133, %v3154
        %v3157 = vadd.f32 %v3134, %v3154
        %v3158 = vadd.f32 %v3135, %v3154
        %v3159 = vadd.f32 %v3136, %v3154
        %v3160 = vadd.f32 %v3137, %v3154
        %v3161 = vadd.f32 %v3138, %v3154
        %v3162 = vadd.f32 %v3139, %v3154
        %v3163 = vadd.f32 %v3140, %v3154
        %v3164 = vadd.f32 %v3141, %v3154
        %v3165 = vadd.f32 %v3142, %v3154
        %v3166 = vadd.f32 %v3143, %v3154
        %v3167 = vadd.f32 %v3144, %v3154
        %v3168 = vadd.f32 %v3145, %v3154
        %v3169 = vadd.f32 %v3146, %v3154
        %v3170 = vadd.f32 %v3147, %v3154
        %v3171 = vadd.f32 %v3148, %v3154
        %v3172 = vadd.f32 %v3156, %v327
        %v3173 = vadd.f32 %v3157, %v328
        %v3174 = vadd.f32 %v3158, %v329
        %v3175 = vadd.f32 %v3159, %v330
        %v3176 = vadd.f32 %v3160, %v331
        %v3177 = vadd.f32 %v3161, %v332
        %v3178 = vadd.f32 %v3162, %v333
        %v3179 = vadd.f32 %v3163, %v334
        %v3180 = vadd.f32 %v3164, %v335
        %v3181 = vadd.f32 %v3165, %v336
        %v3182 = vadd.f32 %v3166, %v337
        %v3183 = vadd.f32 %v3167, %v338
        %v3184 = vadd.f32 %v3168, %v339
        %v3185 = vadd.f32 %v3169, %v340
        %v3186 = vadd.f32 %v3170, %v341
        %v3187 = vadd.f32 %v3171, %v342
        %v3188 = vld [vmem:[%s6] sm:$0x1]
        %3189 = vadd.xlane.f32.xlu0 %v3172
        %v3190 = vpop.xlane.xlu0 %3189
        %3191 = vadd.xlane.f32.xlu0 %v3173
        %v3192 = vpop.xlane.xlu0 %3191
        %3193 = vadd.xlane.f32.xlu0 %v3174
        %v3194 = vpop.xlane.xlu0 %3193
        %3195 = vadd.xlane.f32.xlu0 %v3175
        %v3196 = vpop.xlane.xlu0 %3195
        %3197 = vadd.xlane.f32.xlu0 %v3176
        %v3198 = vpop.xlane.xlu0 %3197
        %3199 = vadd.xlane.f32.xlu0 %v3177
        %v3200 = vpop.xlane.xlu0 %3199
        %3201 = vadd.xlane.f32.xlu0 %v3178
        %v3202 = vpop.xlane.xlu0 %3201
        %3203 = vadd.xlane.f32.xlu0 %v3179
        %v3204 = vpop.xlane.xlu0 %3203
        %3205 = vadd.xlane.f32.xlu0 %v3180
        %v3206 = vpop.xlane.xlu0 %3205
        %3207 = vadd.xlane.f32.xlu0 %v3181
        %v3208 = vpop.xlane.xlu0 %3207
        %3209 = vadd.xlane.f32.xlu0 %v3182
        %v3210 = vpop.xlane.xlu0 %3209
        %3211 = vadd.xlane.f32.xlu0 %v3183
        %v3212 = vpop.xlane.xlu0 %3211
        %3213 = vadd.xlane.f32.xlu0 %v3184
        %v3214 = vpop.xlane.xlu0 %3213
        %3215 = vadd.xlane.f32.xlu0 %v3185
        %v3216 = vpop.xlane.xlu0 %3215
        %3217 = vadd.xlane.f32.xlu0 %v3186
        %v3218 = vpop.xlane.xlu0 %3217
        %3219 = vadd.xlane.f32.xlu0 %v3187
        %v3220 = vpop.xlane.xlu0 %3219
        %v3221 = vmul.f32 %v3190, 0.03125
        %v3222 = vmul.f32 %v3192, 0.03125
        %v3223 = vmul.f32 %v3194, 0.03125
        %v3224 = vmul.f32 %v3196, 0.03125
        %v3225 = vmul.f32 %v3198, 0.03125
        %v3226 = vmul.f32 %v3200, 0.03125
        %v3227 = vmul.f32 %v3202, 0.03125
        %v3228 = vmul.f32 %v3204, 0.03125
        %v3229 = vmul.f32 %v3206, 0.03125
        %v3230 = vmul.f32 %v3208, 0.03125
        %v3231 = vmul.f32 %v3210, 0.03125
        %v3232 = vmul.f32 %v3212, 0.03125
        %v3233 = vmul.f32 %v3214, 0.03125
        %v3234 = vmul.f32 %v3216, 0.03125
        %v3235 = vmul.f32 %v3218, 0.03125
        %v3236 = vmul.f32 %v3220, 0.03125
        %v3237 = vsub.f32 %v3172, %v3221
        %v3238 = vsub.f32 %v3173, %v3222
        %v3239 = vsub.f32 %v3174, %v3223
        %v3240 = vsub.f32 %v3175, %v3224
        %v3241 = vsub.f32 %v3176, %v3225
        %v3242 = vsub.f32 %v3177, %v3226
        %v3243 = vsub.f32 %v3178, %v3227
        %v3244 = vsub.f32 %v3179, %v3228
        %v3245 = vsub.f32 %v3180, %v3229
        %v3246 = vsub.f32 %v3181, %v3230
        %v3247 = vsub.f32 %v3182, %v3231
        %v3248 = vsub.f32 %v3183, %v3232
        %v3249 = vsub.f32 %v3184, %v3233
        %v3250 = vsub.f32 %v3185, %v3234
        %v3251 = vsub.f32 %v3186, %v3235
        %v3252 = vsub.f32 %v3187, %v3236
        %v3254 = vlaneseq
        %v3255 = vshrl.u32 %v3254, 7
        %v3256 = vsub.s32 0, %v3255
        %v3257 = vrot.slane %v3188, %v3256
        %v3259 = vmul.f32 %v3237, %v3257
        %v3260 = vmul.f32 %v3238, %v3257
        %v3261 = vmul.f32 %v3239, %v3257
        %v3262 = vmul.f32 %v3240, %v3257
        %v3263 = vmul.f32 %v3241, %v3257
        %v3264 = vmul.f32 %v3242, %v3257
        %v3265 = vmul.f32 %v3243, %v3257
        %v3266 = vmul.f32 %v3244, %v3257
        %v3267 = vmul.f32 %v3245, %v3257
        %v3268 = vmul.f32 %v3246, %v3257
        %v3269 = vmul.f32 %v3247, %v3257
        %v3270 = vmul.f32 %v3248, %v3257
        %v3271 = vmul.f32 %v3249, %v3257
        %v3272 = vmul.f32 %v3250, %v3257
        %v3273 = vmul.f32 %v3251, %v3257
        %v3274 = vmul.f32 %v3252, %v3257
        %v3275 = vmul.f32 %v3259, %v3259
        %v3276 = vmul.f32 %v3260, %v3260
        %v3277 = vmul.f32 %v3261, %v3261
        %v3278 = vmul.f32 %v3262, %v3262
        %v3279 = vmul.f32 %v3263, %v3263
        %v3280 = vmul.f32 %v3264, %v3264
        %v3281 = vmul.f32 %v3265, %v3265
        %v3282 = vmul.f32 %v3266, %v3266
        %v3283 = vmul.f32 %v3267, %v3267
        %v3284 = vmul.f32 %v3268, %v3268
        %v3285 = vmul.f32 %v3269, %v3269
        %v3286 = vmul.f32 %v3270, %v3270
        %v3287 = vmul.f32 %v3271, %v3271
        %v3288 = vmul.f32 %v3272, %v3272
        %v3289 = vmul.f32 %v3273, %v3273
        %v3290 = vmul.f32 %v3274, %v3274
        %3291 = vadd.xlane.f32.xlu0 %v3275
        %v3292 = vpop.xlane.xlu0 %3291
        %3293 = vadd.xlane.f32.xlu0 %v3276
        %v3294 = vpop.xlane.xlu0 %3293
        %3295 = vadd.xlane.f32.xlu0 %v3277
        %v3296 = vpop.xlane.xlu0 %3295
        %3297 = vadd.xlane.f32.xlu0 %v3278
        %v3298 = vpop.xlane.xlu0 %3297
        %3299 = vadd.xlane.f32.xlu0 %v3279
        %v3300 = vpop.xlane.xlu0 %3299
        %3301 = vadd.xlane.f32.xlu0 %v3280
        %v3302 = vpop.xlane.xlu0 %3301
        %3303 = vadd.xlane.f32.xlu0 %v3281
        %v3304 = vpop.xlane.xlu0 %3303
        %3305 = vadd.xlane.f32.xlu0 %v3282
        %v3306 = vpop.xlane.xlu0 %3305
        %3307 = vadd.xlane.f32.xlu0 %v3283
        %v3308 = vpop.xlane.xlu0 %3307
        %3309 = vadd.xlane.f32.xlu0 %v3284
        %v3310 = vpop.xlane.xlu0 %3309
        %3311 = vadd.xlane.f32.xlu0 %v3285
        %v3312 = vpop.xlane.xlu0 %3311
        %3313 = vadd.xlane.f32.xlu0 %v3286
        %v3314 = vpop.xlane.xlu0 %3313
        %3315 = vadd.xlane.f32.xlu0 %v3287
        %v3316 = vpop.xlane.xlu0 %3315
        %3317 = vadd.xlane.f32.xlu0 %v3288
        %v3318 = vpop.xlane.xlu0 %3317
        %3319 = vadd.xlane.f32.xlu0 %v3289
        %v3320 = vpop.xlane.xlu0 %3319
        %3321 = vadd.xlane.f32.xlu0 %v3290
        %v3322 = vpop.xlane.xlu0 %3321
        %v3323 = vmul.f32 %v3292, 0.03125
        %v3324 = vmul.f32 %v3294, 0.03125
        %v3325 = vmul.f32 %v3296, 0.03125
        %v3326 = vmul.f32 %v3298, 0.03125
        %v3327 = vmul.f32 %v3300, 0.03125
        %v3328 = vmul.f32 %v3302, 0.03125
        %v3329 = vmul.f32 %v3304, 0.03125
        %v3330 = vmul.f32 %v3306, 0.03125
        %v3331 = vmul.f32 %v3308, 0.03125
        %v3332 = vmul.f32 %v3310, 0.03125
        %v3333 = vmul.f32 %v3312, 0.03125
        %v3334 = vmul.f32 %v3314, 0.03125
        %v3335 = vmul.f32 %v3316, 0.03125
        %v3336 = vmul.f32 %v3318, 0.03125
        %v3337 = vmul.f32 %v3320, 0.03125
        %v3338 = vmul.f32 %v3322, 0.03125
        %v3339 = vadd.f32 %v3323, 1e-06
        %v3340 = vadd.f32 %v3324, 1e-06
        %v3341 = vadd.f32 %v3325, 1e-06
        %v3342 = vadd.f32 %v3326, 1e-06
        %v3343 = vadd.f32 %v3327, 1e-06
        %v3344 = vadd.f32 %v3328, 1e-06
        %v3345 = vadd.f32 %v3329, 1e-06
        %v3346 = vadd.f32 %v3330, 1e-06
        %v3347 = vadd.f32 %v3331, 1e-06
        %v3348 = vadd.f32 %v3332, 1e-06
        %v3349 = vadd.f32 %v3333, 1e-06
        %v3350 = vadd.f32 %v3334, 1e-06
        %v3351 = vadd.f32 %v3335, 1e-06
        %v3352 = vadd.f32 %v3336, 1e-06
        %v3353 = vadd.f32 %v3337, 1e-06
        %v3354 = vadd.f32 %v3338, 1e-06
        %v3355 = vrsqrt.pop %v3339
        %v3356 = vrsqrt.pop %v3340
        %v3357 = vrsqrt.pop %v3341
        %v3358 = vrsqrt.pop %v3342
        %v3359 = vrsqrt.pop %v3343
        %v3360 = vrsqrt.pop %v3344
        %v3361 = vrsqrt.pop %v3345
        %v3362 = vrsqrt.pop %v3346
        %v3363 = vrsqrt.pop %v3347
        %v3364 = vrsqrt.pop %v3348
        %v3365 = vrsqrt.pop %v3349
        %v3366 = vrsqrt.pop %v3350
        %v3367 = vrsqrt.pop %v3351
        %v3368 = vrsqrt.pop %v3352
        %v3369 = vrsqrt.pop %v3353
        %v3370 = vrsqrt.pop %v3354
        %v3371 = vmul.f32 %v3259, %v3355
        %v3372 = vmul.f32 %v3260, %v3356
        %v3373 = vmul.f32 %v3261, %v3357
        %v3374 = vmul.f32 %v3262, %v3358
        %v3375 = vmul.f32 %v3263, %v3359
        %v3376 = vmul.f32 %v3264, %v3360
        %v3377 = vmul.f32 %v3265, %v3361
        %v3378 = vmul.f32 %v3266, %v3362
        %v3379 = vmul.f32 %v3267, %v3363
        %v3380 = vmul.f32 %v3268, %v3364
        %v3381 = vmul.f32 %v3269, %v3365
        %v3382 = vmul.f32 %v3270, %v3366
        %v3383 = vmul.f32 %v3271, %v3367
        %v3384 = vmul.f32 %v3272, %v3368
        %v3385 = vmul.f32 %v3273, %v3369
        %v3386 = vmul.f32 %v3274, %v3370
        %v3387 = vld [vmem:[%s3] sm:$0x1]
        %v3389 = vlaneseq
        %v3390 = vshrl.u32 %v3389, 7
        %v3391 = vsub.s32 0, %v3390
        %v3392 = vrot.slane %v3387, %v3391
        %v3394 = vmul.f32 %v3371, %v3392
        %v3395 = vmul.f32 %v3372, %v3392
        %v3396 = vmul.f32 %v3373, %v3392
        %v3397 = vmul.f32 %v3374, %v3392
        %v3398 = vmul.f32 %v3375, %v3392
        %v3399 = vmul.f32 %v3376, %v3392
        %v3400 = vmul.f32 %v3377, %v3392
        %v3401 = vmul.f32 %v3378, %v3392
        %v3402 = vmul.f32 %v3379, %v3392
        %v3403 = vmul.f32 %v3380, %v3392
        %v3404 = vmul.f32 %v3381, %v3392
        %v3405 = vmul.f32 %v3382, %v3392
        %v3406 = vmul.f32 %v3383, %v3392
        %v3407 = vmul.f32 %v3384, %v3392
        %v3408 = vmul.f32 %v3385, %v3392
        %v3409 = vmul.f32 %v3386, %v3392
        %v3410 = vld [vmem:[%s4] sm:$0x1]
        %v3412 = vlaneseq
        %v3413 = vshrl.u32 %v3412, 7
        %v3414 = vsub.s32 0, %v3413
        %v3415 = vrot.slane %v3410, %v3414
        %v3417 = vadd.f32 %v3394, %v3415
        %v3418 = vadd.f32 %v3395, %v3415
        %v3419 = vadd.f32 %v3396, %v3415
        %v3420 = vadd.f32 %v3397, %v3415
        %v3421 = vadd.f32 %v3398, %v3415
        %v3422 = vadd.f32 %v3399, %v3415
        %v3423 = vadd.f32 %v3400, %v3415
        %v3424 = vadd.f32 %v3401, %v3415
        %v3425 = vadd.f32 %v3402, %v3415
        %v3426 = vadd.f32 %v3403, %v3415
        %v3427 = vadd.f32 %v3404, %v3415
        %v3428 = vadd.f32 %v3405, %v3415
        %v3429 = vadd.f32 %v3406, %v3415
        %v3430 = vadd.f32 %v3407, %v3415
        %v3431 = vadd.f32 %v3408, %v3415
        %v3432 = vadd.f32 %v3409, %v3415
        %3433 = vst [vmem:[%s325] sm:$0xff] %v3417
        %3434 = vst [vmem:[%s325 + $0x8] sm:$0xff] %v3418
        %3435 = vst [vmem:[%s325 + $0x10] sm:$0xff] %v3419
        %3436 = vst [vmem:[%s325 + $0x18] sm:$0xff] %v3420
        %3437 = vst [vmem:[%s325 + $0x20] sm:$0xff] %v3421
        %3438 = vst [vmem:[%s325 + $0x28] sm:$0xff] %v3422
        %3439 = vst [vmem:[%s325 + $0x30] sm:$0xff] %v3423
        %3440 = vst [vmem:[%s325 + $0x38] sm:$0xff] %v3424
        %3441 = vst [vmem:[%s325 + $0x40] sm:$0xff] %v3425
        %3442 = vst [vmem:[%s325 + $0x48] sm:$0xff] %v3426
        %3443 = vst [vmem:[%s325 + $0x50] sm:$0xff] %v3427
        %3444 = vst [vmem:[%s325 + $0x58] sm:$0xff] %v3428
        %3445 = vst [vmem:[%s325 + $0x60] sm:$0xff] %v3429
        %3446 = vst [vmem:[%s325 + $0x68] sm:$0xff] %v3430
        %3447 = vst [vmem:[%s325 + $0x70] sm:$0xff] %v3431
        %3448 = vst [vmem:[%s325 + $0x78] sm:$0xff] %v3432
        %s3449 = sand.u32 %s185, 1
        %s3450 = scalar_lea.sflag [#allocation4], %s3449
        %s3451 = sand.u32 %s185, 1
        %s3452 = smul.addr %s3451, 128
        %s3453 = scalar_lea.vmem [#allocation8], %s3452
        // Predicated region
        $region61: #{tpu_custom_call.1} parent=47 // pred_check
          %p3454 = pneg %p195
        $region62: #{tpu_custom_call.1} parent=47 // pred_check_branch
          %3456 = sbr.rel (%p3454) target = $region64
        $region63: #{tpu_custom_call.1} parent=47 // pred_region
          %s3458 = ssub.s32 2048, 2048
          %3459 = vsyncadd %s3450, %s3458
          %s3460 = smul.addr %s25, 16
          %s3461 = smul.addr %s3460, 128
          %s3462 = scalar_lea.hbm %s7, %s3461
          %s3463 = sshll.u32 %s3453, 4
          %s3464 = int_to_ptr.vmem [resolvable:$true] %s3463
          %3469 = dma.vmem_to_hbm [thread:$0]  %s3464, 2048, %s3462, %s3450, 128, 128, 8
        $region64: #{tpu_custom_call.1} parent=47 // pred_fallthru
          _
      $region48: #{tpu_custom_call.1} parent=5 // pred_fallthru
        _
      %p3470 = scmp.le.s32.totalorder 2, %s20
      // Predicated region
      $region65: #{tpu_custom_call.1} parent=5 // pred_check
        %p3471 = pneg %p3470
      $region66: #{tpu_custom_call.1} parent=5 // pred_check_branch
        %3473 = sbr.rel (%p3471) target = $region68
      $region67: #{tpu_custom_call.1} parent=5 // pred_region
        %s3474 = ssub.s32 %s20, 2
        // Predicated region
        $region69: #{tpu_custom_call.1} parent=67 // pred_check
          %p3475 = pneg %p201
        $region70: #{tpu_custom_call.1} parent=67 // pred_check_branch
          %3477 = sbr.rel (%p3475) target = $region72
        $region71: #{tpu_custom_call.1} parent=67 // pred_region
          %s3478 = sand.u32 %s186, 1
          %s3479 = scalar_lea.sflag [#allocation4], %s3478
          %s3480 = sand.u32 %s186, 1
          %s3481 = smul.addr %s3480, 128
          %s3482 = scalar_lea.vmem [#allocation8], %s3481
          %3483 = dma.done %s3479, 2048
        $region72: #{tpu_custom_call.1} parent=67 // pred_fallthru
          _
      $region68: #{tpu_custom_call.1} parent=5 // pred_fallthru
        _
    $region6: #{tpu_custom_call.1} parent=1 // loop_footer
      %s24 = sadd.s32 1, %s20
    $region7: #{tpu_custom_call.1} parent=1 // loop_footer_branch
      %19 = sbr.rel target = $region3
    $region8: #{tpu_custom_call.1} parent=1 // loop_exit
      _
    %3484 = vsyncpa [#allocation3], 1
    %s3485 = scalar_lea.sflag [#allocation3], 1
    %3486 = vsyncpa %s3485, 1
    %3487 = vsyncpa [#allocation6], 1
    %3488 = vsyncpa [#allocation4], 1
    %s3489 = scalar_lea.sflag [#allocation4], 1
    %3490 = vsyncpa %s3489, 1

</llo_original>
